<compile_context>
chip_gen: v6e
topology: v6e:2x2x1
jax: 0.10.0
libtpu: 0.0.40
codegen_flags: <defaults>
</compile_context>

<pallas_src>
import math
import functools

import numpy as np
import jax
import jax.numpy as jnp
from jax.experimental import pallas as pl
from jax.experimental.pallas import tpu as pltpu


# ----------------------------- fused Pallas kernel -----------------------------

def _decoder_layer_kernel(
    x_ref, cross_ref, trend_in_ref, ma_ref,
    ln_g_ref, ln_b_ref,
    sa_wqkv_ref, sa_bqkv_ref, sa_wo_ref, sa_bo_ref,
    ca_wqkv_ref, ca_bqkv_ref, ca_wo_ref, ca_bo_ref,
    conv1_w_ref, conv2_w_ref,
    t1_w_ref, t2_w_ref, t3_w_ref, t4_w_ref, t_b_ref,
    x_out_ref, trend_out_ref,
    ctx_ref,                                        # (L, D) f32 VMEM scratch
    *, n_heads, scale):
    f32, bf16 = jnp.float32, jnp.bfloat16
    x = x_ref[...].astype(f32)                      # (L, D)
    L, D = x.shape
    dh = D // n_heads

    def mm(a, b):                                   # a @ b, f32 accumulation (MXU)
        return jax.lax.dot_general(a, b, (((1,), (0,)), ((), ())),
                                   preferred_element_type=f32)

    def mm_tb(a, b):                                # a @ b.T (transposed RHS)
        return jax.lax.dot_general(a, b, (((1,), (1,)), ((), ())),
                                   preferred_element_type=f32)

    # ---- LayerNorm(d_model), eps=1e-5, biased variance (torch semantics), f32 ----
    mu = jnp.mean(x, axis=-1, keepdims=True)
    var = jnp.mean((x - mu) ** 2, axis=-1, keepdims=True)
    xn = (x - mu) * jax.lax.rsqrt(var + 1e-5) * ln_g_ref[...] + ln_b_ref[...]

    # ---- multi-head attention: stacked QKV matmul (bf16 in, f32 acc); head
    # contexts packed into the VMEM scratch -> single (L,D)@(D,D) output projection.
    def mha(q_src, kv_src, wqkv_ref, bqkv_ref, wo_ref, bo_ref, kv_is_q):
        wqkv = wqkv_ref[...]                        # (D, 3D) bf16
        bqkv = bqkv_ref[...]                        # (1, 3D) f32
        qkv_q = mm(q_src.astype(bf16), wqkv) + bqkv                  # (L, 3D)
        qkv_kv = qkv_q if kv_is_q else mm(kv_src.astype(bf16), wqkv) + bqkv
        for h in range(n_heads):                    # static unroll (4 heads)
            q_h = qkv_q[:, h * dh:(h + 1) * dh]                      # (L, dh)
            k_h = qkv_kv[:, D + h * dh:D + (h + 1) * dh]             # (L, dh)
            v_h = qkv_kv[:, 2 * D + h * dh:2 * D + (h + 1) * dh]     # (L, dh)
            s = mm_tb(q_h.astype(bf16), k_h.astype(bf16)) * scale    # (L, L) f32
            s = s - jnp.max(s, axis=-1, keepdims=True)
            p = jnp.exp(s)
            p = p * pl.reciprocal(jnp.sum(p, axis=-1, keepdims=True), approx=True)
            ctx_ref[:, h * dh:(h + 1) * dh] = mm(p.astype(bf16), v_h.astype(bf16))
        return mm(ctx_ref[...].astype(bf16), wo_ref[...]) + bo_ref[...]

    # ---- series_decomp: exact f32 matmul vs the (L,L) moving-average operator ----
    ma = ma_ref[...]

    def decomp(v):
        trend = mm(ma, v)
        return v - trend, trend

    # ---- circular Conv1d(k=3, pad=1, bias=False): pltpu.roll for the +/-1 circular
    # shifts along the sequence (sublane) axis + three channel matmuls.
    def circ_conv3(v, w_ref, relu):
        v_prev = pltpu.roll(v, 1, 0)                # row i <- v[(i-1) % L]
        v_next = pltpu.roll(v, L - 1, 0)            # row i <- v[(i+1) % L]
        y = (mm(v_prev.astype(bf16), w_ref[0])
             + mm(v.astype(bf16), w_ref[1])
             + mm(v_next.astype(bf16), w_ref[2]))
        return jnp.maximum(y, 0.0) if relu else y

    # ------------------------- DecoderLayer.forward -------------------------
    # x = layernorm(x); x = x + Dropout(self_attn(x, x, x, x, x))
    x1 = xn + mha(xn, xn, sa_wqkv_ref, sa_bqkv_ref, sa_wo_ref, sa_bo_ref, True)
    x1, trend1 = decomp(x1)

    # x = x + Dropout(cross_attn(x, x, x, cross, cross, use_q=True))
    cross = cross_ref[...].astype(f32)
    x2 = x1 + mha(x1, cross, ca_wqkv_ref, ca_bqkv_ref, ca_wo_ref, ca_bo_ref, False)
    x2, trend2 = decomp(x2)

    # y = Dropout(relu(conv1(x^T))); y = Dropout(conv2(y))^T; x, trend3 = decomp(x+y)
    y = circ_conv3(x2, conv1_w_ref, relu=True)      # (L, 4D)
    y = circ_conv3(y, conv2_w_ref, relu=False)      # (L, D)
    x3, trend3 = decomp(x2 + y)

    x_out_ref[...] = x3.astype(x_out_ref.dtype)

    # trend = t1(trend1) + t2(trend2) + t3(trend3) + t4(trend)  (biases pre-summed)
    tr_in = trend_in_ref[...].astype(f32)           # (L, c_in)
    trend_out = (mm(trend1.astype(bf16), t1_w_ref[...])
                 + mm(trend2.astype(bf16), t2_w_ref[...])
                 + mm(trend3.astype(bf16), t3_w_ref[...])
                 + mm(tr_in.astype(bf16), t4_w_ref[...])
                 + t_b_ref[...])
    trend_out_ref[...] = trend_out.astype(trend_out_ref.dtype)


# ----------------------------- host-side helpers -----------------------------

def _moving_avg_matrix(L, kernel_size):
    """(L, L) operator: trend = A @ x == Autoformer moving_avg with edge replication."""
    assert kernel_size % 2 == 1, "use an odd moving-average window"
    pad = (kernel_size - 1) // 2
    counts = np.zeros((L, L), np.float32)
    for i in range(L):
        for s in range(-pad, pad + 1):
            counts[i, min(max(i + s, 0), L - 1)] += 1.0
    return jnp.asarray(counts / float(kernel_size))


def _pack_attn(p, wdtype):
    wqkv = jnp.concatenate([p["wq"], p["wk"], p["wv"]], axis=1).astype(wdtype)  # (D,3D)
    bqkv = jnp.concatenate([p["bq"], p["bk"], p["bv"]]).reshape(1, -1)          # (1,3D) f32
    return wqkv, bqkv, p["wo"].astype(wdtype), p["bo"].reshape(1, -1)


def decoder_layer_forward(params, x, cross, trend, *, window_size, n_heads=4):
    B, L, D = x.shape
    C = trend.shape[-1]
    bf16 = jnp.bfloat16

    ma = _moving_avg_matrix(L, window_size)

    sa_wqkv, sa_bqkv, sa_wo, sa_bo = _pack_attn(params["self_attn"], bf16)
    ca_wqkv, ca_bqkv, ca_wo, ca_bo = _pack_attn(params["cross_attn"], bf16)
    conv1_w = params["conv1_w"].astype(bf16)
    conv2_w = params["conv2_w"].astype(bf16)
    t1_w = params["t1_w"].astype(bf16)
    t2_w = params["t2_w"].astype(bf16)
    t3_w = params["t3_w"].astype(bf16)
    t4_w = params["t4_w"].astype(bf16)
    t_b = (params["t1_b"] + params["t2_b"]
           + params["t3_b"] + params["t4_b"]).reshape(1, C)
    ln_g = params["ln_g"].reshape(1, D)
    ln_b = params["ln_b"].reshape(1, D)

    kernel = functools.partial(_decoder_layer_kernel,
                               n_heads=n_heads,
                               scale=1.0 / math.sqrt(D))   # norm_fact = 1/sqrt(d_model)

    def per_b(rows, cols):
        return pl.BlockSpec((None, rows, cols), lambda b: (b, 0, 0))

    def full2(shape):
        return pl.BlockSpec(shape, lambda b: (0, 0))

    def full3(shape):
        return pl.BlockSpec(shape, lambda b: (0, 0, 0))

    x_out, trend_out = pl.pallas_call(
        kernel,
        out_shape=(jax.ShapeDtypeStruct((B, L, D), x.dtype),
                   jax.ShapeDtypeStruct((B, L, C), x.dtype)),
        grid=(B,),
        in_specs=[
            per_b(L, D),                 # x
            per_b(L, D),                 # cross
            per_b(L, C),                 # trend (input)
            full2((L, L)),               # moving-average operator
            full2((1, D)), full2((1, D)),                                        # layernorm
            full2((D, 3 * D)), full2((1, 3 * D)), full2((D, D)), full2((1, D)),  # self-attn
            full2((D, 3 * D)), full2((1, 3 * D)), full2((D, D)), full2((1, D)),  # cross-attn
            full3((3, D, 4 * D)), full3((3, 4 * D, D)),                          # conv1/conv2
            full2((D, C)), full2((D, C)), full2((D, C)), full2((C, C)), full2((1, C)),
        ],
        out_specs=(per_b(L, D), per_b(L, C)),
        scratch_shapes=[pltpu.VMEM((L, D), jnp.float32)],
        compiler_params=pltpu.CompilerParams(dimension_semantics=("parallel",)),
    )(x, cross, trend, ma,
      ln_g, ln_b,
      sa_wqkv, sa_bqkv, sa_wo, sa_bo,
      ca_wqkv, ca_bqkv, ca_wo, ca_bo,
      conv1_w, conv2_w,
      t1_w, t2_w, t3_w, t4_w, t_b)
    return x_out, trend_out


def init_params(key, c_in, d_model):
    ks = iter(jax.random.split(key, 24))

    def w(din, dout):
        return jax.random.normal(next(ks), (din, dout), jnp.float32) * 0.02

    def attn_params():
        return {"wq": w(d_model, d_model), "bq": jnp.zeros((d_model,), jnp.float32),
                "wk": w(d_model, d_model), "bk": jnp.zeros((d_model,), jnp.float32),
                "wv": w(d_model, d_model), "bv": jnp.zeros((d_model,), jnp.float32),
                "wo": w(d_model, d_model), "bo": jnp.zeros((d_model,), jnp.float32)}

    return {
        "ln_g": jnp.ones((d_model,), jnp.float32),
        "ln_b": jnp.zeros((d_model,), jnp.float32),
        "self_attn": attn_params(),
        "cross_attn": attn_params(),
        # conv weights stored as (K=3, C_in, C_out) — transpose of torch's (C_out, C_in, K)
        "conv1_w": jax.random.normal(next(ks), (3, d_model, 4 * d_model), jnp.float32) * 0.02,
        "conv2_w": jax.random.normal(next(ks), (3, 4 * d_model, d_model), jnp.float32) * 0.02,
        "t1_w": w(d_model, c_in), "t1_b": jnp.zeros((c_in,), jnp.float32),
        "t2_w": w(d_model, c_in), "t2_b": jnp.zeros((c_in,), jnp.float32),
        "t3_w": w(d_model, c_in), "t3_b": jnp.zeros((c_in,), jnp.float32),
        "t4_w": w(c_in, c_in),    "t4_b": jnp.zeros((c_in,), jnp.float32),
    }


# --------------------- pure-JAX f32 reference (for self-check) ---------------------

def _reference_decoder_layer(params, x, cross, trend, *, window_size, n_heads=4):
    D = x.shape[-1]
    dh = D // n_heads
    scale = 1.0 / math.sqrt(D)
    pad = (window_size - 1) // 2

    def layernorm(v):
        mu = jnp.mean(v, -1, keepdims=True)
        var = jnp.mean((v - mu) ** 2, -1, keepdims=True)
        return (v - mu) * jax.lax.rsqrt(var + 1e-5) * params["ln_g"] + params["ln_b"]

    def mha(q_src, kv_src, p):
        q = q_src @ p["wq"] + p["bq"]
        k = kv_src @ p["wk"] + p["bk"]
        v = kv_src @ p["wv"] + p["bv"]
        outs = []
        for h in range(n_heads):
            qh, kh, vh = (a[:, h * dh:(h + 1) * dh] for a in (q, k, v))
            att = jax.nn.softmax((qh @ kh.T) * scale, axis=-1)
            outs.append(att @ vh)
        return jnp.concatenate(outs, axis=-1) @ p["wo"] + p["bo"]

    def decomp(v):
        vp = jnp.concatenate([jnp.repeat(v[:1], pad, 0), v,
                              jnp.repeat(v[-1:], pad, 0)], axis=0)
        tr = jnp.stack([jnp.mean(vp[i:i + window_size], axis=0)
                        for i in range(v.shape[0])], axis=0)
        return v - tr, tr

    def circ_conv(v, w):                             # w: (3, C_in, C_out)
        v_prev = jnp.concatenate([v[-1:], v[:-1]], axis=0)
        v_next = jnp.concatenate([v[1:], v[:1]], axis=0)
        return v_prev @ w[0] + v @ w[1] + v_next @ w[2]

    def single(xb, cb, tb):
        xn = layernorm(xb)
        x1, tr1 = decomp(xn + mha(xn, xn, params["self_attn"]))
        x2, tr2 = decomp(x1 + mha(x1, cb, params["cross_attn"]))
        y = jnp.maximum(circ_conv(x2, params["conv1_w"]), 0.0)
        y = circ_conv(y, params["conv2_w"])
        x3, tr3 = decomp(x2 + y)
        trend_out = (tr1 @ params["t1_w"] + params["t1_b"]
                     + tr2 @ params["t2_w"] + params["t2_b"]
                     + tr3 @ params["t3_w"] + params["t3_b"]
                     + tb @ params["t4_w"] + params["t4_b"])
        return x3, trend_out

    return jax.vmap(single)(x, cross, trend)


if __name__ == "__main__":
    B, L, d_model, c_in = 2, 16, 32, 4
    window_size = 25                                 # module default (24 + 1)

    key = jax.random.PRNGKey(0)
    kx, kc, kt, kp = jax.random.split(key, 4)
    x = jax.random.normal(kx, (B, L, d_model), jnp.float32)
    cross = jax.random.normal(kc, (B, L, d_model), jnp.float32)
    trend = jax.random.normal(kt, (B, L, c_in), jnp.float32)
    params = init_params(kp, c_in, d_model)

    fwd = jax.jit(functools.partial(decoder_layer_forward, window_size=window_size))
    x_out, trend_out = fwd(params, x, cross, trend)
    jax.block_until_ready((x_out, trend_out))

    assert x_out.shape == (B, L, d_model)
    assert trend_out.shape == (B, L, c_in)
    assert bool(jnp.all(jnp.isfinite(x_out))) and bool(jnp.all(jnp.isfinite(trend_out)))

    # correctness self-check vs a pure-JAX f32 reference (kernel feeds bf16 to the
    # MXU with f32 accumulation, so tolerance is loose but far below structural errors)
    x_ref, trend_ref = _reference_decoder_layer(params, x, cross, trend,
                                                window_size=window_size)
    err_x = float(jnp.max(jnp.abs(x_out - x_ref)))
    err_t = float(jnp.max(jnp.abs(trend_out - trend_ref)))
    assert err_x < 3e-2 and err_t < 3e-2, (err_x, err_t)
    print("KERNEL_OK")
</pallas_src>

<mosaic_0001>
module attributes {stable_mosaic.version = 11 : i64} {
  func.func @_decoder_layer_kernel(%arg0: i32, %arg1: memref<1x16x32xf32, #tpu.memory_space<vmem>>, %arg2: memref<1x16x32xf32, #tpu.memory_space<vmem>>, %arg3: memref<1x16x4xf32, #tpu.memory_space<vmem>>, %arg4: memref<16x16xf32, #tpu.memory_space<vmem>>, %arg5: memref<1x32xf32, #tpu.memory_space<vmem>>, %arg6: memref<1x32xf32, #tpu.memory_space<vmem>>, %arg7: memref<32x96xbf16, #tpu.memory_space<vmem>>, %arg8: memref<1x96xf32, #tpu.memory_space<vmem>>, %arg9: memref<32x32xbf16, #tpu.memory_space<vmem>>, %arg10: memref<1x32xf32, #tpu.memory_space<vmem>>, %arg11: memref<32x96xbf16, #tpu.memory_space<vmem>>, %arg12: memref<1x96xf32, #tpu.memory_space<vmem>>, %arg13: memref<32x32xbf16, #tpu.memory_space<vmem>>, %arg14: memref<1x32xf32, #tpu.memory_space<vmem>>, %arg15: memref<3x32x128xbf16, #tpu.memory_space<vmem>>, %arg16: memref<3x128x32xbf16, #tpu.memory_space<vmem>>, %arg17: memref<32x4xbf16, #tpu.memory_space<vmem>>, %arg18: memref<32x4xbf16, #tpu.memory_space<vmem>>, %arg19: memref<32x4xbf16, #tpu.memory_space<vmem>>, %arg20: memref<4x4xbf16, #tpu.memory_space<vmem>>, %arg21: memref<1x4xf32, #tpu.memory_space<vmem>>, %arg22: memref<1x16x32xf32, #tpu.memory_space<vmem>>, %arg23: memref<1x16x4xf32, #tpu.memory_space<vmem>>, %arg24: memref<16x32xf32, #tpu.memory_space<vmem>>) attributes {dimension_semantics = [#tpu.dimension_semantics<parallel>], iteration_bounds = array<i64: 2>, scalar_prefetch = 0 : i64, scratch_operands = 1 : i64, tpu.core_type = #tpu.core_type<tc>, window_params = [{transform_indices = @transform_0, window_bounds = array<i64: 1, 16, 32>}, {transform_indices = @transform_1, window_bounds = array<i64: 1, 16, 32>}, {transform_indices = @transform_2, window_bounds = array<i64: 1, 16, 4>}, {pipeline_mode = #tpu.pipeline_mode<synchronous>, transform_indices = @transform_3, window_bounds = array<i64: 16, 16>}, {pipeline_mode = #tpu.pipeline_mode<synchronous>, transform_indices = @transform_4, window_bounds = array<i64: 1, 32>}, {pipeline_mode = #tpu.pipeline_mode<synchronous>, transform_indices = @transform_5, window_bounds = array<i64: 1, 32>}, {pipeline_mode = #tpu.pipeline_mode<synchronous>, transform_indices = @transform_6, window_bounds = array<i64: 32, 96>}, {pipeline_mode = #tpu.pipeline_mode<synchronous>, transform_indices = @transform_7, window_bounds = array<i64: 1, 96>}, {pipeline_mode = #tpu.pipeline_mode<synchronous>, transform_indices = @transform_8, window_bounds = array<i64: 32, 32>}, {pipeline_mode = #tpu.pipeline_mode<synchronous>, transform_indices = @transform_9, window_bounds = array<i64: 1, 32>}, {pipeline_mode = #tpu.pipeline_mode<synchronous>, transform_indices = @transform_10, window_bounds = array<i64: 32, 96>}, {pipeline_mode = #tpu.pipeline_mode<synchronous>, transform_indices = @transform_11, window_bounds = array<i64: 1, 96>}, {pipeline_mode = #tpu.pipeline_mode<synchronous>, transform_indices = @transform_12, window_bounds = array<i64: 32, 32>}, {pipeline_mode = #tpu.pipeline_mode<synchronous>, transform_indices = @transform_13, window_bounds = array<i64: 1, 32>}, {pipeline_mode = #tpu.pipeline_mode<synchronous>, transform_indices = @transform_14, window_bounds = array<i64: 3, 32, 128>}, {pipeline_mode = #tpu.pipeline_mode<synchronous>, transform_indices = @transform_15, window_bounds = array<i64: 3, 128, 32>}, {pipeline_mode = #tpu.pipeline_mode<synchronous>, transform_indices = @transform_16, window_bounds = array<i64: 32, 4>}, {pipeline_mode = #tpu.pipeline_mode<synchronous>, transform_indices = @transform_17, window_bounds = array<i64: 32, 4>}, {pipeline_mode = #tpu.pipeline_mode<synchronous>, transform_indices = @transform_18, window_bounds = array<i64: 32, 4>}, {pipeline_mode = #tpu.pipeline_mode<synchronous>, transform_indices = @transform_19, window_bounds = array<i64: 4, 4>}, {pipeline_mode = #tpu.pipeline_mode<synchronous>, transform_indices = @transform_20, window_bounds = array<i64: 1, 4>}, {transform_indices = @transform_21, window_bounds = array<i64: 1, 16, 32>}, {transform_indices = @transform_22, window_bounds = array<i64: 1, 16, 4>}]} {
    %c0 = arith.constant 0 : index
    %c0_0 = arith.constant 0 : index
    %c0_1 = arith.constant 0 : index
    %0 = vector.load %arg1[%c0, %c0_0, %c0_1] : memref<1x16x32xf32, #tpu.memory_space<vmem>>, vector<1x16x32xf32>
    %1 = vector.shape_cast %0 : vector<1x16x32xf32> to vector<16x32xf32>
    %cst = arith.constant dense<0.000000e+00> : vector<16xf32>
    %2 = vector.multi_reduction <add>, %1, %cst [1] : vector<16x32xf32> to vector<16xf32>
    %3 = vector.shape_cast %2 : vector<16xf32> to vector<16x1xf32>
    %cst_2 = arith.constant 3.200000e+01 : f32
    %4 = vector.broadcast %cst_2 : f32 to vector<16x1xf32>
    %5 = arith.divf %3, %4 : vector<16x1xf32>
    %6 = vector.broadcast %5 : vector<16x1xf32> to vector<16x32xf32>
    %7 = arith.subf %1, %6 : vector<16x32xf32>
    %8 = arith.mulf %7, %7 : vector<16x32xf32>
    %cst_3 = arith.constant dense<0.000000e+00> : vector<16xf32>
    %9 = vector.multi_reduction <add>, %8, %cst_3 [1] : vector<16x32xf32> to vector<16xf32>
    %10 = vector.shape_cast %9 : vector<16xf32> to vector<16x1xf32>
    %cst_4 = arith.constant 3.200000e+01 : f32
    %11 = vector.broadcast %cst_4 : f32 to vector<16x1xf32>
    %12 = arith.divf %10, %11 : vector<16x1xf32>
    %13 = vector.broadcast %5 : vector<16x1xf32> to vector<16x32xf32>
    %14 = arith.subf %1, %13 : vector<16x32xf32>
    %cst_5 = arith.constant 9.99999974E-6 : f32
    %15 = vector.broadcast %cst_5 : f32 to vector<16x1xf32>
    %16 = arith.addf %12, %15 : vector<16x1xf32>
    %17 = math.rsqrt %16 : vector<16x1xf32>
    %18 = vector.broadcast %17 : vector<16x1xf32> to vector<16x32xf32>
    %19 = arith.mulf %14, %18 : vector<16x32xf32>
    %c0_6 = arith.constant 0 : index
    %c0_7 = arith.constant 0 : index
    %20 = vector.load %arg5[%c0_6, %c0_7] : memref<1x32xf32, #tpu.memory_space<vmem>>, vector<1x32xf32>
    %21 = vector.broadcast %20 : vector<1x32xf32> to vector<16x32xf32>
    %22 = arith.mulf %19, %21 : vector<16x32xf32>
    %c0_8 = arith.constant 0 : index
    %c0_9 = arith.constant 0 : index
    %23 = vector.load %arg6[%c0_8, %c0_9] : memref<1x32xf32, #tpu.memory_space<vmem>>, vector<1x32xf32>
    %24 = vector.broadcast %23 : vector<1x32xf32> to vector<16x32xf32>
    %25 = arith.addf %22, %24 : vector<16x32xf32>
    %c0_10 = arith.constant 0 : index
    %c0_11 = arith.constant 0 : index
    %26 = vector.load %arg4[%c0_10, %c0_11] : memref<16x16xf32, #tpu.memory_space<vmem>>, vector<16x16xf32>
    %c0_12 = arith.constant 0 : index
    %c0_13 = arith.constant 0 : index
    %27 = vector.load %arg7[%c0_12, %c0_13] : memref<32x96xbf16, #tpu.memory_space<vmem>>, vector<32x96xbf16>
    %c0_14 = arith.constant 0 : index
    %c0_15 = arith.constant 0 : index
    %28 = vector.load %arg8[%c0_14, %c0_15] : memref<1x96xf32, #tpu.memory_space<vmem>>, vector<1x96xf32>
    %29 = arith.truncf %25 : vector<16x32xf32> to vector<16x32xbf16>
    %cst_16 = arith.constant dense<0.000000e+00> : vector<16x96xf32>
    %30 = tpu.matmul %29, %27, %cst_16 {dimension_numbers = #tpu.dot_dimension_numbers<[1], [0], [0], [1], [0, 0, 1, 1], [], []>} : vector<16x32xbf16>, vector<32x96xbf16>, vector<16x96xf32> -> vector<16x96xf32>
    %31 = vector.broadcast %28 : vector<1x96xf32> to vector<16x96xf32>
    %32 = arith.addf %30, %31 : vector<16x96xf32>
    %33 = vector.extract_strided_slice %32 {offsets = [0, 0], sizes = [16, 8], strides = [1, 1]} : vector<16x96xf32> to vector<16x8xf32>
    %34 = vector.extract_strided_slice %32 {offsets = [0, 32], sizes = [16, 8], strides = [1, 1]} : vector<16x96xf32> to vector<16x8xf32>
    %35 = vector.extract_strided_slice %32 {offsets = [0, 64], sizes = [16, 8], strides = [1, 1]} : vector<16x96xf32> to vector<16x8xf32>
    %36 = arith.truncf %33 : vector<16x8xf32> to vector<16x8xbf16>
    %37 = arith.truncf %34 : vector<16x8xf32> to vector<16x8xbf16>
    %cst_17 = arith.constant dense<0.000000e+00> : vector<16x16xf32>
    %38 = tpu.matmul %36, %37, %cst_17 {dimension_numbers = #tpu.dot_dimension_numbers<[1], [1], [0], [0], [0, 0, 1, 0], [], []>} : vector<16x8xbf16>, vector<16x8xbf16>, vector<16x16xf32> -> vector<16x16xf32>
    %cst_18 = arith.constant 0.176776692 : f32
    %39 = vector.broadcast %cst_18 : f32 to vector<16x16xf32>
    %40 = arith.mulf %38, %39 : vector<16x16xf32>
    %cst_19 = arith.constant dense<0xFF800000> : vector<16xf32>
    %41 = vector.multi_reduction <maximumf>, %40, %cst_19 [1] : vector<16x16xf32> to vector<16xf32>
    %42 = vector.shape_cast %41 : vector<16xf32> to vector<16x1xf32>
    %43 = vector.broadcast %42 : vector<16x1xf32> to vector<16x16xf32>
    %44 = arith.subf %40, %43 : vector<16x16xf32>
    %45 = math.exp %44 : vector<16x16xf32>
    %cst_20 = arith.constant dense<0.000000e+00> : vector<16xf32>
    %46 = vector.multi_reduction <add>, %45, %cst_20 [1] : vector<16x16xf32> to vector<16xf32>
    %47 = vector.shape_cast %46 : vector<16xf32> to vector<16x1xf32>
    %48 = tpu.reciprocal %47 {approx = true} : vector<16x1xf32> -> vector<16x1xf32>
    %49 = vector.broadcast %48 : vector<16x1xf32> to vector<16x16xf32>
    %50 = arith.mulf %45, %49 : vector<16x16xf32>
    %51 = arith.truncf %50 : vector<16x16xf32> to vector<16x16xbf16>
    %52 = arith.truncf %35 : vector<16x8xf32> to vector<16x8xbf16>
    %cst_21 = arith.constant dense<0.000000e+00> : vector<16x8xf32>
    %53 = tpu.matmul %51, %52, %cst_21 {dimension_numbers = #tpu.dot_dimension_numbers<[1], [0], [0], [1], [0, 0, 1, 1], [], []>} : vector<16x16xbf16>, vector<16x8xbf16>, vector<16x8xf32> -> vector<16x8xf32>
    %c0_22 = arith.constant 0 : index
    %c0_23 = arith.constant 0 : index
    %54 = vector.load %arg24[%c0_22, %c0_23] : memref<16x32xf32, #tpu.memory_space<vmem>>, vector<16x8xf32>
    tpu.vector_store %arg24[%c0_22, %c0_23], %53 {strides = array<i32>} : memref<16x32xf32, #tpu.memory_space<vmem>>, vector<16x8xf32>,
    %55 = vector.extract_strided_slice %32 {offsets = [0, 8], sizes = [16, 8], strides = [1, 1]} : vector<16x96xf32> to vector<16x8xf32>
    %56 = vector.extract_strided_slice %32 {offsets = [0, 40], sizes = [16, 8], strides = [1, 1]} : vector<16x96xf32> to vector<16x8xf32>
    %57 = vector.extract_strided_slice %32 {offsets = [0, 72], sizes = [16, 8], strides = [1, 1]} : vector<16x96xf32> to vector<16x8xf32>
    %58 = arith.truncf %55 : vector<16x8xf32> to vector<16x8xbf16>
    %59 = arith.truncf %56 : vector<16x8xf32> to vector<16x8xbf16>
    %cst_24 = arith.constant dense<0.000000e+00> : vector<16x16xf32>
    %60 = tpu.matmul %58, %59, %cst_24 {dimension_numbers = #tpu.dot_dimension_numbers<[1], [1], [0], [0], [0, 0, 1, 0], [], []>} : vector<16x8xbf16>, vector<16x8xbf16>, vector<16x16xf32> -> vector<16x16xf32>
    %cst_25 = arith.constant 0.176776692 : f32
    %61 = vector.broadcast %cst_25 : f32 to vector<16x16xf32>
    %62 = arith.mulf %60, %61 : vector<16x16xf32>
    %cst_26 = arith.constant dense<0xFF800000> : vector<16xf32>
    %63 = vector.multi_reduction <maximumf>, %62, %cst_26 [1] : vector<16x16xf32> to vector<16xf32>
    %64 = vector.shape_cast %63 : vector<16xf32> to vector<16x1xf32>
    %65 = vector.broadcast %64 : vector<16x1xf32> to vector<16x16xf32>
    %66 = arith.subf %62, %65 : vector<16x16xf32>
    %67 = math.exp %66 : vector<16x16xf32>
    %cst_27 = arith.constant dense<0.000000e+00> : vector<16xf32>
    %68 = vector.multi_reduction <add>, %67, %cst_27 [1] : vector<16x16xf32> to vector<16xf32>
    %69 = vector.shape_cast %68 : vector<16xf32> to vector<16x1xf32>
    %70 = tpu.reciprocal %69 {approx = true} : vector<16x1xf32> -> vector<16x1xf32>
    %71 = vector.broadcast %70 : vector<16x1xf32> to vector<16x16xf32>
    %72 = arith.mulf %67, %71 : vector<16x16xf32>
    %73 = arith.truncf %72 : vector<16x16xf32> to vector<16x16xbf16>
    %74 = arith.truncf %57 : vector<16x8xf32> to vector<16x8xbf16>
    %cst_28 = arith.constant dense<0.000000e+00> : vector<16x8xf32>
    %75 = tpu.matmul %73, %74, %cst_28 {dimension_numbers = #tpu.dot_dimension_numbers<[1], [0], [0], [1], [0, 0, 1, 1], [], []>} : vector<16x16xbf16>, vector<16x8xbf16>, vector<16x8xf32> -> vector<16x8xf32>
    %c0_29 = arith.constant 0 : index
    %c8 = arith.constant 8 : index
    %76 = vector.load %arg24[%c0_29, %c8] : memref<16x32xf32, #tpu.memory_space<vmem>>, vector<16x8xf32>
    tpu.vector_store %arg24[%c0_29, %c8], %75 {strides = array<i32>} : memref<16x32xf32, #tpu.memory_space<vmem>>, vector<16x8xf32>,
    %77 = vector.extract_strided_slice %32 {offsets = [0, 16], sizes = [16, 8], strides = [1, 1]} : vector<16x96xf32> to vector<16x8xf32>
    %78 = vector.extract_strided_slice %32 {offsets = [0, 48], sizes = [16, 8], strides = [1, 1]} : vector<16x96xf32> to vector<16x8xf32>
    %79 = vector.extract_strided_slice %32 {offsets = [0, 80], sizes = [16, 8], strides = [1, 1]} : vector<16x96xf32> to vector<16x8xf32>
    %80 = arith.truncf %77 : vector<16x8xf32> to vector<16x8xbf16>
    %81 = arith.truncf %78 : vector<16x8xf32> to vector<16x8xbf16>
    %cst_30 = arith.constant dense<0.000000e+00> : vector<16x16xf32>
    %82 = tpu.matmul %80, %81, %cst_30 {dimension_numbers = #tpu.dot_dimension_numbers<[1], [1], [0], [0], [0, 0, 1, 0], [], []>} : vector<16x8xbf16>, vector<16x8xbf16>, vector<16x16xf32> -> vector<16x16xf32>
    %cst_31 = arith.constant 0.176776692 : f32
    %83 = vector.broadcast %cst_31 : f32 to vector<16x16xf32>
    %84 = arith.mulf %82, %83 : vector<16x16xf32>
    %cst_32 = arith.constant dense<0xFF800000> : vector<16xf32>
    %85 = vector.multi_reduction <maximumf>, %84, %cst_32 [1] : vector<16x16xf32> to vector<16xf32>
    %86 = vector.shape_cast %85 : vector<16xf32> to vector<16x1xf32>
    %87 = vector.broadcast %86 : vector<16x1xf32> to vector<16x16xf32>
    %88 = arith.subf %84, %87 : vector<16x16xf32>
    %89 = math.exp %88 : vector<16x16xf32>
    %cst_33 = arith.constant dense<0.000000e+00> : vector<16xf32>
    %90 = vector.multi_reduction <add>, %89, %cst_33 [1] : vector<16x16xf32> to vector<16xf32>
    %91 = vector.shape_cast %90 : vector<16xf32> to vector<16x1xf32>
    %92 = tpu.reciprocal %91 {approx = true} : vector<16x1xf32> -> vector<16x1xf32>
    %93 = vector.broadcast %92 : vector<16x1xf32> to vector<16x16xf32>
    %94 = arith.mulf %89, %93 : vector<16x16xf32>
    %95 = arith.truncf %94 : vector<16x16xf32> to vector<16x16xbf16>
    %96 = arith.truncf %79 : vector<16x8xf32> to vector<16x8xbf16>
    %cst_34 = arith.constant dense<0.000000e+00> : vector<16x8xf32>
    %97 = tpu.matmul %95, %96, %cst_34 {dimension_numbers = #tpu.dot_dimension_numbers<[1], [0], [0], [1], [0, 0, 1, 1], [], []>} : vector<16x16xbf16>, vector<16x8xbf16>, vector<16x8xf32> -> vector<16x8xf32>
    %c0_35 = arith.constant 0 : index
    %c16 = arith.constant 16 : index
    %98 = vector.load %arg24[%c0_35, %c16] : memref<16x32xf32, #tpu.memory_space<vmem>>, vector<16x8xf32>
    tpu.vector_store %arg24[%c0_35, %c16], %97 {strides = array<i32>} : memref<16x32xf32, #tpu.memory_space<vmem>>, vector<16x8xf32>,
    %99 = vector.extract_strided_slice %32 {offsets = [0, 24], sizes = [16, 8], strides = [1, 1]} : vector<16x96xf32> to vector<16x8xf32>
    %100 = vector.extract_strided_slice %32 {offsets = [0, 56], sizes = [16, 8], strides = [1, 1]} : vector<16x96xf32> to vector<16x8xf32>
    %101 = vector.extract_strided_slice %32 {offsets = [0, 88], sizes = [16, 8], strides = [1, 1]} : vector<16x96xf32> to vector<16x8xf32>
    %102 = arith.truncf %99 : vector<16x8xf32> to vector<16x8xbf16>
    %103 = arith.truncf %100 : vector<16x8xf32> to vector<16x8xbf16>
    %cst_36 = arith.constant dense<0.000000e+00> : vector<16x16xf32>
    %104 = tpu.matmul %102, %103, %cst_36 {dimension_numbers = #tpu.dot_dimension_numbers<[1], [1], [0], [0], [0, 0, 1, 0], [], []>} : vector<16x8xbf16>, vector<16x8xbf16>, vector<16x16xf32> -> vector<16x16xf32>
    %cst_37 = arith.constant 0.176776692 : f32
    %105 = vector.broadcast %cst_37 : f32 to vector<16x16xf32>
    %106 = arith.mulf %104, %105 : vector<16x16xf32>
    %cst_38 = arith.constant dense<0xFF800000> : vector<16xf32>
    %107 = vector.multi_reduction <maximumf>, %106, %cst_38 [1] : vector<16x16xf32> to vector<16xf32>
    %108 = vector.shape_cast %107 : vector<16xf32> to vector<16x1xf32>
    %109 = vector.broadcast %108 : vector<16x1xf32> to vector<16x16xf32>
    %110 = arith.subf %106, %109 : vector<16x16xf32>
    %111 = math.exp %110 : vector<16x16xf32>
    %cst_39 = arith.constant dense<0.000000e+00> : vector<16xf32>
    %112 = vector.multi_reduction <add>, %111, %cst_39 [1] : vector<16x16xf32> to vector<16xf32>
    %113 = vector.shape_cast %112 : vector<16xf32> to vector<16x1xf32>
    %114 = tpu.reciprocal %113 {approx = true} : vector<16x1xf32> -> vector<16x1xf32>
    %115 = vector.broadcast %114 : vector<16x1xf32> to vector<16x16xf32>
    %116 = arith.mulf %111, %115 : vector<16x16xf32>
    %117 = arith.truncf %116 : vector<16x16xf32> to vector<16x16xbf16>
    %118 = arith.truncf %101 : vector<16x8xf32> to vector<16x8xbf16>
    %cst_40 = arith.constant dense<0.000000e+00> : vector<16x8xf32>
    %119 = tpu.matmul %117, %118, %cst_40 {dimension_numbers = #tpu.dot_dimension_numbers<[1], [0], [0], [1], [0, 0, 1, 1], [], []>} : vector<16x16xbf16>, vector<16x8xbf16>, vector<16x8xf32> -> vector<16x8xf32>
    %c0_41 = arith.constant 0 : index
    %c24 = arith.constant 24 : index
    %120 = vector.load %arg24[%c0_41, %c24] : memref<16x32xf32, #tpu.memory_space<vmem>>, vector<16x8xf32>
    tpu.vector_store %arg24[%c0_41, %c24], %119 {strides = array<i32>} : memref<16x32xf32, #tpu.memory_space<vmem>>, vector<16x8xf32>,
    %c0_42 = arith.constant 0 : index
    %c0_43 = arith.constant 0 : index
    %121 = vector.load %arg24[%c0_42, %c0_43] : memref<16x32xf32, #tpu.memory_space<vmem>>, vector<16x32xf32>
    %122 = arith.truncf %121 : vector<16x32xf32> to vector<16x32xbf16>
    %c0_44 = arith.constant 0 : index
    %c0_45 = arith.constant 0 : index
    %123 = vector.load %arg9[%c0_44, %c0_45] : memref<32x32xbf16, #tpu.memory_space<vmem>>, vector<32x32xbf16>
    %cst_46 = arith.constant dense<0.000000e+00> : vector<16x32xf32>
    %124 = tpu.matmul %122, %123, %cst_46 {dimension_numbers = #tpu.dot_dimension_numbers<[1], [0], [0], [1], [0, 0, 1, 1], [], []>} : vector<16x32xbf16>, vector<32x32xbf16>, vector<16x32xf32> -> vector<16x32xf32>
    %c0_47 = arith.constant 0 : index
    %c0_48 = arith.constant 0 : index
    %125 = vector.load %arg10[%c0_47, %c0_48] : memref<1x32xf32, #tpu.memory_space<vmem>>, vector<1x32xf32>
    %126 = vector.broadcast %125 : vector<1x32xf32> to vector<16x32xf32>
    %127 = arith.addf %124, %126 : vector<16x32xf32>
    %128 = arith.addf %25, %127 : vector<16x32xf32>
    %cst_49 = arith.constant dense<0.000000e+00> : vector<16x32xf32>
    %129 = tpu.matmul %26, %128, %cst_49 {dimension_numbers = #tpu.dot_dimension_numbers<[1], [0], [0], [1], [0, 0, 1, 1], [], []>} : vector<16x16xf32>, vector<16x32xf32>, vector<16x32xf32> -> vector<16x32xf32>
    %130 = arith.subf %128, %129 : vector<16x32xf32>
    %c0_50 = arith.constant 0 : index
    %c0_51 = arith.constant 0 : index
    %c0_52 = arith.constant 0 : index
    %131 = vector.load %arg2[%c0_50, %c0_51, %c0_52] : memref<1x16x32xf32, #tpu.memory_space<vmem>>, vector<1x16x32xf32>
    %132 = vector.shape_cast %131 : vector<1x16x32xf32> to vector<16x32xf32>
    %c0_53 = arith.constant 0 : index
    %c0_54 = arith.constant 0 : index
    %133 = vector.load %arg11[%c0_53, %c0_54] : memref<32x96xbf16, #tpu.memory_space<vmem>>, vector<32x96xbf16>
    %c0_55 = arith.constant 0 : index
    %c0_56 = arith.constant 0 : index
    %134 = vector.load %arg12[%c0_55, %c0_56] : memref<1x96xf32, #tpu.memory_space<vmem>>, vector<1x96xf32>
    %135 = arith.truncf %130 : vector<16x32xf32> to vector<16x32xbf16>
    %cst_57 = arith.constant dense<0.000000e+00> : vector<16x96xf32>
    %136 = tpu.matmul %135, %133, %cst_57 {dimension_numbers = #tpu.dot_dimension_numbers<[1], [0], [0], [1], [0, 0, 1, 1], [], []>} : vector<16x32xbf16>, vector<32x96xbf16>, vector<16x96xf32> -> vector<16x96xf32>
    %137 = vector.broadcast %134 : vector<1x96xf32> to vector<16x96xf32>
    %138 = arith.addf %136, %137 : vector<16x96xf32>
    %139 = arith.truncf %132 : vector<16x32xf32> to vector<16x32xbf16>
    %cst_58 = arith.constant dense<0.000000e+00> : vector<16x96xf32>
    %140 = tpu.matmul %139, %133, %cst_58 {dimension_numbers = #tpu.dot_dimension_numbers<[1], [0], [0], [1], [0, 0, 1, 1], [], []>} : vector<16x32xbf16>, vector<32x96xbf16>, vector<16x96xf32> -> vector<16x96xf32>
    %141 = vector.broadcast %134 : vector<1x96xf32> to vector<16x96xf32>
    %142 = arith.addf %140, %141 : vector<16x96xf32>
    %143 = vector.extract_strided_slice %138 {offsets = [0, 0], sizes = [16, 8], strides = [1, 1]} : vector<16x96xf32> to vector<16x8xf32>
    %144 = vector.extract_strided_slice %142 {offsets = [0, 32], sizes = [16, 8], strides = [1, 1]} : vector<16x96xf32> to vector<16x8xf32>
    %145 = vector.extract_strided_slice %142 {offsets = [0, 64], sizes = [16, 8], strides = [1, 1]} : vector<16x96xf32> to vector<16x8xf32>
    %146 = arith.truncf %143 : vector<16x8xf32> to vector<16x8xbf16>
    %147 = arith.truncf %144 : vector<16x8xf32> to vector<16x8xbf16>
    %cst_59 = arith.constant dense<0.000000e+00> : vector<16x16xf32>
    %148 = tpu.matmul %146, %147, %cst_59 {dimension_numbers = #tpu.dot_dimension_numbers<[1], [1], [0], [0], [0, 0, 1, 0], [], []>} : vector<16x8xbf16>, vector<16x8xbf16>, vector<16x16xf32> -> vector<16x16xf32>
    %cst_60 = arith.constant 0.176776692 : f32
    %149 = vector.broadcast %cst_60 : f32 to vector<16x16xf32>
    %150 = arith.mulf %148, %149 : vector<16x16xf32>
    %cst_61 = arith.constant dense<0xFF800000> : vector<16xf32>
    %151 = vector.multi_reduction <maximumf>, %150, %cst_61 [1] : vector<16x16xf32> to vector<16xf32>
    %152 = vector.shape_cast %151 : vector<16xf32> to vector<16x1xf32>
    %153 = vector.broadcast %152 : vector<16x1xf32> to vector<16x16xf32>
    %154 = arith.subf %150, %153 : vector<16x16xf32>
    %155 = math.exp %154 : vector<16x16xf32>
    %cst_62 = arith.constant dense<0.000000e+00> : vector<16xf32>
    %156 = vector.multi_reduction <add>, %155, %cst_62 [1] : vector<16x16xf32> to vector<16xf32>
    %157 = vector.shape_cast %156 : vector<16xf32> to vector<16x1xf32>
    %158 = tpu.reciprocal %157 {approx = true} : vector<16x1xf32> -> vector<16x1xf32>
    %159 = vector.broadcast %158 : vector<16x1xf32> to vector<16x16xf32>
    %160 = arith.mulf %155, %159 : vector<16x16xf32>
    %161 = arith.truncf %160 : vector<16x16xf32> to vector<16x16xbf16>
    %162 = arith.truncf %145 : vector<16x8xf32> to vector<16x8xbf16>
    %cst_63 = arith.constant dense<0.000000e+00> : vector<16x8xf32>
    %163 = tpu.matmul %161, %162, %cst_63 {dimension_numbers = #tpu.dot_dimension_numbers<[1], [0], [0], [1], [0, 0, 1, 1], [], []>} : vector<16x16xbf16>, vector<16x8xbf16>, vector<16x8xf32> -> vector<16x8xf32>
    %c0_64 = arith.constant 0 : index
    %c0_65 = arith.constant 0 : index
    %164 = vector.load %arg24[%c0_64, %c0_65] : memref<16x32xf32, #tpu.memory_space<vmem>>, vector<16x8xf32>
    tpu.vector_store %arg24[%c0_64, %c0_65], %163 {strides = array<i32>} : memref<16x32xf32, #tpu.memory_space<vmem>>, vector<16x8xf32>,
    %165 = vector.extract_strided_slice %138 {offsets = [0, 8], sizes = [16, 8], strides = [1, 1]} : vector<16x96xf32> to vector<16x8xf32>
    %166 = vector.extract_strided_slice %142 {offsets = [0, 40], sizes = [16, 8], strides = [1, 1]} : vector<16x96xf32> to vector<16x8xf32>
    %167 = vector.extract_strided_slice %142 {offsets = [0, 72], sizes = [16, 8], strides = [1, 1]} : vector<16x96xf32> to vector<16x8xf32>
    %168 = arith.truncf %165 : vector<16x8xf32> to vector<16x8xbf16>
    %169 = arith.truncf %166 : vector<16x8xf32> to vector<16x8xbf16>
    %cst_66 = arith.constant dense<0.000000e+00> : vector<16x16xf32>
    %170 = tpu.matmul %168, %169, %cst_66 {dimension_numbers = #tpu.dot_dimension_numbers<[1], [1], [0], [0], [0, 0, 1, 0], [], []>} : vector<16x8xbf16>, vector<16x8xbf16>, vector<16x16xf32> -> vector<16x16xf32>
    %cst_67 = arith.constant 0.176776692 : f32
    %171 = vector.broadcast %cst_67 : f32 to vector<16x16xf32>
    %172 = arith.mulf %170, %171 : vector<16x16xf32>
    %cst_68 = arith.constant dense<0xFF800000> : vector<16xf32>
    %173 = vector.multi_reduction <maximumf>, %172, %cst_68 [1] : vector<16x16xf32> to vector<16xf32>
    %174 = vector.shape_cast %173 : vector<16xf32> to vector<16x1xf32>
    %175 = vector.broadcast %174 : vector<16x1xf32> to vector<16x16xf32>
    %176 = arith.subf %172, %175 : vector<16x16xf32>
    %177 = math.exp %176 : vector<16x16xf32>
    %cst_69 = arith.constant dense<0.000000e+00> : vector<16xf32>
    %178 = vector.multi_reduction <add>, %177, %cst_69 [1] : vector<16x16xf32> to vector<16xf32>
    %179 = vector.shape_cast %178 : vector<16xf32> to vector<16x1xf32>
    %180 = tpu.reciprocal %179 {approx = true} : vector<16x1xf32> -> vector<16x1xf32>
    %181 = vector.broadcast %180 : vector<16x1xf32> to vector<16x16xf32>
    %182 = arith.mulf %177, %181 : vector<16x16xf32>
    %183 = arith.truncf %182 : vector<16x16xf32> to vector<16x16xbf16>
    %184 = arith.truncf %167 : vector<16x8xf32> to vector<16x8xbf16>
    %cst_70 = arith.constant dense<0.000000e+00> : vector<16x8xf32>
    %185 = tpu.matmul %183, %184, %cst_70 {dimension_numbers = #tpu.dot_dimension_numbers<[1], [0], [0], [1], [0, 0, 1, 1], [], []>} : vector<16x16xbf16>, vector<16x8xbf16>, vector<16x8xf32> -> vector<16x8xf32>
    %c0_71 = arith.constant 0 : index
    %c8_72 = arith.constant 8 : index
    %186 = vector.load %arg24[%c0_71, %c8_72] : memref<16x32xf32, #tpu.memory_space<vmem>>, vector<16x8xf32>
    tpu.vector_store %arg24[%c0_71, %c8_72], %185 {strides = array<i32>} : memref<16x32xf32, #tpu.memory_space<vmem>>, vector<16x8xf32>,
    %187 = vector.extract_strided_slice %138 {offsets = [0, 16], sizes = [16, 8], strides = [1, 1]} : vector<16x96xf32> to vector<16x8xf32>
    %188 = vector.extract_strided_slice %142 {offsets = [0, 48], sizes = [16, 8], strides = [1, 1]} : vector<16x96xf32> to vector<16x8xf32>
    %189 = vector.extract_strided_slice %142 {offsets = [0, 80], sizes = [16, 8], strides = [1, 1]} : vector<16x96xf32> to vector<16x8xf32>
    %190 = arith.truncf %187 : vector<16x8xf32> to vector<16x8xbf16>
    %191 = arith.truncf %188 : vector<16x8xf32> to vector<16x8xbf16>
    %cst_73 = arith.constant dense<0.000000e+00> : vector<16x16xf32>
    %192 = tpu.matmul %190, %191, %cst_73 {dimension_numbers = #tpu.dot_dimension_numbers<[1], [1], [0], [0], [0, 0, 1, 0], [], []>} : vector<16x8xbf16>, vector<16x8xbf16>, vector<16x16xf32> -> vector<16x16xf32>
    %cst_74 = arith.constant 0.176776692 : f32
    %193 = vector.broadcast %cst_74 : f32 to vector<16x16xf32>
    %194 = arith.mulf %192, %193 : vector<16x16xf32>
    %cst_75 = arith.constant dense<0xFF800000> : vector<16xf32>
    %195 = vector.multi_reduction <maximumf>, %194, %cst_75 [1] : vector<16x16xf32> to vector<16xf32>
    %196 = vector.shape_cast %195 : vector<16xf32> to vector<16x1xf32>
    %197 = vector.broadcast %196 : vector<16x1xf32> to vector<16x16xf32>
    %198 = arith.subf %194, %197 : vector<16x16xf32>
    %199 = math.exp %198 : vector<16x16xf32>
    %cst_76 = arith.constant dense<0.000000e+00> : vector<16xf32>
    %200 = vector.multi_reduction <add>, %199, %cst_76 [1] : vector<16x16xf32> to vector<16xf32>
    %201 = vector.shape_cast %200 : vector<16xf32> to vector<16x1xf32>
    %202 = tpu.reciprocal %201 {approx = true} : vector<16x1xf32> -> vector<16x1xf32>
    %203 = vector.broadcast %202 : vector<16x1xf32> to vector<16x16xf32>
    %204 = arith.mulf %199, %203 : vector<16x16xf32>
    %205 = arith.truncf %204 : vector<16x16xf32> to vector<16x16xbf16>
    %206 = arith.truncf %189 : vector<16x8xf32> to vector<16x8xbf16>
    %cst_77 = arith.constant dense<0.000000e+00> : vector<16x8xf32>
    %207 = tpu.matmul %205, %206, %cst_77 {dimension_numbers = #tpu.dot_dimension_numbers<[1], [0], [0], [1], [0, 0, 1, 1], [], []>} : vector<16x16xbf16>, vector<16x8xbf16>, vector<16x8xf32> -> vector<16x8xf32>
    %c0_78 = arith.constant 0 : index
    %c16_79 = arith.constant 16 : index
    %208 = vector.load %arg24[%c0_78, %c16_79] : memref<16x32xf32, #tpu.memory_space<vmem>>, vector<16x8xf32>
    tpu.vector_store %arg24[%c0_78, %c16_79], %207 {strides = array<i32>} : memref<16x32xf32, #tpu.memory_space<vmem>>, vector<16x8xf32>,
    %209 = vector.extract_strided_slice %138 {offsets = [0, 24], sizes = [16, 8], strides = [1, 1]} : vector<16x96xf32> to vector<16x8xf32>
    %210 = vector.extract_strided_slice %142 {offsets = [0, 56], sizes = [16, 8], strides = [1, 1]} : vector<16x96xf32> to vector<16x8xf32>
    %211 = vector.extract_strided_slice %142 {offsets = [0, 88], sizes = [16, 8], strides = [1, 1]} : vector<16x96xf32> to vector<16x8xf32>
    %212 = arith.truncf %209 : vector<16x8xf32> to vector<16x8xbf16>
    %213 = arith.truncf %210 : vector<16x8xf32> to vector<16x8xbf16>
    %cst_80 = arith.constant dense<0.000000e+00> : vector<16x16xf32>
    %214 = tpu.matmul %212, %213, %cst_80 {dimension_numbers = #tpu.dot_dimension_numbers<[1], [1], [0], [0], [0, 0, 1, 0], [], []>} : vector<16x8xbf16>, vector<16x8xbf16>, vector<16x16xf32> -> vector<16x16xf32>
    %cst_81 = arith.constant 0.176776692 : f32
    %215 = vector.broadcast %cst_81 : f32 to vector<16x16xf32>
    %216 = arith.mulf %214, %215 : vector<16x16xf32>
    %cst_82 = arith.constant dense<0xFF800000> : vector<16xf32>
    %217 = vector.multi_reduction <maximumf>, %216, %cst_82 [1] : vector<16x16xf32> to vector<16xf32>
    %218 = vector.shape_cast %217 : vector<16xf32> to vector<16x1xf32>
    %219 = vector.broadcast %218 : vector<16x1xf32> to vector<16x16xf32>
    %220 = arith.subf %216, %219 : vector<16x16xf32>
    %221 = math.exp %220 : vector<16x16xf32>
    %cst_83 = arith.constant dense<0.000000e+00> : vector<16xf32>
    %222 = vector.multi_reduction <add>, %221, %cst_83 [1] : vector<16x16xf32> to vector<16xf32>
    %223 = vector.shape_cast %222 : vector<16xf32> to vector<16x1xf32>
    %224 = tpu.reciprocal %223 {approx = true} : vector<16x1xf32> -> vector<16x1xf32>
    %225 = vector.broadcast %224 : vector<16x1xf32> to vector<16x16xf32>
    %226 = arith.mulf %221, %225 : vector<16x16xf32>
    %227 = arith.truncf %226 : vector<16x16xf32> to vector<16x16xbf16>
    %228 = arith.truncf %211 : vector<16x8xf32> to vector<16x8xbf16>
    %cst_84 = arith.constant dense<0.000000e+00> : vector<16x8xf32>
    %229 = tpu.matmul %227, %228, %cst_84 {dimension_numbers = #tpu.dot_dimension_numbers<[1], [0], [0], [1], [0, 0, 1, 1], [], []>} : vector<16x16xbf16>, vector<16x8xbf16>, vector<16x8xf32> -> vector<16x8xf32>
    %c0_85 = arith.constant 0 : index
    %c24_86 = arith.constant 24 : index
    %230 = vector.load %arg24[%c0_85, %c24_86] : memref<16x32xf32, #tpu.memory_space<vmem>>, vector<16x8xf32>
    tpu.vector_store %arg24[%c0_85, %c24_86], %229 {strides = array<i32>} : memref<16x32xf32, #tpu.memory_space<vmem>>, vector<16x8xf32>,
    %c0_87 = arith.constant 0 : index
    %c0_88 = arith.constant 0 : index
    %231 = vector.load %arg24[%c0_87, %c0_88] : memref<16x32xf32, #tpu.memory_space<vmem>>, vector<16x32xf32>
    %232 = arith.truncf %231 : vector<16x32xf32> to vector<16x32xbf16>
    %c0_89 = arith.constant 0 : index
    %c0_90 = arith.constant 0 : index
    %233 = vector.load %arg13[%c0_89, %c0_90] : memref<32x32xbf16, #tpu.memory_space<vmem>>, vector<32x32xbf16>
    %cst_91 = arith.constant dense<0.000000e+00> : vector<16x32xf32>
    %234 = tpu.matmul %232, %233, %cst_91 {dimension_numbers = #tpu.dot_dimension_numbers<[1], [0], [0], [1], [0, 0, 1, 1], [], []>} : vector<16x32xbf16>, vector<32x32xbf16>, vector<16x32xf32> -> vector<16x32xf32>
    %c0_92 = arith.constant 0 : index
    %c0_93 = arith.constant 0 : index
    %235 = vector.load %arg14[%c0_92, %c0_93] : memref<1x32xf32, #tpu.memory_space<vmem>>, vector<1x32xf32>
    %236 = vector.broadcast %235 : vector<1x32xf32> to vector<16x32xf32>
    %237 = arith.addf %234, %236 : vector<16x32xf32>
    %238 = arith.addf %130, %237 : vector<16x32xf32>
    %cst_94 = arith.constant dense<0.000000e+00> : vector<16x32xf32>
    %239 = tpu.matmul %26, %238, %cst_94 {dimension_numbers = #tpu.dot_dimension_numbers<[1], [0], [0], [1], [0, 0, 1, 1], [], []>} : vector<16x16xf32>, vector<16x32xf32>, vector<16x32xf32> -> vector<16x32xf32>
    %240 = arith.subf %238, %239 : vector<16x32xf32>
    %c1_i32 = arith.constant 1 : i32
    %241 = tpu.dynamic_rotate %240 by %c1_i32 dim 0 : vector<16x32xf32>, i32 -> vector<16x32xf32>
    %c15_i32 = arith.constant 15 : i32
    %242 = tpu.dynamic_rotate %240 by %c15_i32 dim 0 : vector<16x32xf32>, i32 -> vector<16x32xf32>
    %243 = arith.truncf %241 : vector<16x32xf32> to vector<16x32xbf16>
    %c0_95 = arith.constant 0 : index
    %c0_96 = arith.constant 0 : index
    %c0_97 = arith.constant 0 : index
    %244 = vector.load %arg15[%c0_95, %c0_96, %c0_97] : memref<3x32x128xbf16, #tpu.memory_space<vmem>>, vector<1x32x128xbf16>
    %245 = vector.shape_cast %244 : vector<1x32x128xbf16> to vector<32x128xbf16>
    %cst_98 = arith.constant dense<0.000000e+00> : vector<16x128xf32>
    %246 = tpu.matmul %243, %245, %cst_98 {dimension_numbers = #tpu.dot_dimension_numbers<[1], [0], [0], [1], [0, 0, 1, 1], [], []>} : vector<16x32xbf16>, vector<32x128xbf16>, vector<16x128xf32> -> vector<16x128xf32>
    %247 = arith.truncf %240 : vector<16x32xf32> to vector<16x32xbf16>
    %c1 = arith.constant 1 : index
    %c0_99 = arith.constant 0 : index
    %c0_100 = arith.constant 0 : index
    %248 = vector.load %arg15[%c1, %c0_99, %c0_100] : memref<3x32x128xbf16, #tpu.memory_space<vmem>>, vector<1x32x128xbf16>
    %249 = vector.shape_cast %248 : vector<1x32x128xbf16> to vector<32x128xbf16>
    %cst_101 = arith.constant dense<0.000000e+00> : vector<16x128xf32>
    %250 = tpu.matmul %247, %249, %cst_101 {dimension_numbers = #tpu.dot_dimension_numbers<[1], [0], [0], [1], [0, 0, 1, 1], [], []>} : vector<16x32xbf16>, vector<32x128xbf16>, vector<16x128xf32> -> vector<16x128xf32>
    %251 = arith.addf %246, %250 : vector<16x128xf32>
    %252 = arith.truncf %242 : vector<16x32xf32> to vector<16x32xbf16>
    %c2 = arith.constant 2 : index
    %c0_102 = arith.constant 0 : index
    %c0_103 = arith.constant 0 : index
    %253 = vector.load %arg15[%c2, %c0_102, %c0_103] : memref<3x32x128xbf16, #tpu.memory_space<vmem>>, vector<1x32x128xbf16>
    %254 = vector.shape_cast %253 : vector<1x32x128xbf16> to vector<32x128xbf16>
    %cst_104 = arith.constant dense<0.000000e+00> : vector<16x128xf32>
    %255 = tpu.matmul %252, %254, %cst_104 {dimension_numbers = #tpu.dot_dimension_numbers<[1], [0], [0], [1], [0, 0, 1, 1], [], []>} : vector<16x32xbf16>, vector<32x128xbf16>, vector<16x128xf32> -> vector<16x128xf32>
    %256 = arith.addf %251, %255 : vector<16x128xf32>
    %cst_105 = arith.constant 0.000000e+00 : f32
    %257 = vector.broadcast %cst_105 : f32 to vector<16x128xf32>
    %258 = arith.maximumf %256, %257 : vector<16x128xf32>
    %c1_i32_106 = arith.constant 1 : i32
    %259 = tpu.dynamic_rotate %258 by %c1_i32_106 dim 0 : vector<16x128xf32>, i32 -> vector<16x128xf32>
    %c15_i32_107 = arith.constant 15 : i32
    %260 = tpu.dynamic_rotate %258 by %c15_i32_107 dim 0 : vector<16x128xf32>, i32 -> vector<16x128xf32>
    %261 = arith.truncf %259 : vector<16x128xf32> to vector<16x128xbf16>
    %c0_108 = arith.constant 0 : index
    %c0_109 = arith.constant 0 : index
    %c0_110 = arith.constant 0 : index
    %262 = vector.load %arg16[%c0_108, %c0_109, %c0_110] : memref<3x128x32xbf16, #tpu.memory_space<vmem>>, vector<1x128x32xbf16>
    %263 = vector.shape_cast %262 : vector<1x128x32xbf16> to vector<128x32xbf16>
    %cst_111 = arith.constant dense<0.000000e+00> : vector<16x32xf32>
    %264 = tpu.matmul %261, %263, %cst_111 {dimension_numbers = #tpu.dot_dimension_numbers<[1], [0], [0], [1], [0, 0, 1, 1], [], []>} : vector<16x128xbf16>, vector<128x32xbf16>, vector<16x32xf32> -> vector<16x32xf32>
    %265 = arith.truncf %258 : vector<16x128xf32> to vector<16x128xbf16>
    %c1_112 = arith.constant 1 : index
    %c0_113 = arith.constant 0 : index
    %c0_114 = arith.constant 0 : index
    %266 = vector.load %arg16[%c1_112, %c0_113, %c0_114] : memref<3x128x32xbf16, #tpu.memory_space<vmem>>, vector<1x128x32xbf16>
    %267 = vector.shape_cast %266 : vector<1x128x32xbf16> to vector<128x32xbf16>
    %cst_115 = arith.constant dense<0.000000e+00> : vector<16x32xf32>
    %268 = tpu.matmul %265, %267, %cst_115 {dimension_numbers = #tpu.dot_dimension_numbers<[1], [0], [0], [1], [0, 0, 1, 1], [], []>} : vector<16x128xbf16>, vector<128x32xbf16>, vector<16x32xf32> -> vector<16x32xf32>
    %269 = arith.addf %264, %268 : vector<16x32xf32>
    %270 = arith.truncf %260 : vector<16x128xf32> to vector<16x128xbf16>
    %c2_116 = arith.constant 2 : index
    %c0_117 = arith.constant 0 : index
    %c0_118 = arith.constant 0 : index
    %271 = vector.load %arg16[%c2_116, %c0_117, %c0_118] : memref<3x128x32xbf16, #tpu.memory_space<vmem>>, vector<1x128x32xbf16>
    %272 = vector.shape_cast %271 : vector<1x128x32xbf16> to vector<128x32xbf16>
    %cst_119 = arith.constant dense<0.000000e+00> : vector<16x32xf32>
    %273 = tpu.matmul %270, %272, %cst_119 {dimension_numbers = #tpu.dot_dimension_numbers<[1], [0], [0], [1], [0, 0, 1, 1], [], []>} : vector<16x128xbf16>, vector<128x32xbf16>, vector<16x32xf32> -> vector<16x32xf32>
    %274 = arith.addf %269, %273 : vector<16x32xf32>
    %275 = arith.addf %240, %274 : vector<16x32xf32>
    %cst_120 = arith.constant dense<0.000000e+00> : vector<16x32xf32>
    %276 = tpu.matmul %26, %275, %cst_120 {dimension_numbers = #tpu.dot_dimension_numbers<[1], [0], [0], [1], [0, 0, 1, 1], [], []>} : vector<16x16xf32>, vector<16x32xf32>, vector<16x32xf32> -> vector<16x32xf32>
    %277 = arith.subf %275, %276 : vector<16x32xf32>
    %c0_121 = arith.constant 0 : index
    %c0_122 = arith.constant 0 : index
    %c0_123 = arith.constant 0 : index
    %278 = vector.load %arg22[%c0_121, %c0_122, %c0_123] : memref<1x16x32xf32, #tpu.memory_space<vmem>>, vector<1x16x32xf32>
    %279 = vector.shape_cast %278 : vector<1x16x32xf32> to vector<16x32xf32>
    %280 = vector.shape_cast %277 : vector<16x32xf32> to vector<1x16x32xf32>
    tpu.vector_store %arg22[%c0_121, %c0_122, %c0_123], %280 {strides = array<i32>} : memref<1x16x32xf32, #tpu.memory_space<vmem>>, vector<1x16x32xf32>,
    %c0_124 = arith.constant 0 : index
    %c0_125 = arith.constant 0 : index
    %c0_126 = arith.constant 0 : index
    %281 = vector.load %arg3[%c0_124, %c0_125, %c0_126] : memref<1x16x4xf32, #tpu.memory_space<vmem>>, vector<1x16x4xf32>
    %282 = vector.shape_cast %281 : vector<1x16x4xf32> to vector<16x4xf32>
    %283 = arith.truncf %129 : vector<16x32xf32> to vector<16x32xbf16>
    %c0_127 = arith.constant 0 : index
    %c0_128 = arith.constant 0 : index
    %284 = vector.load %arg17[%c0_127, %c0_128] : memref<32x4xbf16, #tpu.memory_space<vmem>>, vector<32x4xbf16>
    %cst_129 = arith.constant dense<0.000000e+00> : vector<16x4xf32>
    %285 = tpu.matmul %283, %284, %cst_129 {dimension_numbers = #tpu.dot_dimension_numbers<[1], [0], [0], [1], [0, 0, 1, 1], [], []>} : vector<16x32xbf16>, vector<32x4xbf16>, vector<16x4xf32> -> vector<16x4xf32>
    %286 = arith.truncf %239 : vector<16x32xf32> to vector<16x32xbf16>
    %c0_130 = arith.constant 0 : index
    %c0_131 = arith.constant 0 : index
    %287 = vector.load %arg18[%c0_130, %c0_131] : memref<32x4xbf16, #tpu.memory_space<vmem>>, vector<32x4xbf16>
    %cst_132 = arith.constant dense<0.000000e+00> : vector<16x4xf32>
    %288 = tpu.matmul %286, %287, %cst_132 {dimension_numbers = #tpu.dot_dimension_numbers<[1], [0], [0], [1], [0, 0, 1, 1], [], []>} : vector<16x32xbf16>, vector<32x4xbf16>, vector<16x4xf32> -> vector<16x4xf32>
    %289 = arith.addf %285, %288 : vector<16x4xf32>
    %290 = arith.truncf %276 : vector<16x32xf32> to vector<16x32xbf16>
    %c0_133 = arith.constant 0 : index
    %c0_134 = arith.constant 0 : index
    %291 = vector.load %arg19[%c0_133, %c0_134] : memref<32x4xbf16, #tpu.memory_space<vmem>>, vector<32x4xbf16>
    %cst_135 = arith.constant dense<0.000000e+00> : vector<16x4xf32>
    %292 = tpu.matmul %290, %291, %cst_135 {dimension_numbers = #tpu.dot_dimension_numbers<[1], [0], [0], [1], [0, 0, 1, 1], [], []>} : vector<16x32xbf16>, vector<32x4xbf16>, vector<16x4xf32> -> vector<16x4xf32>
    %293 = arith.addf %289, %292 : vector<16x4xf32>
    %294 = arith.truncf %282 : vector<16x4xf32> to vector<16x4xbf16>
    %c0_136 = arith.constant 0 : index
    %c0_137 = arith.constant 0 : index
    %295 = vector.load %arg20[%c0_136, %c0_137] : memref<4x4xbf16, #tpu.memory_space<vmem>>, vector<4x4xbf16>
    %cst_138 = arith.constant dense<0.000000e+00> : vector<16x4xf32>
    %296 = tpu.matmul %294, %295, %cst_138 {dimension_numbers = #tpu.dot_dimension_numbers<[1], [0], [0], [1], [0, 0, 1, 1], [], []>} : vector<16x4xbf16>, vector<4x4xbf16>, vector<16x4xf32> -> vector<16x4xf32>
    %297 = arith.addf %293, %296 : vector<16x4xf32>
    %c0_139 = arith.constant 0 : index
    %c0_140 = arith.constant 0 : index
    %298 = vector.load %arg21[%c0_139, %c0_140] : memref<1x4xf32, #tpu.memory_space<vmem>>, vector<1x4xf32>
    %299 = vector.broadcast %298 : vector<1x4xf32> to vector<16x4xf32>
    %300 = arith.addf %297, %299 : vector<16x4xf32>
    %c0_141 = arith.constant 0 : index
    %c0_142 = arith.constant 0 : index
    %c0_143 = arith.constant 0 : index
    %301 = vector.load %arg23[%c0_141, %c0_142, %c0_143] : memref<1x16x4xf32, #tpu.memory_space<vmem>>, vector<1x16x4xf32>
    %302 = vector.shape_cast %301 : vector<1x16x4xf32> to vector<16x4xf32>
    %303 = vector.shape_cast %300 : vector<16x4xf32> to vector<1x16x4xf32>
    tpu.vector_store %arg23[%c0_141, %c0_142, %c0_143], %303 {strides = array<i32>} : memref<1x16x4xf32, #tpu.memory_space<vmem>>, vector<1x16x4xf32>,
    return
  }
  func.func @transform_0(%arg0: i32) -> (i32, i32, i32) {
    %c0_i32 = arith.constant 0 : i32
    %c0_i32_0 = arith.constant 0 : i32
    %c0_i32_1 = arith.constant 0 : i32
    return %arg0, %c0_i32, %c0_i32_0 : i32, i32, i32
  }
  func.func @transform_1(%arg0: i32) -> (i32, i32, i32) {
    %c0_i32 = arith.constant 0 : i32
    %c0_i32_0 = arith.constant 0 : i32
    %c0_i32_1 = arith.constant 0 : i32
    return %arg0, %c0_i32, %c0_i32_0 : i32, i32, i32
  }
  func.func @transform_2(%arg0: i32) -> (i32, i32, i32) {
    %c0_i32 = arith.constant 0 : i32
    %c0_i32_0 = arith.constant 0 : i32
    %c0_i32_1 = arith.constant 0 : i32
    return %arg0, %c0_i32, %c0_i32_0 : i32, i32, i32
  }
  func.func @transform_3(%arg0: i32) -> (i32, i32) {
    %c0_i32 = arith.constant 0 : i32
    %c0_i32_0 = arith.constant 0 : i32
    %c0_i32_1 = arith.constant 0 : i32
    return %c0_i32, %c0_i32_0 : i32, i32
  }
  func.func @transform_4(%arg0: i32) -> (i32, i32) {
    %c0_i32 = arith.constant 0 : i32
    %c0_i32_0 = arith.constant 0 : i32
    %c0_i32_1 = arith.constant 0 : i32
    return %c0_i32, %c0_i32_0 : i32, i32
  }
  func.func @transform_5(%arg0: i32) -> (i32, i32) {
    %c0_i32 = arith.constant 0 : i32
    %c0_i32_0 = arith.constant 0 : i32
    %c0_i32_1 = arith.constant 0 : i32
    return %c0_i32, %c0_i32_0 : i32, i32
  }
  func.func @transform_6(%arg0: i32) -> (i32, i32) {
    %c0_i32 = arith.constant 0 : i32
    %c0_i32_0 = arith.constant 0 : i32
    %c0_i32_1 = arith.constant 0 : i32
    return %c0_i32, %c0_i32_0 : i32, i32
  }
  func.func @transform_7(%arg0: i32) -> (i32, i32) {
    %c0_i32 = arith.constant 0 : i32
    %c0_i32_0 = arith.constant 0 : i32
    %c0_i32_1 = arith.constant 0 : i32
    return %c0_i32, %c0_i32_0 : i32, i32
  }
  func.func @transform_8(%arg0: i32) -> (i32, i32) {
    %c0_i32 = arith.constant 0 : i32
    %c0_i32_0 = arith.constant 0 : i32
    %c0_i32_1 = arith.constant 0 : i32
    return %c0_i32, %c0_i32_0 : i32, i32
  }
  func.func @transform_9(%arg0: i32) -> (i32, i32) {
    %c0_i32 = arith.constant 0 : i32
    %c0_i32_0 = arith.constant 0 : i32
    %c0_i32_1 = arith.constant 0 : i32
    return %c0_i32, %c0_i32_0 : i32, i32
  }
  func.func @transform_10(%arg0: i32) -> (i32, i32) {
    %c0_i32 = arith.constant 0 : i32
    %c0_i32_0 = arith.constant 0 : i32
    %c0_i32_1 = arith.constant 0 : i32
    return %c0_i32, %c0_i32_0 : i32, i32
  }
  func.func @transform_11(%arg0: i32) -> (i32, i32) {
    %c0_i32 = arith.constant 0 : i32
    %c0_i32_0 = arith.constant 0 : i32
    %c0_i32_1 = arith.constant 0 : i32
    return %c0_i32, %c0_i32_0 : i32, i32
  }
  func.func @transform_12(%arg0: i32) -> (i32, i32) {
    %c0_i32 = arith.constant 0 : i32
    %c0_i32_0 = arith.constant 0 : i32
    %c0_i32_1 = arith.constant 0 : i32
    return %c0_i32, %c0_i32_0 : i32, i32
  }
  func.func @transform_13(%arg0: i32) -> (i32, i32) {
    %c0_i32 = arith.constant 0 : i32
    %c0_i32_0 = arith.constant 0 : i32
    %c0_i32_1 = arith.constant 0 : i32
    return %c0_i32, %c0_i32_0 : i32, i32
  }
  func.func @transform_14(%arg0: i32) -> (i32, i32, i32) {
    %c0_i32 = arith.constant 0 : i32
    %c0_i32_0 = arith.constant 0 : i32
    %c0_i32_1 = arith.constant 0 : i32
    %c0_i32_2 = arith.constant 0 : i32
    return %c0_i32, %c0_i32_0, %c0_i32_1 : i32, i32, i32
  }
  func.func @transform_15(%arg0: i32) -> (i32, i32, i32) {
    %c0_i32 = arith.constant 0 : i32
    %c0_i32_0 = arith.constant 0 : i32
    %c0_i32_1 = arith.constant 0 : i32
    %c0_i32_2 = arith.constant 0 : i32
    return %c0_i32, %c0_i32_0, %c0_i32_1 : i32, i32, i32
  }
  func.func @transform_16(%arg0: i32) -> (i32, i32) {
    %c0_i32 = arith.constant 0 : i32
    %c0_i32_0 = arith.constant 0 : i32
    %c0_i32_1 = arith.constant 0 : i32
    return %c0_i32, %c0_i32_0 : i32, i32
  }
  func.func @transform_17(%arg0: i32) -> (i32, i32) {
    %c0_i32 = arith.constant 0 : i32
    %c0_i32_0 = arith.constant 0 : i32
    %c0_i32_1 = arith.constant 0 : i32
    return %c0_i32, %c0_i32_0 : i32, i32
  }
  func.func @transform_18(%arg0: i32) -> (i32, i32) {
    %c0_i32 = arith.constant 0 : i32
    %c0_i32_0 = arith.constant 0 : i32
    %c0_i32_1 = arith.constant 0 : i32
    return %c0_i32, %c0_i32_0 : i32, i32
  }
  func.func @transform_19(%arg0: i32) -> (i32, i32) {
    %c0_i32 = arith.constant 0 : i32
    %c0_i32_0 = arith.constant 0 : i32
    %c0_i32_1 = arith.constant 0 : i32
    return %c0_i32, %c0_i32_0 : i32, i32
  }
  func.func @transform_20(%arg0: i32) -> (i32, i32) {
    %c0_i32 = arith.constant 0 : i32
    %c0_i32_0 = arith.constant 0 : i32
    %c0_i32_1 = arith.constant 0 : i32
    return %c0_i32, %c0_i32_0 : i32, i32
  }
  func.func @transform_21(%arg0: i32) -> (i32, i32, i32) {
    %c0_i32 = arith.constant 0 : i32
    %c0_i32_0 = arith.constant 0 : i32
    %c0_i32_1 = arith.constant 0 : i32
    return %arg0, %c0_i32, %c0_i32_0 : i32, i32, i32
  }
  func.func @transform_22(%arg0: i32) -> (i32, i32, i32) {
    %c0_i32 = arith.constant 0 : i32
    %c0_i32_0 = arith.constant 0 : i32
    %c0_i32_1 = arith.constant 0 : i32
    return %arg0, %c0_i32, %c0_i32_0 : i32, i32, i32
  }
}

</mosaic_0001>

<llo_original>
// kernel: decoder_layer_forward.1
$region0: #{decoder_layer_forward.1}
  #allocation0 [shape = 'u32[]', space=smem, size = 0x4, offset = 0x4, fixed_abs, tag = 'smem constant byte address 0x4 - core index']
  #allocation1 [shape = 'u32[144,128]{1,0:T(1,128)}', space=vmem, size = 0x12000, scoped, tag = 'internal scratch']
  #allocation2 [shape = 'f32[16,32]{1,0:T(8,128)}', space=vmem, size = 0x2000, scoped, tag = 'scratch operand']
  %s0 = inlined_call_operand.vmem [shape: f32[2,16,32], index: 0, kind: input, shape index: {}]
  %s1 = inlined_call_operand.vmem [shape: f32[2,16,32], index: 1, kind: input, shape index: {}]
  %s2 = inlined_call_operand.vmem [shape: f32[2,16,4], index: 2, kind: input, shape index: {}]
  %s3 = inlined_call_operand.vmem [shape: f32[16,16], index: 3, kind: input, shape index: {}]
  %s4 = inlined_call_operand.vmem [shape: f32[1,32], index: 4, kind: input, shape index: {}]
  %s5 = inlined_call_operand.vmem [shape: f32[1,32], index: 5, kind: input, shape index: {}]
  %s6 = inlined_call_operand.vmem [shape: bf16[32,96], index: 6, kind: input, shape index: {}]
  %s7 = inlined_call_operand.vmem [shape: f32[1,96], index: 7, kind: input, shape index: {}]
  %s8 = inlined_call_operand.vmem [shape: bf16[32,32], index: 8, kind: input, shape index: {}]
  %s9 = inlined_call_operand.vmem [shape: f32[1,32], index: 9, kind: input, shape index: {}]
  %s10 = inlined_call_operand.vmem [shape: bf16[32,96], index: 10, kind: input, shape index: {}]
  %s11 = inlined_call_operand.vmem [shape: f32[1,96], index: 11, kind: input, shape index: {}]
  %s12 = inlined_call_operand.vmem [shape: bf16[32,32], index: 12, kind: input, shape index: {}]
  %s13 = inlined_call_operand.vmem [shape: f32[1,32], index: 13, kind: input, shape index: {}]
  %s14 = inlined_call_operand.vmem [shape: bf16[3,32,128], index: 14, kind: input, shape index: {}]
  %s15 = inlined_call_operand.vmem [shape: bf16[3,128,32], index: 15, kind: input, shape index: {}]
  %s16 = inlined_call_operand.vmem [shape: bf16[32,4], index: 16, kind: input, shape index: {}]
  %s17 = inlined_call_operand.vmem [shape: bf16[32,4], index: 17, kind: input, shape index: {}]
  %s18 = inlined_call_operand.vmem [shape: bf16[32,4], index: 18, kind: input, shape index: {}]
  %s19 = inlined_call_operand.vmem [shape: bf16[4,4], index: 19, kind: input, shape index: {}]
  %s20 = inlined_call_operand.vmem [shape: f32[1,4], index: 20, kind: input, shape index: {}]
  %s21 = inlined_call_operand.hbm [shape: f32[2,16,32], index: 21, kind: output, shape index: {0}]
  %s22 = inlined_call_operand.vmem [shape: f32[2,16,4], index: 22, kind: output, shape index: {1}]
  %23 = xla_tuple %s21, %s22
  %s24 = sld [smem:[#allocation0]]
  $region125: #{decoder_layer_forward.1} parent=0
    _
  %s26 = ssub.s32 1, %s24
  %s27 = scalar_select 0, %s26, %s24
  $region1: #{decoder_layer_forward.1} parent=0
    #allocation3 [shape = 'u8[16384]{0}', space=vmem, size = 0x4000, scoped, tag = 'output window, operand 0']
    #allocation4 [shape = 's32[2]{0}', space=sflag, size = 0x8, scoped, tag = 'scoped memory for decoder_layer_forward.1']
    %28 = vsyncpa [#allocation4], 0
    %s29 = scalar_lea.sflag [#allocation4], 1
    %30 = vsyncpa %s29, 0
    loop: start=0, step=1, limit=4
    $region2: #{decoder_layer_forward.1} parent=1 // loop_pre_header
      _
    $region3: #{decoder_layer_forward.1} parent=1 // loop_header
      %s32 = sphi 0, %s36
      %p33 = scmp.ge.s32.totalorder %s32, 4
      %s42 = sphi 0, %s44
      %s45 = sphi 0, %s42
      %s46 = sphi 0, %s45
      %s62 = sphi 0, %s46
      %s68 = sphi 0, %s70
      %s71 = sphi 0, %s68
      %s72 = sphi 0, %s71
      %s88 = sphi 0, %s72
      %s94 = sphi 0, %s96
      %s97 = sphi 0, %s94
      %s98 = sphi 0, %s97
      %s114 = sphi 0, %s98
      %s118 = sphi 0, %s118
      %s120 = sphi 0, %s118
      %s121 = sphi 0, %s120
      %s135 = sphi 0, %s121
      %s139 = sphi 0, %s139
      %s141 = sphi 0, %s139
      %s142 = sphi 0, %s141
      %s156 = sphi 0, %s142
      %s160 = sphi 0, %s160
      %s162 = sphi 0, %s160
      %s163 = sphi 0, %s162
      %s177 = sphi 0, %s163
      %s181 = sphi 0, %s181
      %s183 = sphi 0, %s181
      %s184 = sphi 0, %s183
      %s198 = sphi 0, %s184
      %s202 = sphi 0, %s202
      %s204 = sphi 0, %s202
      %s205 = sphi 0, %s204
      %s219 = sphi 0, %s205
      %s223 = sphi 0, %s223
      %s225 = sphi 0, %s223
      %s226 = sphi 0, %s225
      %s240 = sphi 0, %s226
      %s244 = sphi 0, %s244
      %s246 = sphi 0, %s244
      %s247 = sphi 0, %s246
      %s261 = sphi 0, %s247
      %s265 = sphi 0, %s265
      %s267 = sphi 0, %s265
      %s268 = sphi 0, %s267
      %s282 = sphi 0, %s268
      %s286 = sphi 0, %s286
      %s288 = sphi 0, %s286
      %s289 = sphi 0, %s288
      %s303 = sphi 0, %s289
      %s307 = sphi 0, %s307
      %s309 = sphi 0, %s307
      %s310 = sphi 0, %s309
      %s324 = sphi 0, %s310
      %s328 = sphi 0, %s328
      %s330 = sphi 0, %s328
      %s331 = sphi 0, %s330
      %s345 = sphi 0, %s331
      %s349 = sphi 0, %s349
      %s351 = sphi 0, %s349
      %s352 = sphi 0, %s351
      %s366 = sphi 0, %s352
      %s370 = sphi 0, %s370
      %s372 = sphi 0, %s370
      %s373 = sphi 0, %s372
      %s387 = sphi 0, %s373
      %s391 = sphi 0, %s391
      %s393 = sphi 0, %s391
      %s394 = sphi 0, %s393
      %s408 = sphi 0, %s394
      %s412 = sphi 0, %s412
      %s414 = sphi 0, %s412
      %s415 = sphi 0, %s414
      %s429 = sphi 0, %s415
      %s433 = sphi 0, %s433
      %s435 = sphi 0, %s433
      %s436 = sphi 0, %s435
      %s450 = sphi 0, %s436
      %s454 = sphi 0, %s454
      %s456 = sphi 0, %s454
      %s457 = sphi 0, %s456
      %s471 = sphi 0, %s457
      %s475 = sphi 0, %s475
      %s477 = sphi 0, %s475
      %s478 = sphi 0, %s477
      %s492 = sphi 0, %s478
      %s498 = sphi 0, %s500
      %s501 = sphi 0, %s498
      %s502 = sphi 0, %s501
      %s518 = sphi 0, %s502
      %s524 = sphi 0, %s526
      %s527 = sphi 0, %s524
      %s528 = sphi 0, %s527
      %s544 = sphi 0, %s528
    $region4: #{decoder_layer_forward.1} parent=1 // loop_header_branch
      %35 = sbr.rel (%p33) target = $region8
    $region5: #{decoder_layer_forward.1} parent=1 // loop_body
      %s37 = ssub.s32 %s32, 1
      %s38 = ssub.s32 %s32, 2
      %s39 = sadd.s32 %s32, 1
      %s40 = ssub.s32 %s32, %s39
      %p41 = scmp.eq.s32.totalorder %s40, 0
      %s43 = sadd.s32 %s42, 1
      %s44 = scalar_select %p41, %s42, %s43
      %p47 = pneg %p41
      %p48 = scmp.eq.s32.totalorder %s32, 1
      %p49 = por %p47, %p48
      %p50 = scmp.ne.s32.totalorder %s42, %s45
      %p51 = scmp.eq.s32.totalorder %s32, 0
      %p52 = por %p50, %p51
      %p53 = scmp.ne.s32.totalorder %s42, %s45
      %p54 = scmp.eq.s32.totalorder %s37, 1
      %p55 = por %p53, %p54
      %p56 = scmp.ne.s32.totalorder %s45, %s46
      %p57 = scmp.eq.s32.totalorder %s37, 0
      %p58 = por %p56, %p57
      %p59 = scmp.ne.s32.totalorder %s45, %s46
      %p60 = scmp.eq.s32.totalorder %s38, 1
      %p61 = por %p59, %p60
      %p63 = scmp.ne.s32.totalorder %s46, %s62
      %p64 = scmp.eq.s32.totalorder %s38, 0
      %p65 = por %p63, %p64
      %s66 = ssub.s32 %s32, %s39
      %p67 = scmp.eq.s32.totalorder %s66, 0
      %s69 = sadd.s32 %s68, 1
      %s70 = scalar_select %p67, %s68, %s69
      %p73 = pneg %p67
      %p74 = scmp.eq.s32.totalorder %s32, 1
      %p75 = por %p73, %p74
      %p76 = scmp.ne.s32.totalorder %s68, %s71
      %p77 = scmp.eq.s32.totalorder %s32, 0
      %p78 = por %p76, %p77
      %p79 = scmp.ne.s32.totalorder %s68, %s71
      %p80 = scmp.eq.s32.totalorder %s37, 1
      %p81 = por %p79, %p80
      %p82 = scmp.ne.s32.totalorder %s71, %s72
      %p83 = scmp.eq.s32.totalorder %s37, 0
      %p84 = por %p82, %p83
      %p85 = scmp.ne.s32.totalorder %s71, %s72
      %p86 = scmp.eq.s32.totalorder %s38, 1
      %p87 = por %p85, %p86
      %p89 = scmp.ne.s32.totalorder %s72, %s88
      %p90 = scmp.eq.s32.totalorder %s38, 0
      %p91 = por %p89, %p90
      %s92 = ssub.s32 %s32, %s39
      %p93 = scmp.eq.s32.totalorder %s92, 0
      %s95 = sadd.s32 %s94, 1
      %s96 = scalar_select %p93, %s94, %s95
      %p99 = pneg %p93
      %p100 = scmp.eq.s32.totalorder %s32, 1
      %p101 = por %p99, %p100
      %p102 = scmp.ne.s32.totalorder %s94, %s97
      %p103 = scmp.eq.s32.totalorder %s32, 0
      %p104 = por %p102, %p103
      %p105 = scmp.ne.s32.totalorder %s94, %s97
      %p106 = scmp.eq.s32.totalorder %s37, 1
      %p107 = por %p105, %p106
      %p108 = scmp.ne.s32.totalorder %s97, %s98
      %p109 = scmp.eq.s32.totalorder %s37, 0
      %p110 = por %p108, %p109
      %p111 = scmp.ne.s32.totalorder %s97, %s98
      %p112 = scmp.eq.s32.totalorder %s38, 1
      %p113 = por %p111, %p112
      %p115 = scmp.ne.s32.totalorder %s98, %s114
      %p116 = scmp.eq.s32.totalorder %s38, 0
      %p117 = por %p115, %p116
      %s119 = sadd.s32 %s118, 1
      %p122 = scmp.eq.s32.totalorder %s32, 1
      %p123 = scmp.ne.s32.totalorder %s118, %s120
      %p124 = scmp.eq.s32.totalorder %s32, 0
      %p125 = por %p123, %p124
      %p126 = scmp.ne.s32.totalorder %s118, %s120
      %p127 = scmp.eq.s32.totalorder %s37, 1
      %p128 = por %p126, %p127
      %p129 = scmp.ne.s32.totalorder %s120, %s121
      %p130 = scmp.eq.s32.totalorder %s37, 0
      %p131 = por %p129, %p130
      %p132 = scmp.ne.s32.totalorder %s120, %s121
      %p133 = scmp.eq.s32.totalorder %s38, 1
      %p134 = por %p132, %p133
      %p136 = scmp.ne.s32.totalorder %s121, %s135
      %p137 = scmp.eq.s32.totalorder %s38, 0
      %p138 = por %p136, %p137
      %s140 = sadd.s32 %s139, 1
      %p143 = scmp.eq.s32.totalorder %s32, 1
      %p144 = scmp.ne.s32.totalorder %s139, %s141
      %p145 = scmp.eq.s32.totalorder %s32, 0
      %p146 = por %p144, %p145
      %p147 = scmp.ne.s32.totalorder %s139, %s141
      %p148 = scmp.eq.s32.totalorder %s37, 1
      %p149 = por %p147, %p148
      %p150 = scmp.ne.s32.totalorder %s141, %s142
      %p151 = scmp.eq.s32.totalorder %s37, 0
      %p152 = por %p150, %p151
      %p153 = scmp.ne.s32.totalorder %s141, %s142
      %p154 = scmp.eq.s32.totalorder %s38, 1
      %p155 = por %p153, %p154
      %p157 = scmp.ne.s32.totalorder %s142, %s156
      %p158 = scmp.eq.s32.totalorder %s38, 0
      %p159 = por %p157, %p158
      %s161 = sadd.s32 %s160, 1
      %p164 = scmp.eq.s32.totalorder %s32, 1
      %p165 = scmp.ne.s32.totalorder %s160, %s162
      %p166 = scmp.eq.s32.totalorder %s32, 0
      %p167 = por %p165, %p166
      %p168 = scmp.ne.s32.totalorder %s160, %s162
      %p169 = scmp.eq.s32.totalorder %s37, 1
      %p170 = por %p168, %p169
      %p171 = scmp.ne.s32.totalorder %s162, %s163
      %p172 = scmp.eq.s32.totalorder %s37, 0
      %p173 = por %p171, %p172
      %p174 = scmp.ne.s32.totalorder %s162, %s163
      %p175 = scmp.eq.s32.totalorder %s38, 1
      %p176 = por %p174, %p175
      %p178 = scmp.ne.s32.totalorder %s163, %s177
      %p179 = scmp.eq.s32.totalorder %s38, 0
      %p180 = por %p178, %p179
      %s182 = sadd.s32 %s181, 1
      %p185 = scmp.eq.s32.totalorder %s32, 1
      %p186 = scmp.ne.s32.totalorder %s181, %s183
      %p187 = scmp.eq.s32.totalorder %s32, 0
      %p188 = por %p186, %p187
      %p189 = scmp.ne.s32.totalorder %s181, %s183
      %p190 = scmp.eq.s32.totalorder %s37, 1
      %p191 = por %p189, %p190
      %p192 = scmp.ne.s32.totalorder %s183, %s184
      %p193 = scmp.eq.s32.totalorder %s37, 0
      %p194 = por %p192, %p193
      %p195 = scmp.ne.s32.totalorder %s183, %s184
      %p196 = scmp.eq.s32.totalorder %s38, 1
      %p197 = por %p195, %p196
      %p199 = scmp.ne.s32.totalorder %s184, %s198
      %p200 = scmp.eq.s32.totalorder %s38, 0
      %p201 = por %p199, %p200
      %s203 = sadd.s32 %s202, 1
      %p206 = scmp.eq.s32.totalorder %s32, 1
      %p207 = scmp.ne.s32.totalorder %s202, %s204
      %p208 = scmp.eq.s32.totalorder %s32, 0
      %p209 = por %p207, %p208
      %p210 = scmp.ne.s32.totalorder %s202, %s204
      %p211 = scmp.eq.s32.totalorder %s37, 1
      %p212 = por %p210, %p211
      %p213 = scmp.ne.s32.totalorder %s204, %s205
      %p214 = scmp.eq.s32.totalorder %s37, 0
      %p215 = por %p213, %p214
      %p216 = scmp.ne.s32.totalorder %s204, %s205
      %p217 = scmp.eq.s32.totalorder %s38, 1
      %p218 = por %p216, %p217
      %p220 = scmp.ne.s32.totalorder %s205, %s219
      %p221 = scmp.eq.s32.totalorder %s38, 0
      %p222 = por %p220, %p221
      %s224 = sadd.s32 %s223, 1
      %p227 = scmp.eq.s32.totalorder %s32, 1
      %p228 = scmp.ne.s32.totalorder %s223, %s225
      %p229 = scmp.eq.s32.totalorder %s32, 0
      %p230 = por %p228, %p229
      %p231 = scmp.ne.s32.totalorder %s223, %s225
      %p232 = scmp.eq.s32.totalorder %s37, 1
      %p233 = por %p231, %p232
      %p234 = scmp.ne.s32.totalorder %s225, %s226
      %p235 = scmp.eq.s32.totalorder %s37, 0
      %p236 = por %p234, %p235
      %p237 = scmp.ne.s32.totalorder %s225, %s226
      %p238 = scmp.eq.s32.totalorder %s38, 1
      %p239 = por %p237, %p238
      %p241 = scmp.ne.s32.totalorder %s226, %s240
      %p242 = scmp.eq.s32.totalorder %s38, 0
      %p243 = por %p241, %p242
      %s245 = sadd.s32 %s244, 1
      %p248 = scmp.eq.s32.totalorder %s32, 1
      %p249 = scmp.ne.s32.totalorder %s244, %s246
      %p250 = scmp.eq.s32.totalorder %s32, 0
      %p251 = por %p249, %p250
      %p252 = scmp.ne.s32.totalorder %s244, %s246
      %p253 = scmp.eq.s32.totalorder %s37, 1
      %p254 = por %p252, %p253
      %p255 = scmp.ne.s32.totalorder %s246, %s247
      %p256 = scmp.eq.s32.totalorder %s37, 0
      %p257 = por %p255, %p256
      %p258 = scmp.ne.s32.totalorder %s246, %s247
      %p259 = scmp.eq.s32.totalorder %s38, 1
      %p260 = por %p258, %p259
      %p262 = scmp.ne.s32.totalorder %s247, %s261
      %p263 = scmp.eq.s32.totalorder %s38, 0
      %p264 = por %p262, %p263
      %s266 = sadd.s32 %s265, 1
      %p269 = scmp.eq.s32.totalorder %s32, 1
      %p270 = scmp.ne.s32.totalorder %s265, %s267
      %p271 = scmp.eq.s32.totalorder %s32, 0
      %p272 = por %p270, %p271
      %p273 = scmp.ne.s32.totalorder %s265, %s267
      %p274 = scmp.eq.s32.totalorder %s37, 1
      %p275 = por %p273, %p274
      %p276 = scmp.ne.s32.totalorder %s267, %s268
      %p277 = scmp.eq.s32.totalorder %s37, 0
      %p278 = por %p276, %p277
      %p279 = scmp.ne.s32.totalorder %s267, %s268
      %p280 = scmp.eq.s32.totalorder %s38, 1
      %p281 = por %p279, %p280
      %p283 = scmp.ne.s32.totalorder %s268, %s282
      %p284 = scmp.eq.s32.totalorder %s38, 0
      %p285 = por %p283, %p284
      %s287 = sadd.s32 %s286, 1
      %p290 = scmp.eq.s32.totalorder %s32, 1
      %p291 = scmp.ne.s32.totalorder %s286, %s288
      %p292 = scmp.eq.s32.totalorder %s32, 0
      %p293 = por %p291, %p292
      %p294 = scmp.ne.s32.totalorder %s286, %s288
      %p295 = scmp.eq.s32.totalorder %s37, 1
      %p296 = por %p294, %p295
      %p297 = scmp.ne.s32.totalorder %s288, %s289
      %p298 = scmp.eq.s32.totalorder %s37, 0
      %p299 = por %p297, %p298
      %p300 = scmp.ne.s32.totalorder %s288, %s289
      %p301 = scmp.eq.s32.totalorder %s38, 1
      %p302 = por %p300, %p301
      %p304 = scmp.ne.s32.totalorder %s289, %s303
      %p305 = scmp.eq.s32.totalorder %s38, 0
      %p306 = por %p304, %p305
      %s308 = sadd.s32 %s307, 1
      %p311 = scmp.eq.s32.totalorder %s32, 1
      %p312 = scmp.ne.s32.totalorder %s307, %s309
      %p313 = scmp.eq.s32.totalorder %s32, 0
      %p314 = por %p312, %p313
      %p315 = scmp.ne.s32.totalorder %s307, %s309
      %p316 = scmp.eq.s32.totalorder %s37, 1
      %p317 = por %p315, %p316
      %p318 = scmp.ne.s32.totalorder %s309, %s310
      %p319 = scmp.eq.s32.totalorder %s37, 0
      %p320 = por %p318, %p319
      %p321 = scmp.ne.s32.totalorder %s309, %s310
      %p322 = scmp.eq.s32.totalorder %s38, 1
      %p323 = por %p321, %p322
      %p325 = scmp.ne.s32.totalorder %s310, %s324
      %p326 = scmp.eq.s32.totalorder %s38, 0
      %p327 = por %p325, %p326
      %s329 = sadd.s32 %s328, 1
      %p332 = scmp.eq.s32.totalorder %s32, 1
      %p333 = scmp.ne.s32.totalorder %s328, %s330
      %p334 = scmp.eq.s32.totalorder %s32, 0
      %p335 = por %p333, %p334
      %p336 = scmp.ne.s32.totalorder %s328, %s330
      %p337 = scmp.eq.s32.totalorder %s37, 1
      %p338 = por %p336, %p337
      %p339 = scmp.ne.s32.totalorder %s330, %s331
      %p340 = scmp.eq.s32.totalorder %s37, 0
      %p341 = por %p339, %p340
      %p342 = scmp.ne.s32.totalorder %s330, %s331
      %p343 = scmp.eq.s32.totalorder %s38, 1
      %p344 = por %p342, %p343
      %p346 = scmp.ne.s32.totalorder %s331, %s345
      %p347 = scmp.eq.s32.totalorder %s38, 0
      %p348 = por %p346, %p347
      %s350 = sadd.s32 %s349, 1
      %p353 = scmp.eq.s32.totalorder %s32, 1
      %p354 = scmp.ne.s32.totalorder %s349, %s351
      %p355 = scmp.eq.s32.totalorder %s32, 0
      %p356 = por %p354, %p355
      %p357 = scmp.ne.s32.totalorder %s349, %s351
      %p358 = scmp.eq.s32.totalorder %s37, 1
      %p359 = por %p357, %p358
      %p360 = scmp.ne.s32.totalorder %s351, %s352
      %p361 = scmp.eq.s32.totalorder %s37, 0
      %p362 = por %p360, %p361
      %p363 = scmp.ne.s32.totalorder %s351, %s352
      %p364 = scmp.eq.s32.totalorder %s38, 1
      %p365 = por %p363, %p364
      %p367 = scmp.ne.s32.totalorder %s352, %s366
      %p368 = scmp.eq.s32.totalorder %s38, 0
      %p369 = por %p367, %p368
      %s371 = sadd.s32 %s370, 1
      %p374 = scmp.eq.s32.totalorder %s32, 1
      %p375 = scmp.ne.s32.totalorder %s370, %s372
      %p376 = scmp.eq.s32.totalorder %s32, 0
      %p377 = por %p375, %p376
      %p378 = scmp.ne.s32.totalorder %s370, %s372
      %p379 = scmp.eq.s32.totalorder %s37, 1
      %p380 = por %p378, %p379
      %p381 = scmp.ne.s32.totalorder %s372, %s373
      %p382 = scmp.eq.s32.totalorder %s37, 0
      %p383 = por %p381, %p382
      %p384 = scmp.ne.s32.totalorder %s372, %s373
      %p385 = scmp.eq.s32.totalorder %s38, 1
      %p386 = por %p384, %p385
      %p388 = scmp.ne.s32.totalorder %s373, %s387
      %p389 = scmp.eq.s32.totalorder %s38, 0
      %p390 = por %p388, %p389
      %s392 = sadd.s32 %s391, 1
      %p395 = scmp.eq.s32.totalorder %s32, 1
      %p396 = scmp.ne.s32.totalorder %s391, %s393
      %p397 = scmp.eq.s32.totalorder %s32, 0
      %p398 = por %p396, %p397
      %p399 = scmp.ne.s32.totalorder %s391, %s393
      %p400 = scmp.eq.s32.totalorder %s37, 1
      %p401 = por %p399, %p400
      %p402 = scmp.ne.s32.totalorder %s393, %s394
      %p403 = scmp.eq.s32.totalorder %s37, 0
      %p404 = por %p402, %p403
      %p405 = scmp.ne.s32.totalorder %s393, %s394
      %p406 = scmp.eq.s32.totalorder %s38, 1
      %p407 = por %p405, %p406
      %p409 = scmp.ne.s32.totalorder %s394, %s408
      %p410 = scmp.eq.s32.totalorder %s38, 0
      %p411 = por %p409, %p410
      %s413 = sadd.s32 %s412, 1
      %p416 = scmp.eq.s32.totalorder %s32, 1
      %p417 = scmp.ne.s32.totalorder %s412, %s414
      %p418 = scmp.eq.s32.totalorder %s32, 0
      %p419 = por %p417, %p418
      %p420 = scmp.ne.s32.totalorder %s412, %s414
      %p421 = scmp.eq.s32.totalorder %s37, 1
      %p422 = por %p420, %p421
      %p423 = scmp.ne.s32.totalorder %s414, %s415
      %p424 = scmp.eq.s32.totalorder %s37, 0
      %p425 = por %p423, %p424
      %p426 = scmp.ne.s32.totalorder %s414, %s415
      %p427 = scmp.eq.s32.totalorder %s38, 1
      %p428 = por %p426, %p427
      %p430 = scmp.ne.s32.totalorder %s415, %s429
      %p431 = scmp.eq.s32.totalorder %s38, 0
      %p432 = por %p430, %p431
      %s434 = sadd.s32 %s433, 1
      %p437 = scmp.eq.s32.totalorder %s32, 1
      %p438 = scmp.ne.s32.totalorder %s433, %s435
      %p439 = scmp.eq.s32.totalorder %s32, 0
      %p440 = por %p438, %p439
      %p441 = scmp.ne.s32.totalorder %s433, %s435
      %p442 = scmp.eq.s32.totalorder %s37, 1
      %p443 = por %p441, %p442
      %p444 = scmp.ne.s32.totalorder %s435, %s436
      %p445 = scmp.eq.s32.totalorder %s37, 0
      %p446 = por %p444, %p445
      %p447 = scmp.ne.s32.totalorder %s435, %s436
      %p448 = scmp.eq.s32.totalorder %s38, 1
      %p449 = por %p447, %p448
      %p451 = scmp.ne.s32.totalorder %s436, %s450
      %p452 = scmp.eq.s32.totalorder %s38, 0
      %p453 = por %p451, %p452
      %s455 = sadd.s32 %s454, 1
      %p458 = scmp.eq.s32.totalorder %s32, 1
      %p459 = scmp.ne.s32.totalorder %s454, %s456
      %p460 = scmp.eq.s32.totalorder %s32, 0
      %p461 = por %p459, %p460
      %p462 = scmp.ne.s32.totalorder %s454, %s456
      %p463 = scmp.eq.s32.totalorder %s37, 1
      %p464 = por %p462, %p463
      %p465 = scmp.ne.s32.totalorder %s456, %s457
      %p466 = scmp.eq.s32.totalorder %s37, 0
      %p467 = por %p465, %p466
      %p468 = scmp.ne.s32.totalorder %s456, %s457
      %p469 = scmp.eq.s32.totalorder %s38, 1
      %p470 = por %p468, %p469
      %p472 = scmp.ne.s32.totalorder %s457, %s471
      %p473 = scmp.eq.s32.totalorder %s38, 0
      %p474 = por %p472, %p473
      %s476 = sadd.s32 %s475, 1
      %p479 = scmp.eq.s32.totalorder %s32, 1
      %p480 = scmp.ne.s32.totalorder %s475, %s477
      %p481 = scmp.eq.s32.totalorder %s32, 0
      %p482 = por %p480, %p481
      %p483 = scmp.ne.s32.totalorder %s475, %s477
      %p484 = scmp.eq.s32.totalorder %s37, 1
      %p485 = por %p483, %p484
      %p486 = scmp.ne.s32.totalorder %s477, %s478
      %p487 = scmp.eq.s32.totalorder %s37, 0
      %p488 = por %p486, %p487
      %p489 = scmp.ne.s32.totalorder %s477, %s478
      %p490 = scmp.eq.s32.totalorder %s38, 1
      %p491 = por %p489, %p490
      %p493 = scmp.ne.s32.totalorder %s478, %s492
      %p494 = scmp.eq.s32.totalorder %s38, 0
      %p495 = por %p493, %p494
      %s496 = ssub.s32 %s32, %s39
      %p497 = scmp.eq.s32.totalorder %s496, 0
      %s499 = sadd.s32 %s498, 1
      %s500 = scalar_select %p497, %s498, %s499
      %p503 = pneg %p497
      %p504 = scmp.eq.s32.totalorder %s32, 1
      %p505 = por %p503, %p504
      %p506 = scmp.ne.s32.totalorder %s498, %s501
      %p507 = scmp.eq.s32.totalorder %s32, 0
      %p508 = por %p506, %p507
      %p509 = scmp.ne.s32.totalorder %s498, %s501
      %p510 = scmp.eq.s32.totalorder %s37, 1
      %p511 = por %p509, %p510
      %p512 = scmp.ne.s32.totalorder %s501, %s502
      %p513 = scmp.eq.s32.totalorder %s37, 0
      %p514 = por %p512, %p513
      %p515 = scmp.ne.s32.totalorder %s501, %s502
      %p516 = scmp.eq.s32.totalorder %s38, 1
      %p517 = por %p515, %p516
      %p519 = scmp.ne.s32.totalorder %s502, %s518
      %p520 = scmp.eq.s32.totalorder %s38, 0
      %p521 = por %p519, %p520
      %s522 = ssub.s32 %s32, %s39
      %p523 = scmp.eq.s32.totalorder %s522, 0
      %s525 = sadd.s32 %s524, 1
      %s526 = scalar_select %p523, %s524, %s525
      %p529 = pneg %p523
      %p530 = scmp.eq.s32.totalorder %s32, 1
      %p531 = por %p529, %p530
      %p532 = scmp.ne.s32.totalorder %s524, %s527
      %p533 = scmp.eq.s32.totalorder %s32, 0
      %p534 = por %p532, %p533
      %p535 = scmp.ne.s32.totalorder %s524, %s527
      %p536 = scmp.eq.s32.totalorder %s37, 1
      %p537 = por %p535, %p536
      %p538 = scmp.ne.s32.totalorder %s527, %s528
      %p539 = scmp.eq.s32.totalorder %s37, 0
      %p540 = por %p538, %p539
      %p541 = scmp.ne.s32.totalorder %s527, %s528
      %p542 = scmp.eq.s32.totalorder %s38, 1
      %p543 = por %p541, %p542
      %p545 = scmp.ne.s32.totalorder %s528, %s544
      %p546 = scmp.eq.s32.totalorder %s38, 0
      %p547 = por %p545, %p546
      %p548 = scmp.le.s32.totalorder 1, %s32
      %p549 = scmp.lt.s32.totalorder %s32, 3
      %p550 = pnand %p548, %p549
      %p551 = pneg %p550
      // Predicated region
      $region9: #{decoder_layer_forward.1} parent=5 // pred_check
        _
      $region10: #{decoder_layer_forward.1} parent=5 // pred_check_branch
        %553 = sbr.rel (%p550) target = $region12
      $region11: #{decoder_layer_forward.1} parent=5 // pred_region
        %s554 = ssub.s32 %s32, 1
        // Predicated region
        $region13: #{decoder_layer_forward.1} parent=11 // pred_check
          %p555 = pneg %p131
        $region14: #{decoder_layer_forward.1} parent=11 // pred_check_branch
          %557 = sbr.rel (%p555) target = $region16
        $region15: #{decoder_layer_forward.1} parent=11 // pred_region
          _
        $region16: #{decoder_layer_forward.1} parent=11 // pred_fallthru
          _
        // Predicated region
        $region17: #{decoder_layer_forward.1} parent=11 // pred_check
          %p558 = pneg %p152
        $region18: #{decoder_layer_forward.1} parent=11 // pred_check_branch
          %560 = sbr.rel (%p558) target = $region20
        $region19: #{decoder_layer_forward.1} parent=11 // pred_region
          _
        $region20: #{decoder_layer_forward.1} parent=11 // pred_fallthru
          _
        // Predicated region
        $region21: #{decoder_layer_forward.1} parent=11 // pred_check
          %p561 = pneg %p173
        $region22: #{decoder_layer_forward.1} parent=11 // pred_check_branch
          %563 = sbr.rel (%p561) target = $region24
        $region23: #{decoder_layer_forward.1} parent=11 // pred_region
          _
        $region24: #{decoder_layer_forward.1} parent=11 // pred_fallthru
          _
        // Predicated region
        $region25: #{decoder_layer_forward.1} parent=11 // pred_check
          %p564 = pneg %p194
        $region26: #{decoder_layer_forward.1} parent=11 // pred_check_branch
          %566 = sbr.rel (%p564) target = $region28
        $region27: #{decoder_layer_forward.1} parent=11 // pred_region
          _
        $region28: #{decoder_layer_forward.1} parent=11 // pred_fallthru
          _
        // Predicated region
        $region29: #{decoder_layer_forward.1} parent=11 // pred_check
          %p567 = pneg %p215
        $region30: #{decoder_layer_forward.1} parent=11 // pred_check_branch
          %569 = sbr.rel (%p567) target = $region32
        $region31: #{decoder_layer_forward.1} parent=11 // pred_region
          _
        $region32: #{decoder_layer_forward.1} parent=11 // pred_fallthru
          _
        // Predicated region
        $region33: #{decoder_layer_forward.1} parent=11 // pred_check
          %p570 = pneg %p236
        $region34: #{decoder_layer_forward.1} parent=11 // pred_check_branch
          %572 = sbr.rel (%p570) target = $region36
        $region35: #{decoder_layer_forward.1} parent=11 // pred_region
          _
        $region36: #{decoder_layer_forward.1} parent=11 // pred_fallthru
          _
        // Predicated region
        $region37: #{decoder_layer_forward.1} parent=11 // pred_check
          %p573 = pneg %p257
        $region38: #{decoder_layer_forward.1} parent=11 // pred_check_branch
          %575 = sbr.rel (%p573) target = $region40
        $region39: #{decoder_layer_forward.1} parent=11 // pred_region
          _
        $region40: #{decoder_layer_forward.1} parent=11 // pred_fallthru
          _
        // Predicated region
        $region41: #{decoder_layer_forward.1} parent=11 // pred_check
          %p576 = pneg %p278
        $region42: #{decoder_layer_forward.1} parent=11 // pred_check_branch
          %578 = sbr.rel (%p576) target = $region44
        $region43: #{decoder_layer_forward.1} parent=11 // pred_region
          _
        $region44: #{decoder_layer_forward.1} parent=11 // pred_fallthru
          _
        // Predicated region
        $region45: #{decoder_layer_forward.1} parent=11 // pred_check
          %p579 = pneg %p299
        $region46: #{decoder_layer_forward.1} parent=11 // pred_check_branch
          %581 = sbr.rel (%p579) target = $region48
        $region47: #{decoder_layer_forward.1} parent=11 // pred_region
          _
        $region48: #{decoder_layer_forward.1} parent=11 // pred_fallthru
          _
        // Predicated region
        $region49: #{decoder_layer_forward.1} parent=11 // pred_check
          %p582 = pneg %p320
        $region50: #{decoder_layer_forward.1} parent=11 // pred_check_branch
          %584 = sbr.rel (%p582) target = $region52
        $region51: #{decoder_layer_forward.1} parent=11 // pred_region
          _
        $region52: #{decoder_layer_forward.1} parent=11 // pred_fallthru
          _
        // Predicated region
        $region53: #{decoder_layer_forward.1} parent=11 // pred_check
          %p585 = pneg %p341
        $region54: #{decoder_layer_forward.1} parent=11 // pred_check_branch
          %587 = sbr.rel (%p585) target = $region56
        $region55: #{decoder_layer_forward.1} parent=11 // pred_region
          _
        $region56: #{decoder_layer_forward.1} parent=11 // pred_fallthru
          _
        // Predicated region
        $region57: #{decoder_layer_forward.1} parent=11 // pred_check
          %p588 = pneg %p362
        $region58: #{decoder_layer_forward.1} parent=11 // pred_check_branch
          %590 = sbr.rel (%p588) target = $region60
        $region59: #{decoder_layer_forward.1} parent=11 // pred_region
          _
        $region60: #{decoder_layer_forward.1} parent=11 // pred_fallthru
          _
        // Predicated region
        $region61: #{decoder_layer_forward.1} parent=11 // pred_check
          %p591 = pneg %p383
        $region62: #{decoder_layer_forward.1} parent=11 // pred_check_branch
          %593 = sbr.rel (%p591) target = $region64
        $region63: #{decoder_layer_forward.1} parent=11 // pred_region
          _
        $region64: #{decoder_layer_forward.1} parent=11 // pred_fallthru
          _
        // Predicated region
        $region65: #{decoder_layer_forward.1} parent=11 // pred_check
          %p594 = pneg %p404
        $region66: #{decoder_layer_forward.1} parent=11 // pred_check_branch
          %596 = sbr.rel (%p594) target = $region68
        $region67: #{decoder_layer_forward.1} parent=11 // pred_region
          _
        $region68: #{decoder_layer_forward.1} parent=11 // pred_fallthru
          _
        // Predicated region
        $region69: #{decoder_layer_forward.1} parent=11 // pred_check
          %p597 = pneg %p425
        $region70: #{decoder_layer_forward.1} parent=11 // pred_check_branch
          %599 = sbr.rel (%p597) target = $region72
        $region71: #{decoder_layer_forward.1} parent=11 // pred_region
          _
        $region72: #{decoder_layer_forward.1} parent=11 // pred_fallthru
          _
        // Predicated region
        $region73: #{decoder_layer_forward.1} parent=11 // pred_check
          %p600 = pneg %p446
        $region74: #{decoder_layer_forward.1} parent=11 // pred_check_branch
          %602 = sbr.rel (%p600) target = $region76
        $region75: #{decoder_layer_forward.1} parent=11 // pred_region
          _
        $region76: #{decoder_layer_forward.1} parent=11 // pred_fallthru
          _
        // Predicated region
        $region77: #{decoder_layer_forward.1} parent=11 // pred_check
          %p603 = pneg %p467
        $region78: #{decoder_layer_forward.1} parent=11 // pred_check_branch
          %605 = sbr.rel (%p603) target = $region80
        $region79: #{decoder_layer_forward.1} parent=11 // pred_region
          _
        $region80: #{decoder_layer_forward.1} parent=11 // pred_fallthru
          _
        // Predicated region
        $region81: #{decoder_layer_forward.1} parent=11 // pred_check
          %p606 = pneg %p488
        $region82: #{decoder_layer_forward.1} parent=11 // pred_check_branch
          %608 = sbr.rel (%p606) target = $region84
        $region83: #{decoder_layer_forward.1} parent=11 // pred_region
          _
        $region84: #{decoder_layer_forward.1} parent=11 // pred_fallthru
          _
      $region12: #{decoder_layer_forward.1} parent=5 // pred_fallthru
        _
      %p609 = scmp.lt.s32.totalorder %s32, 2
      // Predicated region
      $region85: #{decoder_layer_forward.1} parent=5 // pred_check
        %p610 = pneg %p609
      $region86: #{decoder_layer_forward.1} parent=5 // pred_check_branch
        %612 = sbr.rel (%p610) target = $region88
      $region87: #{decoder_layer_forward.1} parent=5 // pred_region
        // Predicated region
        $region89: #{decoder_layer_forward.1} parent=87 // pred_check
          %p613 = pneg %p52
        $region90: #{decoder_layer_forward.1} parent=87 // pred_check_branch
          %615 = sbr.rel (%p613) target = $region92
        $region91: #{decoder_layer_forward.1} parent=87 // pred_region
          %p616 = scmp.lt.s32.totalorder %s32, 1
          %s617 = scalar_select %p616, %s32, 1
          %s618 = smul.addr %s617, 2
          %s619 = smul.addr %s618, 8
          %s620 = scalar_lea.vmem %s0, %s619
        $region92: #{decoder_layer_forward.1} parent=87 // pred_fallthru
          _
        // Predicated region
        $region93: #{decoder_layer_forward.1} parent=87 // pred_check
          %p621 = pneg %p78
        $region94: #{decoder_layer_forward.1} parent=87 // pred_check_branch
          %623 = sbr.rel (%p621) target = $region96
        $region95: #{decoder_layer_forward.1} parent=87 // pred_region
          %p624 = scmp.lt.s32.totalorder %s32, 1
          %s625 = scalar_select %p624, %s32, 1
          %s626 = smul.addr %s625, 2
          %s627 = smul.addr %s626, 8
          %s628 = scalar_lea.vmem %s1, %s627
        $region96: #{decoder_layer_forward.1} parent=87 // pred_fallthru
          _
        // Predicated region
        $region97: #{decoder_layer_forward.1} parent=87 // pred_check
          %p629 = pneg %p104
        $region98: #{decoder_layer_forward.1} parent=87 // pred_check_branch
          %631 = sbr.rel (%p629) target = $region100
        $region99: #{decoder_layer_forward.1} parent=87 // pred_region
          %p632 = scmp.lt.s32.totalorder %s32, 1
          %s633 = scalar_select %p632, %s32, 1
          %s634 = smul.addr %s633, 2
          %s635 = smul.addr %s634, 8
          %s636 = scalar_lea.vmem %s2, %s635
        $region100: #{decoder_layer_forward.1} parent=87 // pred_fallthru
          _
      $region88: #{decoder_layer_forward.1} parent=5 // pred_fallthru
        _
      %p637 = scmp.le.s32.totalorder 1, %s32
      %p638 = scmp.lt.s32.totalorder %s32, 3
      %p639 = pnand %p637, %p638
      %p640 = pneg %p639
      // Predicated region
      $region101: #{decoder_layer_forward.1} parent=5 // pred_check
        _
      $region102: #{decoder_layer_forward.1} parent=5 // pred_check_branch
        %642 = sbr.rel (%p639) target = $region104
      $region103: #{decoder_layer_forward.1} parent=5 // pred_region
        %s643 = ssub.s32 %s32, 1
        %p644 = scmp.lt.s32.totalorder %s37, 1
        %s645 = scalar_select %p644, %s37, 1
        %s646 = smul.addr %s645, 2
        %s647 = smul.addr %s646, 8
        %s648 = scalar_lea.vmem %s0, %s647
        %p649 = pneg %p58
        %p650 = pneg %p55
        %p651 = scmp.lt.s32.totalorder %s37, 1
        %s652 = scalar_select %p651, %s37, 1
        %s653 = smul.addr %s652, 2
        %s654 = smul.addr %s653, 8
        %s655 = scalar_lea.vmem %s1, %s654
        %p656 = pneg %p84
        %p657 = pneg %p81
        %p658 = scmp.lt.s32.totalorder %s37, 1
        %s659 = scalar_select %p658, %s37, 1
        %s660 = smul.addr %s659, 2
        %s661 = smul.addr %s660, 8
        %s662 = scalar_lea.vmem %s2, %s661
        %p663 = pneg %p110
        %p664 = pneg %p107
        %p665 = pneg %p131
        %p666 = pneg %p128
        %p667 = pneg %p152
        %p668 = pneg %p149
        %p669 = pneg %p173
        %p670 = pneg %p170
        %p671 = pneg %p194
        %p672 = pneg %p191
        %p673 = pneg %p215
        %p674 = pneg %p212
        %p675 = pneg %p236
        %p676 = pneg %p233
        %p677 = pneg %p257
        %p678 = pneg %p254
        %p679 = pneg %p278
        %p680 = pneg %p275
        %p681 = pneg %p299
        %p682 = pneg %p296
        %p683 = pneg %p320
        %p684 = pneg %p317
        %p685 = pneg %p341
        %p686 = pneg %p338
        %p687 = pneg %p362
        %p688 = pneg %p359
        %p689 = pneg %p383
        %p690 = pneg %p380
        %p691 = pneg %p404
        %p692 = pneg %p401
        %p693 = pneg %p425
        %p694 = pneg %p422
        %p695 = pneg %p446
        %p696 = pneg %p443
        %p697 = pneg %p467
        %p698 = pneg %p464
        %p699 = pneg %p488
        %p700 = pneg %p485
        %p701 = pneg %p514
        %p702 = pneg %p511
        %s703 = sand.u32 %s501, 1
        %s704 = scalar_lea.sflag [#allocation4], %s703
        %s705 = sand.u32 %s501, 1
        %s706 = smul.addr %s705, 16
        %s707 = scalar_lea.vmem [#allocation3], %s706
        %p708 = pneg %p540
        %p709 = pneg %p537
        %p710 = scmp.lt.s32.totalorder %s37, 1
        %s711 = scalar_select %p710, %s37, 1
        %s712 = smul.addr %s711, 2
        %s713 = smul.addr %s712, 8
        %s714 = scalar_lea.vmem %s22, %s713
        %p715 = scmp.lt.s32.totalorder %s37, 1
        %s716 = scalar_select %p715, %s37, 1
        %s717 = smul.addr %s716, 2
        %s718 = smul.addr %s717, 8
        %s719 = scalar_lea.vmem %s0, %s718
        %p720 = scmp.lt.s32.totalorder %s37, 1
        %s721 = scalar_select %p720, %s37, 1
        %s722 = smul.addr %s721, 2
        %s723 = smul.addr %s722, 8
        %s724 = scalar_lea.vmem %s1, %s723
        %p725 = scmp.lt.s32.totalorder %s37, 1
        %s726 = scalar_select %p725, %s37, 1
        %s727 = smul.addr %s726, 2
        %s728 = smul.addr %s727, 8
        %s729 = scalar_lea.vmem %s2, %s728
        %p730 = scmp.lt.s32.totalorder %s37, 1
        %s731 = scalar_select %p730, %s37, 1
        %s732 = smul.addr %s731, 2
        %s733 = smul.addr %s732, 8
        %s734 = scalar_lea.vmem %s22, %s733
        %v736 = vld [vmem:[%s719] sm:$0xff]
        %v737 = vld [vmem:[%s719 + $0x8] sm:$0xff]
        %vm738 = vcmask 261120
        %v739 = vsel %vm738, %v736, 0.0
        %740 = vadd.xlane.f32.xlu0 %v739
        %v741 = vpop.xlane.xlu0 %740
        %v742 = vsel %vm738, %v737, 0.0
        %743 = vadd.xlane.f32.xlu0 %v742
        %v744 = vpop.xlane.xlu0 %743
        %v745 = vrcp.pop 32.0
        %v746 = vmul.f32 %v741, %v745
        %v747 = vmul.f32 %v744, %v745
        %v748 = vsub.f32 %v736, %v746
        %v749 = vsub.f32 %v737, %v747
        %v750 = vmul.f32 %v748, %v748
        %v751 = vmul.f32 %v749, %v749
        %v752 = vsel %vm738, %v750, 0.0
        %753 = vadd.xlane.f32.xlu0 %v752
        %v754 = vpop.xlane.xlu0 %753
        %v755 = vsel %vm738, %v751, 0.0
        %756 = vadd.xlane.f32.xlu0 %v755
        %v757 = vpop.xlane.xlu0 %756
        %v758 = vmul.f32 %v754, %v745
        %v759 = vmul.f32 %v757, %v745
        %v760 = vadd.f32 %v758, 1e-05
        %v761 = vadd.f32 %v759, 1e-05
        %v762 = vrsqrt.pop %v760
        %v763 = vrsqrt.pop %v761
        %v764 = vmul.f32 %v748, %v762
        %v765 = vmul.f32 %v749, %v763
        %v766 = vld [vmem:[%s4] sm:$0x1]
        %v768 = vlaneseq
        %v769 = vshrl.u32 %v768, 7
        %v770 = vsub.s32 0, %v769
        %v771 = vrot.slane %v766, %v770
        %v773 = vmul.f32 %v764, %v771
        %v774 = vmul.f32 %v765, %v771
        %v775 = vld [vmem:[%s5] sm:$0x1]
        %v777 = vlaneseq
        %v778 = vshrl.u32 %v777, 7
        %v779 = vsub.s32 0, %v778
        %v780 = vrot.slane %v775, %v779
        %v782 = vadd.f32 %v773, %v780
        %v783 = vadd.f32 %v774, %v780
        %v784 = vld [vmem:[%s3] sm:$0xff]
        %v785 = vld [vmem:[%s3 + $0x8] sm:$0xff]
        %v786 = vld [vmem:[%s6] sm:$0xf]
        %v787 = vld [vmem:[%s6 + $0x4] sm:$0xf]
        %v788 = vld [vmem:[%s6 + $0x8] sm:$0xf]
        %v789 = vld [vmem:[%s6 + $0xc] sm:$0xf]
        %v790 = vld [vmem:[%s7] sm:$0x1]
        %v791 = vpack.c.bf16 %v783, %v782
        %v793 = vlaneseq
        %v794 = vshrl.u32 %v793, 7
        %v795 = vsub.s32 0, %v794
        %v796 = vrot.slane %v790, %v795
        %v802 = vunpack.c.l.b16 %v786
        %v803 = vunpack.c.l.b16 %v787
        %v804 = vunpack.c.l.b16 %v788
        %v805 = vunpack.c.l.b16 %v789
        %v806 = vpack.c.b16 %v803, %v802
        %v807 = vpack.c.b16 %v805, %v804
        %v811 = vsel %vm738, %v791, 0
        %813 = vmatprep.subr.bf16.mxu0 0
        %814 = vmatpush1.bf16.msra.mxu0 0
        %815 = vmatprep.subr.bf16.mxu0 0
        %816 = vmatpush1.bf16.msra.mxu0 0
        %817 = vmatprep.subr.bf16.mxu0 0
        %818 = vmatpush1.bf16.msra.mxu0 0
        %819 = vmatprep.subr.bf16.mxu0 0
        %820 = vmatpush1.bf16.msra.mxu0 0
        %821 = vmatprep.subr.bf16.mxu0 0
        %822 = vmatpush1.bf16.msra.mxu0 0
        %823 = vmatprep.subr.bf16.mxu0 0
        %824 = vmatpush1.bf16.msra.mxu0 0
        %825 = vmatprep.subr.bf16.mxu0 0
        %826 = vmatpush1.bf16.msra.mxu0 %v807
        %827 = vmatprep.subr.bf16.mxu0 0
        %828 = vmatpush1.bf16.msra.mxu0 %v806
        %829 = vmatprep.subr.bf16.mxu0 0
        %830 = vmatpush2.bf16.msra.mxu0 0
        %831 = vmatprep.subr.bf16.mxu0 0
        %832 = vmatpush2.bf16.msra.mxu0 0
        %833 = vmatprep.subr.bf16.mxu0 0
        %834 = vmatpush2.bf16.msra.mxu0 0
        %835 = vmatprep.subr.bf16.mxu0 0
        %836 = vmatpush2.bf16.msra.mxu0 0
        %837 = vmatprep.subr.bf16.mxu0 0
        %838 = vmatpush2.bf16.msra.mxu0 0
        %839 = vmatprep.subr.bf16.mxu0 0
        %840 = vmatpush2.bf16.msra.mxu0 0
        %841 = vmatprep.subr.bf16.mxu0 0
        %842 = vmatpush2.bf16.msra.mxu0 0
        %843 = vmatprep.subr.bf16.mxu0 0
        %844 = vmatpush2.bf16.msra.mxu0 0
        %845 = vmatprep.mubr.bf16.mxu0 0
        %846 = vmatmul.mubr.bf16.gmra.mxu0 %v811
        %v847 = vpop.f32.mrf.mxu0
        %v848 = vadd.f32 %v796, %v847
        %v849 = vpop.f32.mrf.mxu0
        %v850 = vpop.f32.mrf.mxu0
        %v851 = vadd.f32 %v796, %v850
        %v852 = vpop.f32.mrf.mxu0
        %853 = vdwg.mxu0
        %v854 = vpack.c.bf16 %v851, %v848
        %856 = vrot.lane.b32.xlu0 %v854, 96
        %v857 = vpop.permute.xlu0 %856
        %vm858 = vcmask 64512
        %v860 = vsel %vm858, %v854, 0
        %v863 = vsel %vm858, %v857, 0
        %865 = vmatprep.subr.bf16.mxu0 0
        %866 = vmatpush1.bf16.xpose.msra.mxu0 0
        %867 = vmatprep.subr.bf16.mxu0 0
        %868 = vmatpush1.bf16.xpose.msra.mxu0 0
        %869 = vmatprep.subr.bf16.mxu0 0
        %870 = vmatpush1.bf16.xpose.msra.mxu0 0
        %871 = vmatprep.subr.bf16.mxu0 0
        %872 = vmatpush1.bf16.xpose.msra.mxu0 0
        %873 = vmatprep.subr.bf16.mxu0 0
        %874 = vmatpush1.bf16.xpose.msra.mxu0 0
        %875 = vmatprep.subr.bf16.mxu0 0
        %876 = vmatpush1.bf16.xpose.msra.mxu0 0
        %877 = vmatprep.subr.bf16.mxu0 0
        %878 = vmatpush1.bf16.xpose.msra.mxu0 0
        %879 = vmatprep.subr.bf16.mxu0 0
        %880 = vmatpush1.bf16.xpose.msra.mxu0 %v863
        %881 = vmatprep.subr.bf16.mxu0 0
        %882 = vmatpush2.bf16.xpose.msra.mxu0 0
        %883 = vmatprep.subr.bf16.mxu0 0
        %884 = vmatpush2.bf16.xpose.msra.mxu0 0
        %885 = vmatprep.subr.bf16.mxu0 0
        %886 = vmatpush2.bf16.xpose.msra.mxu0 0
        %887 = vmatprep.subr.bf16.mxu0 0
        %888 = vmatpush2.bf16.xpose.msra.mxu0 0
        %889 = vmatprep.subr.bf16.mxu0 0
        %890 = vmatpush2.bf16.xpose.msra.mxu0 0
        %891 = vmatprep.subr.bf16.mxu0 0
        %892 = vmatpush2.bf16.xpose.msra.mxu0 0
        %893 = vmatprep.subr.bf16.mxu0 0
        %894 = vmatpush2.bf16.xpose.msra.mxu0 0
        %895 = vmatprep.subr.bf16.mxu0 0
        %896 = vmatpush2.bf16.xpose.msra.mxu0 0
        %897 = vmatprep.mubr.bf16.mxu0 0
        %898 = vmatmul.mubr.bf16.gmra.mxu0 %v860
        %v899 = vpop.f32.mrf.mxu0
        %v900 = vadd.f32 0.0, %v899
        %v901 = vpop.f32.mrf.mxu0
        %v902 = vpop.f32.mrf.mxu0
        %v903 = vadd.f32 0.0, %v902
        %v904 = vpop.f32.mrf.mxu0
        %905 = vdwg.mxu0
        %v906 = vmul.f32 %v900, 0.17677669
        %v907 = vmul.f32 %v903, 0.17677669
        %vm908 = vcmask 130048
        %v909 = vsel %vm908, %v906, -inf
        %910 = vmax.xlane.f32.xlu0 %v909
        %v911 = vpop.xlane.xlu0 %910
        %v912 = vsel %vm908, %v907, -inf
        %913 = vmax.xlane.f32.xlu0 %v912
        %v914 = vpop.xlane.xlu0 %913
        %v915 = vsub.f32 %v906, %v911
        %v916 = vsub.f32 %v907, %v914
        %v917 = vmul.f32 %v915, 1.442695
        %v918 = vpow.pop %v917
        %v919 = vmul.f32 %v916, 1.442695
        %v920 = vpow.pop %v919
        %v921 = vsel %vm908, %v918, 0.0
        %922 = vadd.xlane.f32.xlu0 %v921
        %v923 = vpop.xlane.xlu0 %922
        %v924 = vsel %vm908, %v920, 0.0
        %925 = vadd.xlane.f32.xlu0 %v924
        %v926 = vpop.xlane.xlu0 %925
        %v927 = vrcp.pop %v923
        %v928 = vrcp.pop %v926
        %v929 = vmul.f32 %v918, %v927
        %v930 = vmul.f32 %v920, %v928
        %v931 = vpack.c.bf16 %v930, %v929
        %932 = vrot.lane.b32.xlu0 %v854, 64
        %v933 = vpop.permute.xlu0 %932
        %v936 = vsel %vm908, %v931, 0
        %938 = vmatprep.subr.bf16.mxu0 0
        %939 = vmatpush1.bf16.msra.mxu0 0
        %940 = vmatprep.subr.bf16.mxu0 0
        %941 = vmatpush1.bf16.msra.mxu0 0
        %942 = vmatprep.subr.bf16.mxu0 0
        %943 = vmatpush1.bf16.msra.mxu0 0
        %944 = vmatprep.subr.bf16.mxu0 0
        %945 = vmatpush1.bf16.msra.mxu0 0
        %946 = vmatprep.subr.bf16.mxu0 0
        %947 = vmatpush1.bf16.msra.mxu0 0
        %948 = vmatprep.subr.bf16.mxu0 0
        %949 = vmatpush1.bf16.msra.mxu0 0
        %950 = vmatprep.subr.bf16.mxu0 0
        %951 = vmatpush1.bf16.msra.mxu0 0
        %952 = vmatprep.subr.bf16.mxu0 0
        %953 = vmatpush1.bf16.msra.mxu0 %v933
        %954 = vmatprep.subr.bf16.mxu0 0
        %955 = vmatpush2.bf16.msra.mxu0 0
        %956 = vmatprep.subr.bf16.mxu0 0
        %957 = vmatpush2.bf16.msra.mxu0 0
        %958 = vmatprep.subr.bf16.mxu0 0
        %959 = vmatpush2.bf16.msra.mxu0 0
        %960 = vmatprep.subr.bf16.mxu0 0
        %961 = vmatpush2.bf16.msra.mxu0 0
        %962 = vmatprep.subr.bf16.mxu0 0
        %963 = vmatpush2.bf16.msra.mxu0 0
        %964 = vmatprep.subr.bf16.mxu0 0
        %965 = vmatpush2.bf16.msra.mxu0 0
        %966 = vmatprep.subr.bf16.mxu0 0
        %967 = vmatpush2.bf16.msra.mxu0 0
        %968 = vmatprep.subr.bf16.mxu0 0
        %969 = vmatpush2.bf16.msra.mxu0 0
        %970 = vmatprep.mubr.bf16.mxu0 0
        %971 = vmatmul.mubr.bf16.gmra.mxu0 %v936
        %v972 = vpop.f32.mrf.mxu0
        %v973 = vadd.f32 0.0, %v972
        %v974 = vpop.f32.mrf.mxu0
        %v975 = vpop.f32.mrf.mxu0
        %v976 = vadd.f32 0.0, %v975
        %v977 = vpop.f32.mrf.mxu0
        %978 = vdwg.mxu0
        %979 = vst.msk [vmem:[#allocation2] sm:$0xff] %vm858, %v973
        %980 = vst.msk [vmem:[#allocation2 + $0x8] sm:$0xff] %vm858, %v976
        %981 = vrot.lane.b32.xlu0 %v854, 120
        %v982 = vpop.permute.xlu0 %981
        %983 = vrot.lane.b32.xlu0 %v854, 88
        %v984 = vpop.permute.xlu0 %983
        %v986 = vsel %vm858, %v982, 0
        %v989 = vsel %vm858, %v984, 0
        %991 = vmatprep.subr.bf16.mxu0 0
        %992 = vmatpush1.bf16.xpose.msra.mxu0 0
        %993 = vmatprep.subr.bf16.mxu0 0
        %994 = vmatpush1.bf16.xpose.msra.mxu0 0
        %995 = vmatprep.subr.bf16.mxu0 0
        %996 = vmatpush1.bf16.xpose.msra.mxu0 0
        %997 = vmatprep.subr.bf16.mxu0 0
        %998 = vmatpush1.bf16.xpose.msra.mxu0 0
        %999 = vmatprep.subr.bf16.mxu0 0
        %1000 = vmatpush1.bf16.xpose.msra.mxu0 0
        %1001 = vmatprep.subr.bf16.mxu0 0
        %1002 = vmatpush1.bf16.xpose.msra.mxu0 0
        %1003 = vmatprep.subr.bf16.mxu0 0
        %1004 = vmatpush1.bf16.xpose.msra.mxu0 0
        %1005 = vmatprep.subr.bf16.mxu0 0
        %1006 = vmatpush1.bf16.xpose.msra.mxu0 %v989
        %1007 = vmatprep.subr.bf16.mxu0 0
        %1008 = vmatpush2.bf16.xpose.msra.mxu0 0
        %1009 = vmatprep.subr.bf16.mxu0 0
        %1010 = vmatpush2.bf16.xpose.msra.mxu0 0
        %1011 = vmatprep.subr.bf16.mxu0 0
        %1012 = vmatpush2.bf16.xpose.msra.mxu0 0
        %1013 = vmatprep.subr.bf16.mxu0 0
        %1014 = vmatpush2.bf16.xpose.msra.mxu0 0
        %1015 = vmatprep.subr.bf16.mxu0 0
        %1016 = vmatpush2.bf16.xpose.msra.mxu0 0
        %1017 = vmatprep.subr.bf16.mxu0 0
        %1018 = vmatpush2.bf16.xpose.msra.mxu0 0
        %1019 = vmatprep.subr.bf16.mxu0 0
        %1020 = vmatpush2.bf16.xpose.msra.mxu0 0
        %1021 = vmatprep.subr.bf16.mxu0 0
        %1022 = vmatpush2.bf16.xpose.msra.mxu0 0
        %1023 = vmatprep.mubr.bf16.mxu0 0
        %1024 = vmatmul.mubr.bf16.gmra.mxu0 %v986
        %v1025 = vpop.f32.mrf.mxu0
        %v1026 = vadd.f32 0.0, %v1025
        %v1027 = vpop.f32.mrf.mxu0
        %v1028 = vpop.f32.mrf.mxu0
        %v1029 = vadd.f32 0.0, %v1028
        %v1030 = vpop.f32.mrf.mxu0
        %1031 = vdwg.mxu0
        %v1032 = vmul.f32 %v1026, 0.17677669
        %v1033 = vmul.f32 %v1029, 0.17677669
        %v1034 = vsel %vm908, %v1032, -inf
        %1035 = vmax.xlane.f32.xlu0 %v1034
        %v1036 = vpop.xlane.xlu0 %1035
        %v1037 = vsel %vm908, %v1033, -inf
        %1038 = vmax.xlane.f32.xlu0 %v1037
        %v1039 = vpop.xlane.xlu0 %1038
        %v1040 = vsub.f32 %v1032, %v1036
        %v1041 = vsub.f32 %v1033, %v1039
        %v1042 = vmul.f32 %v1040, 1.442695
        %v1043 = vpow.pop %v1042
        %v1044 = vmul.f32 %v1041, 1.442695
        %v1045 = vpow.pop %v1044
        %v1046 = vsel %vm908, %v1043, 0.0
        %1047 = vadd.xlane.f32.xlu0 %v1046
        %v1048 = vpop.xlane.xlu0 %1047
        %v1049 = vsel %vm908, %v1045, 0.0
        %1050 = vadd.xlane.f32.xlu0 %v1049
        %v1051 = vpop.xlane.xlu0 %1050
        %v1052 = vrcp.pop %v1048
        %v1053 = vrcp.pop %v1051
        %v1054 = vmul.f32 %v1043, %v1052
        %v1055 = vmul.f32 %v1045, %v1053
        %v1056 = vpack.c.bf16 %v1055, %v1054
        %1057 = vrot.lane.b32.xlu0 %v854, 56
        %v1058 = vpop.permute.xlu0 %1057
        %v1061 = vsel %vm908, %v1056, 0
        %1063 = vmatprep.subr.bf16.mxu0 0
        %1064 = vmatpush1.bf16.msra.mxu0 0
        %1065 = vmatprep.subr.bf16.mxu0 0
        %1066 = vmatpush1.bf16.msra.mxu0 0
        %1067 = vmatprep.subr.bf16.mxu0 0
        %1068 = vmatpush1.bf16.msra.mxu0 0
        %1069 = vmatprep.subr.bf16.mxu0 0
        %1070 = vmatpush1.bf16.msra.mxu0 0
        %1071 = vmatprep.subr.bf16.mxu0 0
        %1072 = vmatpush1.bf16.msra.mxu0 0
        %1073 = vmatprep.subr.bf16.mxu0 0
        %1074 = vmatpush1.bf16.msra.mxu0 0
        %1075 = vmatprep.subr.bf16.mxu0 0
        %1076 = vmatpush1.bf16.msra.mxu0 0
        %1077 = vmatprep.subr.bf16.mxu0 0
        %1078 = vmatpush1.bf16.msra.mxu0 %v1058
        %1079 = vmatprep.subr.bf16.mxu0 0
        %1080 = vmatpush2.bf16.msra.mxu0 0
        %1081 = vmatprep.subr.bf16.mxu0 0
        %1082 = vmatpush2.bf16.msra.mxu0 0
        %1083 = vmatprep.subr.bf16.mxu0 0
        %1084 = vmatpush2.bf16.msra.mxu0 0
        %1085 = vmatprep.subr.bf16.mxu0 0
        %1086 = vmatpush2.bf16.msra.mxu0 0
        %1087 = vmatprep.subr.bf16.mxu0 0
        %1088 = vmatpush2.bf16.msra.mxu0 0
        %1089 = vmatprep.subr.bf16.mxu0 0
        %1090 = vmatpush2.bf16.msra.mxu0 0
        %1091 = vmatprep.subr.bf16.mxu0 0
        %1092 = vmatpush2.bf16.msra.mxu0 0
        %1093 = vmatprep.subr.bf16.mxu0 0
        %1094 = vmatpush2.bf16.msra.mxu0 0
        %1095 = vmatprep.mubr.bf16.mxu0 0
        %1096 = vmatmul.mubr.bf16.gmra.mxu0 %v1061
        %v1097 = vpop.f32.mrf.mxu0
        %v1098 = vadd.f32 0.0, %v1097
        %v1099 = vpop.f32.mrf.mxu0
        %v1100 = vpop.f32.mrf.mxu0
        %v1101 = vadd.f32 0.0, %v1100
        %v1102 = vpop.f32.mrf.mxu0
        %1103 = vdwg.mxu0
        %1106 = vrot.lane.b32.xlu0 %v1098, 8
        %v1107 = vpop.permute.xlu0 %1106
        %1108 = vrot.lane.b32.xlu0 %v1101, 8
        %v1109 = vpop.permute.xlu0 %1108
        %vm1112 = vcmask 130112
        %1113 = vst.msk [vmem:[#allocation2] sm:$0xff] %vm1112, %v1107
        %1114 = vst.msk [vmem:[#allocation2 + $0x8] sm:$0xff] %vm1112, %v1109
        %1115 = vrot.lane.b32.xlu0 %v854, 112
        %v1116 = vpop.permute.xlu0 %1115
        %1117 = vrot.lane.b32.xlu0 %v854, 80
        %v1118 = vpop.permute.xlu0 %1117
        %v1120 = vsel %vm858, %v1116, 0
        %v1123 = vsel %vm858, %v1118, 0
        %1125 = vmatprep.subr.bf16.mxu0 0
        %1126 = vmatpush1.bf16.xpose.msra.mxu0 0
        %1127 = vmatprep.subr.bf16.mxu0 0
        %1128 = vmatpush1.bf16.xpose.msra.mxu0 0
        %1129 = vmatprep.subr.bf16.mxu0 0
        %1130 = vmatpush1.bf16.xpose.msra.mxu0 0
        %1131 = vmatprep.subr.bf16.mxu0 0
        %1132 = vmatpush1.bf16.xpose.msra.mxu0 0
        %1133 = vmatprep.subr.bf16.mxu0 0
        %1134 = vmatpush1.bf16.xpose.msra.mxu0 0
        %1135 = vmatprep.subr.bf16.mxu0 0
        %1136 = vmatpush1.bf16.xpose.msra.mxu0 0
        %1137 = vmatprep.subr.bf16.mxu0 0
        %1138 = vmatpush1.bf16.xpose.msra.mxu0 0
        %1139 = vmatprep.subr.bf16.mxu0 0
        %1140 = vmatpush1.bf16.xpose.msra.mxu0 %v1123
        %1141 = vmatprep.subr.bf16.mxu0 0
        %1142 = vmatpush2.bf16.xpose.msra.mxu0 0
        %1143 = vmatprep.subr.bf16.mxu0 0
        %1144 = vmatpush2.bf16.xpose.msra.mxu0 0
        %1145 = vmatprep.subr.bf16.mxu0 0
        %1146 = vmatpush2.bf16.xpose.msra.mxu0 0
        %1147 = vmatprep.subr.bf16.mxu0 0
        %1148 = vmatpush2.bf16.xpose.msra.mxu0 0
        %1149 = vmatprep.subr.bf16.mxu0 0
        %1150 = vmatpush2.bf16.xpose.msra.mxu0 0
        %1151 = vmatprep.subr.bf16.mxu0 0
        %1152 = vmatpush2.bf16.xpose.msra.mxu0 0
        %1153 = vmatprep.subr.bf16.mxu0 0
        %1154 = vmatpush2.bf16.xpose.msra.mxu0 0
        %1155 = vmatprep.subr.bf16.mxu0 0
        %1156 = vmatpush2.bf16.xpose.msra.mxu0 0
        %1157 = vmatprep.mubr.bf16.mxu0 0
        %1158 = vmatmul.mubr.bf16.gmra.mxu0 %v1120
        %v1159 = vpop.f32.mrf.mxu0
        %v1160 = vadd.f32 0.0, %v1159
        %v1161 = vpop.f32.mrf.mxu0
        %v1162 = vpop.f32.mrf.mxu0
        %v1163 = vadd.f32 0.0, %v1162
        %v1164 = vpop.f32.mrf.mxu0
        %1165 = vdwg.mxu0
        %v1166 = vmul.f32 %v1160, 0.17677669
        %v1167 = vmul.f32 %v1163, 0.17677669
        %v1168 = vsel %vm908, %v1166, -inf
        %1169 = vmax.xlane.f32.xlu0 %v1168
        %v1170 = vpop.xlane.xlu0 %1169
        %v1171 = vsel %vm908, %v1167, -inf
        %1172 = vmax.xlane.f32.xlu0 %v1171
        %v1173 = vpop.xlane.xlu0 %1172
        %v1174 = vsub.f32 %v1166, %v1170
        %v1175 = vsub.f32 %v1167, %v1173
        %v1176 = vmul.f32 %v1174, 1.442695
        %v1177 = vpow.pop %v1176
        %v1178 = vmul.f32 %v1175, 1.442695
        %v1179 = vpow.pop %v1178
        %v1180 = vsel %vm908, %v1177, 0.0
        %1181 = vadd.xlane.f32.xlu0 %v1180
        %v1182 = vpop.xlane.xlu0 %1181
        %v1183 = vsel %vm908, %v1179, 0.0
        %1184 = vadd.xlane.f32.xlu0 %v1183
        %v1185 = vpop.xlane.xlu0 %1184
        %v1186 = vrcp.pop %v1182
        %v1187 = vrcp.pop %v1185
        %v1188 = vmul.f32 %v1177, %v1186
        %v1189 = vmul.f32 %v1179, %v1187
        %v1190 = vpack.c.bf16 %v1189, %v1188
        %1191 = vrot.lane.b32.xlu0 %v854, 48
        %v1192 = vpop.permute.xlu0 %1191
        %v1195 = vsel %vm908, %v1190, 0
        %1197 = vmatprep.subr.bf16.mxu0 0
        %1198 = vmatpush1.bf16.msra.mxu0 0
        %1199 = vmatprep.subr.bf16.mxu0 0
        %1200 = vmatpush1.bf16.msra.mxu0 0
        %1201 = vmatprep.subr.bf16.mxu0 0
        %1202 = vmatpush1.bf16.msra.mxu0 0
        %1203 = vmatprep.subr.bf16.mxu0 0
        %1204 = vmatpush1.bf16.msra.mxu0 0
        %1205 = vmatprep.subr.bf16.mxu0 0
        %1206 = vmatpush1.bf16.msra.mxu0 0
        %1207 = vmatprep.subr.bf16.mxu0 0
        %1208 = vmatpush1.bf16.msra.mxu0 0
        %1209 = vmatprep.subr.bf16.mxu0 0
        %1210 = vmatpush1.bf16.msra.mxu0 0
        %1211 = vmatprep.subr.bf16.mxu0 0
        %1212 = vmatpush1.bf16.msra.mxu0 %v1192
        %1213 = vmatprep.subr.bf16.mxu0 0
        %1214 = vmatpush2.bf16.msra.mxu0 0
        %1215 = vmatprep.subr.bf16.mxu0 0
        %1216 = vmatpush2.bf16.msra.mxu0 0
        %1217 = vmatprep.subr.bf16.mxu0 0
        %1218 = vmatpush2.bf16.msra.mxu0 0
        %1219 = vmatprep.subr.bf16.mxu0 0
        %1220 = vmatpush2.bf16.msra.mxu0 0
        %1221 = vmatprep.subr.bf16.mxu0 0
        %1222 = vmatpush2.bf16.msra.mxu0 0
        %1223 = vmatprep.subr.bf16.mxu0 0
        %1224 = vmatpush2.bf16.msra.mxu0 0
        %1225 = vmatprep.subr.bf16.mxu0 0
        %1226 = vmatpush2.bf16.msra.mxu0 0
        %1227 = vmatprep.subr.bf16.mxu0 0
        %1228 = vmatpush2.bf16.msra.mxu0 0
        %1229 = vmatprep.mubr.bf16.mxu0 0
        %1230 = vmatmul.mubr.bf16.gmra.mxu0 %v1195
        %v1231 = vpop.f32.mrf.mxu0
        %v1232 = vadd.f32 0.0, %v1231
        %v1233 = vpop.f32.mrf.mxu0
        %v1234 = vpop.f32.mrf.mxu0
        %v1235 = vadd.f32 0.0, %v1234
        %v1236 = vpop.f32.mrf.mxu0
        %1237 = vdwg.mxu0
        %1240 = vrot.lane.b32.xlu0 %v1232, 16
        %v1241 = vpop.permute.xlu0 %1240
        %1242 = vrot.lane.b32.xlu0 %v1235, 16
        %v1243 = vpop.permute.xlu0 %1242
        %vm1246 = vcmask 195712
        %1247 = vst.msk [vmem:[#allocation2] sm:$0xff] %vm1246, %v1241
        %1248 = vst.msk [vmem:[#allocation2 + $0x8] sm:$0xff] %vm1246, %v1243
        %1249 = vrot.lane.b32.xlu0 %v854, 104
        %v1250 = vpop.permute.xlu0 %1249
        %1251 = vrot.lane.b32.xlu0 %v854, 72
        %v1252 = vpop.permute.xlu0 %1251
        %v1254 = vsel %vm858, %v1250, 0
        %v1257 = vsel %vm858, %v1252, 0
        %1259 = vmatprep.subr.bf16.mxu0 0
        %1260 = vmatpush1.bf16.xpose.msra.mxu0 0
        %1261 = vmatprep.subr.bf16.mxu0 0
        %1262 = vmatpush1.bf16.xpose.msra.mxu0 0
        %1263 = vmatprep.subr.bf16.mxu0 0
        %1264 = vmatpush1.bf16.xpose.msra.mxu0 0
        %1265 = vmatprep.subr.bf16.mxu0 0
        %1266 = vmatpush1.bf16.xpose.msra.mxu0 0
        %1267 = vmatprep.subr.bf16.mxu0 0
        %1268 = vmatpush1.bf16.xpose.msra.mxu0 0
        %1269 = vmatprep.subr.bf16.mxu0 0
        %1270 = vmatpush1.bf16.xpose.msra.mxu0 0
        %1271 = vmatprep.subr.bf16.mxu0 0
        %1272 = vmatpush1.bf16.xpose.msra.mxu0 0
        %1273 = vmatprep.subr.bf16.mxu0 0
        %1274 = vmatpush1.bf16.xpose.msra.mxu0 %v1257
        %1275 = vmatprep.subr.bf16.mxu0 0
        %1276 = vmatpush2.bf16.xpose.msra.mxu0 0
        %1277 = vmatprep.subr.bf16.mxu0 0
        %1278 = vmatpush2.bf16.xpose.msra.mxu0 0
        %1279 = vmatprep.subr.bf16.mxu0 0
        %1280 = vmatpush2.bf16.xpose.msra.mxu0 0
        %1281 = vmatprep.subr.bf16.mxu0 0
        %1282 = vmatpush2.bf16.xpose.msra.mxu0 0
        %1283 = vmatprep.subr.bf16.mxu0 0
        %1284 = vmatpush2.bf16.xpose.msra.mxu0 0
        %1285 = vmatprep.subr.bf16.mxu0 0
        %1286 = vmatpush2.bf16.xpose.msra.mxu0 0
        %1287 = vmatprep.subr.bf16.mxu0 0
        %1288 = vmatpush2.bf16.xpose.msra.mxu0 0
        %1289 = vmatprep.subr.bf16.mxu0 0
        %1290 = vmatpush2.bf16.xpose.msra.mxu0 0
        %1291 = vmatprep.mubr.bf16.mxu0 0
        %1292 = vmatmul.mubr.bf16.gmra.mxu0 %v1254
        %v1293 = vpop.f32.mrf.mxu0
        %v1294 = vadd.f32 0.0, %v1293
        %v1295 = vpop.f32.mrf.mxu0
        %v1296 = vpop.f32.mrf.mxu0
        %v1297 = vadd.f32 0.0, %v1296
        %v1298 = vpop.f32.mrf.mxu0
        %1299 = vdwg.mxu0
        %v1300 = vmul.f32 %v1294, 0.17677669
        %v1301 = vmul.f32 %v1297, 0.17677669
        %v1302 = vsel %vm908, %v1300, -inf
        %1303 = vmax.xlane.f32.xlu0 %v1302
        %v1304 = vpop.xlane.xlu0 %1303
        %v1305 = vsel %vm908, %v1301, -inf
        %1306 = vmax.xlane.f32.xlu0 %v1305
        %v1307 = vpop.xlane.xlu0 %1306
        %v1308 = vsub.f32 %v1300, %v1304
        %v1309 = vsub.f32 %v1301, %v1307
        %v1310 = vmul.f32 %v1308, 1.442695
        %v1311 = vpow.pop %v1310
        %v1312 = vmul.f32 %v1309, 1.442695
        %v1313 = vpow.pop %v1312
        %v1314 = vsel %vm908, %v1311, 0.0
        %1315 = vadd.xlane.f32.xlu0 %v1314
        %v1316 = vpop.xlane.xlu0 %1315
        %v1317 = vsel %vm908, %v1313, 0.0
        %1318 = vadd.xlane.f32.xlu0 %v1317
        %v1319 = vpop.xlane.xlu0 %1318
        %v1320 = vrcp.pop %v1316
        %v1321 = vrcp.pop %v1319
        %v1322 = vmul.f32 %v1311, %v1320
        %v1323 = vmul.f32 %v1313, %v1321
        %v1324 = vpack.c.bf16 %v1323, %v1322
        %1325 = vrot.lane.b32.xlu0 %v854, 40
        %v1326 = vpop.permute.xlu0 %1325
        %v1329 = vsel %vm908, %v1324, 0
        %1331 = vmatprep.subr.bf16.mxu0 0
        %1332 = vmatpush1.bf16.msra.mxu0 0
        %1333 = vmatprep.subr.bf16.mxu0 0
        %1334 = vmatpush1.bf16.msra.mxu0 0
        %1335 = vmatprep.subr.bf16.mxu0 0
        %1336 = vmatpush1.bf16.msra.mxu0 0
        %1337 = vmatprep.subr.bf16.mxu0 0
        %1338 = vmatpush1.bf16.msra.mxu0 0
        %1339 = vmatprep.subr.bf16.mxu0 0
        %1340 = vmatpush1.bf16.msra.mxu0 0
        %1341 = vmatprep.subr.bf16.mxu0 0
        %1342 = vmatpush1.bf16.msra.mxu0 0
        %1343 = vmatprep.subr.bf16.mxu0 0
        %1344 = vmatpush1.bf16.msra.mxu0 0
        %1345 = vmatprep.subr.bf16.mxu0 0
        %1346 = vmatpush1.bf16.msra.mxu0 %v1326
        %1347 = vmatprep.subr.bf16.mxu0 0
        %1348 = vmatpush2.bf16.msra.mxu0 0
        %1349 = vmatprep.subr.bf16.mxu0 0
        %1350 = vmatpush2.bf16.msra.mxu0 0
        %1351 = vmatprep.subr.bf16.mxu0 0
        %1352 = vmatpush2.bf16.msra.mxu0 0
        %1353 = vmatprep.subr.bf16.mxu0 0
        %1354 = vmatpush2.bf16.msra.mxu0 0
        %1355 = vmatprep.subr.bf16.mxu0 0
        %1356 = vmatpush2.bf16.msra.mxu0 0
        %1357 = vmatprep.subr.bf16.mxu0 0
        %1358 = vmatpush2.bf16.msra.mxu0 0
        %1359 = vmatprep.subr.bf16.mxu0 0
        %1360 = vmatpush2.bf16.msra.mxu0 0
        %1361 = vmatprep.subr.bf16.mxu0 0
        %1362 = vmatpush2.bf16.msra.mxu0 0
        %1363 = vmatprep.mubr.bf16.mxu0 0
        %1364 = vmatmul.mubr.bf16.gmra.mxu0 %v1329
        %v1365 = vpop.f32.mrf.mxu0
        %v1366 = vadd.f32 0.0, %v1365
        %v1367 = vpop.f32.mrf.mxu0
        %v1368 = vpop.f32.mrf.mxu0
        %v1369 = vadd.f32 0.0, %v1368
        %v1370 = vpop.f32.mrf.mxu0
        %1371 = vdwg.mxu0
        %1374 = vrot.lane.b32.xlu0 %v1366, 24
        %v1375 = vpop.permute.xlu0 %1374
        %1376 = vrot.lane.b32.xlu0 %v1369, 24
        %v1377 = vpop.permute.xlu0 %1376
        %vm1380 = vcmask 261312
        %1381 = vst.msk [vmem:[#allocation2] sm:$0xff] %vm1380, %v1375
        %1382 = vst.msk [vmem:[#allocation2 + $0x8] sm:$0xff] %vm1380, %v1377
        %v1383 = vld [vmem:[#allocation2] sm:$0xff]
        %v1384 = vld [vmem:[#allocation2 + $0x8] sm:$0xff]
        %v1385 = vpack.c.bf16 %v1384, %v1383
        %v1386 = vld [vmem:[%s8] sm:$0xf]
        %v1387 = vld [vmem:[%s8 + $0x4] sm:$0xf]
        %v1388 = vld [vmem:[%s8 + $0x8] sm:$0xf]
        %v1389 = vld [vmem:[%s8 + $0xc] sm:$0xf]
        %v1390 = vld [vmem:[%s9] sm:$0x1]
        %v1392 = vlaneseq
        %v1393 = vshrl.u32 %v1392, 7
        %v1394 = vsub.s32 0, %v1393
        %v1395 = vrot.slane %v1390, %v1394
        %v1401 = vunpack.c.l.b16 %v1386
        %v1402 = vunpack.c.l.b16 %v1387
        %v1403 = vunpack.c.l.b16 %v1388
        %v1404 = vunpack.c.l.b16 %v1389
        %v1405 = vpack.c.b16 %v1402, %v1401
        %v1406 = vpack.c.b16 %v1404, %v1403
        %v1410 = vsel %vm738, %v1385, 0
        %1412 = vmatprep.subr.bf16.mxu0 0
        %1413 = vmatpush1.bf16.msra.mxu0 0
        %1414 = vmatprep.subr.bf16.mxu0 0
        %1415 = vmatpush1.bf16.msra.mxu0 0
        %1416 = vmatprep.subr.bf16.mxu0 0
        %1417 = vmatpush1.bf16.msra.mxu0 0
        %1418 = vmatprep.subr.bf16.mxu0 0
        %1419 = vmatpush1.bf16.msra.mxu0 0
        %1420 = vmatprep.subr.bf16.mxu0 0
        %1421 = vmatpush1.bf16.msra.mxu0 0
        %1422 = vmatprep.subr.bf16.mxu0 0
        %1423 = vmatpush1.bf16.msra.mxu0 0
        %1424 = vmatprep.subr.bf16.mxu0 0
        %1425 = vmatpush1.bf16.msra.mxu0 %v1406
        %1426 = vmatprep.subr.bf16.mxu0 0
        %1427 = vmatpush1.bf16.msra.mxu0 %v1405
        %1428 = vmatprep.subr.bf16.mxu0 0
        %1429 = vmatpush2.bf16.msra.mxu0 0
        %1430 = vmatprep.subr.bf16.mxu0 0
        %1431 = vmatpush2.bf16.msra.mxu0 0
        %1432 = vmatprep.subr.bf16.mxu0 0
        %1433 = vmatpush2.bf16.msra.mxu0 0
        %1434 = vmatprep.subr.bf16.mxu0 0
        %1435 = vmatpush2.bf16.msra.mxu0 0
        %1436 = vmatprep.subr.bf16.mxu0 0
        %1437 = vmatpush2.bf16.msra.mxu0 0
        %1438 = vmatprep.subr.bf16.mxu0 0
        %1439 = vmatpush2.bf16.msra.mxu0 0
        %1440 = vmatprep.subr.bf16.mxu0 0
        %1441 = vmatpush2.bf16.msra.mxu0 0
        %1442 = vmatprep.subr.bf16.mxu0 0
        %1443 = vmatpush2.bf16.msra.mxu0 0
        %1444 = vmatprep.mubr.bf16.mxu0 0
        %1445 = vmatmul.mubr.bf16.gmra.mxu0 %v1410
        %v1446 = vpop.f32.mrf.mxu0
        %v1447 = vadd.f32 %v1395, %v1446
        %v1448 = vpop.f32.mrf.mxu0
        %v1449 = vpop.f32.mrf.mxu0
        %v1450 = vadd.f32 %v1395, %v1449
        %v1451 = vpop.f32.mrf.mxu0
        %1452 = vdwg.mxu0
        %v1453 = vadd.f32 %v782, %v1447
        %v1454 = vadd.f32 %v783, %v1450
        %v1456 = vsel %vm908, %v784, 0
        %v1459 = vsel %vm908, %v785, 0
        %1461 = vmatprep.subr.mxu0 0.0
        %1462 = vmatpush1.msra.mxu0 0.0
        %1463 = vmatprep.subr.mxu0 0.0
        %1464 = vmatpush1.msra.mxu0 0.0
        %1465 = vmatprep.subr.mxu0 0.0
        %1466 = vmatpush1.msra.mxu0 0.0
        %1467 = vmatprep.subr.mxu0 0.0
        %1468 = vmatpush1.msra.mxu0 0.0
        %1469 = vmatprep.subr.mxu0 0.0
        %1470 = vmatpush1.msra.mxu0 0.0
        %1471 = vmatprep.subr.mxu0 0.0
        %1472 = vmatpush1.msra.mxu0 0.0
        %1473 = vmatprep.subr.mxu0 0.0
        %1474 = vmatpush1.msra.mxu0 0.0
        %1475 = vmatprep.subr.mxu0 0.0
        %1476 = vmatpush1.msra.mxu0 0.0
        %1477 = vmatprep.subr.mxu0 0.0
        %1478 = vmatpush1.msra.mxu0 0.0
        %1479 = vmatprep.subr.mxu0 0.0
        %1480 = vmatpush1.msra.mxu0 0.0
        %1481 = vmatprep.subr.mxu0 0.0
        %1482 = vmatpush1.msra.mxu0 0.0
        %1483 = vmatprep.subr.mxu0 0.0
        %1484 = vmatpush1.msra.mxu0 0.0
        %1485 = vmatprep.subr.mxu0 0.0
        %1486 = vmatpush1.msra.mxu0 0.0
        %1487 = vmatprep.subr.mxu0 0.0
        %1488 = vmatpush1.msra.mxu0 0.0
        %1489 = vmatprep.subr.mxu0 0.0
        %1490 = vmatpush1.msra.mxu0 %v1454
        %1491 = vmatprep.subr.mxu0 0.0
        %1492 = vmatpush1.msra.mxu0 %v1453
        %1493 = vmatprep.subr.mxu0 0.0
        %1494 = vmatpush2.msra.mxu0 0.0
        %1495 = vmatprep.subr.mxu0 0.0
        %1496 = vmatpush2.msra.mxu0 0.0
        %1497 = vmatprep.subr.mxu0 0.0
        %1498 = vmatpush2.msra.mxu0 0.0
        %1499 = vmatprep.subr.mxu0 0.0
        %1500 = vmatpush2.msra.mxu0 0.0
        %1501 = vmatprep.subr.mxu0 0.0
        %1502 = vmatpush2.msra.mxu0 0.0
        %1503 = vmatprep.subr.mxu0 0.0
        %1504 = vmatpush2.msra.mxu0 0.0
        %1505 = vmatprep.subr.mxu0 0.0
        %1506 = vmatpush2.msra.mxu0 0.0
        %1507 = vmatprep.subr.mxu0 0.0
        %1508 = vmatpush2.msra.mxu0 0.0
        %1509 = vmatprep.subr.mxu0 0.0
        %1510 = vmatpush2.msra.mxu0 0.0
        %1511 = vmatprep.subr.mxu0 0.0
        %1512 = vmatpush2.msra.mxu0 0.0
        %1513 = vmatprep.subr.mxu0 0.0
        %1514 = vmatpush2.msra.mxu0 0.0
        %1515 = vmatprep.subr.mxu0 0.0
        %1516 = vmatpush2.msra.mxu0 0.0
        %1517 = vmatprep.subr.mxu0 0.0
        %1518 = vmatpush2.msra.mxu0 0.0
        %1519 = vmatprep.subr.mxu0 0.0
        %1520 = vmatpush2.msra.mxu0 0.0
        %1521 = vmatprep.subr.mxu0 0.0
        %1522 = vmatpush2.msra.mxu0 0.0
        %1523 = vmatprep.subr.mxu0 0.0
        %1524 = vmatpush2.msra.mxu0 0.0
        %1525 = vmatprep.mubr.f32.mxu0 0.0
        %1526 = vmatmul.mubr.f32.gmra.mxu0 %v1456
        %v1527 = vpop.f32.mrf.mxu0
        %v1528 = vadd.f32 0.0, %v1527
        %v1529 = vpop.f32.mrf.mxu0
        %1530 = vmatprep.mubr.f32.mxu0 0.0
        %1531 = vmatmul.mubr.f32.gmra.mxu0 %v1459
        %v1532 = vpop.f32.mrf.mxu0
        %v1533 = vadd.f32 0.0, %v1532
        %v1534 = vpop.f32.mrf.mxu0
        %1535 = vdwg.mxu0
        %v1536 = vsub.f32 %v1453, %v1528
        %v1537 = vsub.f32 %v1454, %v1533
        %v1538 = vld [vmem:[%s724] sm:$0xff]
        %v1539 = vld [vmem:[%s724 + $0x8] sm:$0xff]
        %v1540 = vld [vmem:[%s10] sm:$0xf]
        %v1541 = vld [vmem:[%s10 + $0x4] sm:$0xf]
        %v1542 = vld [vmem:[%s10 + $0x8] sm:$0xf]
        %v1543 = vld [vmem:[%s10 + $0xc] sm:$0xf]
        %v1544 = vld [vmem:[%s11] sm:$0x1]
        %v1545 = vpack.c.bf16 %v1537, %v1536
        %v1547 = vlaneseq
        %v1548 = vshrl.u32 %v1547, 7
        %v1549 = vsub.s32 0, %v1548
        %v1550 = vrot.slane %v1544, %v1549
        %v1556 = vunpack.c.l.b16 %v1540
        %v1557 = vunpack.c.l.b16 %v1541
        %v1558 = vunpack.c.l.b16 %v1542
        %v1559 = vunpack.c.l.b16 %v1543
        %v1560 = vpack.c.b16 %v1557, %v1556
        %v1561 = vpack.c.b16 %v1559, %v1558
        %v1565 = vsel %vm738, %v1545, 0
        %1567 = vmatprep.subr.bf16.mxu0 0
        %1568 = vmatpush1.bf16.msra.mxu0 0
        %1569 = vmatprep.subr.bf16.mxu0 0
        %1570 = vmatpush1.bf16.msra.mxu0 0
        %1571 = vmatprep.subr.bf16.mxu0 0
        %1572 = vmatpush1.bf16.msra.mxu0 0
        %1573 = vmatprep.subr.bf16.mxu0 0
        %1574 = vmatpush1.bf16.msra.mxu0 0
        %1575 = vmatprep.subr.bf16.mxu0 0
        %1576 = vmatpush1.bf16.msra.mxu0 0
        %1577 = vmatprep.subr.bf16.mxu0 0
        %1578 = vmatpush1.bf16.msra.mxu0 0
        %1579 = vmatprep.subr.bf16.mxu0 0
        %1580 = vmatpush1.bf16.msra.mxu0 %v1561
        %1581 = vmatprep.subr.bf16.mxu0 0
        %1582 = vmatpush1.bf16.msra.mxu0 %v1560
        %1583 = vmatprep.subr.bf16.mxu0 0
        %1584 = vmatpush2.bf16.msra.mxu0 0
        %1585 = vmatprep.subr.bf16.mxu0 0
        %1586 = vmatpush2.bf16.msra.mxu0 0
        %1587 = vmatprep.subr.bf16.mxu0 0
        %1588 = vmatpush2.bf16.msra.mxu0 0
        %1589 = vmatprep.subr.bf16.mxu0 0
        %1590 = vmatpush2.bf16.msra.mxu0 0
        %1591 = vmatprep.subr.bf16.mxu0 0
        %1592 = vmatpush2.bf16.msra.mxu0 0
        %1593 = vmatprep.subr.bf16.mxu0 0
        %1594 = vmatpush2.bf16.msra.mxu0 0
        %1595 = vmatprep.subr.bf16.mxu0 0
        %1596 = vmatpush2.bf16.msra.mxu0 0
        %1597 = vmatprep.subr.bf16.mxu0 0
        %1598 = vmatpush2.bf16.msra.mxu0 0
        %1599 = vmatprep.mubr.bf16.mxu0 0
        %1600 = vmatmul.mubr.bf16.gmra.mxu0 %v1565
        %v1601 = vpop.f32.mrf.mxu0
        %v1602 = vadd.f32 %v1550, %v1601
        %v1603 = vpop.f32.mrf.mxu0
        %v1604 = vpop.f32.mrf.mxu0
        %v1605 = vadd.f32 %v1550, %v1604
        %v1606 = vpop.f32.mrf.mxu0
        %1607 = vdwg.mxu0
        %v1608 = vpack.c.bf16 %v1539, %v1538
        %v1610 = vsel %vm738, %v1608, 0
        %1612 = vmatprep.subr.bf16.mxu0 0
        %1613 = vmatpush1.bf16.msra.mxu0 0
        %1614 = vmatprep.subr.bf16.mxu0 0
        %1615 = vmatpush1.bf16.msra.mxu0 0
        %1616 = vmatprep.subr.bf16.mxu0 0
        %1617 = vmatpush1.bf16.msra.mxu0 0
        %1618 = vmatprep.subr.bf16.mxu0 0
        %1619 = vmatpush1.bf16.msra.mxu0 0
        %1620 = vmatprep.subr.bf16.mxu0 0
        %1621 = vmatpush1.bf16.msra.mxu0 0
        %1622 = vmatprep.subr.bf16.mxu0 0
        %1623 = vmatpush1.bf16.msra.mxu0 0
        %1624 = vmatprep.subr.bf16.mxu0 0
        %1625 = vmatpush1.bf16.msra.mxu0 %v1561
        %1626 = vmatprep.subr.bf16.mxu0 0
        %1627 = vmatpush1.bf16.msra.mxu0 %v1560
        %1628 = vmatprep.subr.bf16.mxu0 0
        %1629 = vmatpush2.bf16.msra.mxu0 0
        %1630 = vmatprep.subr.bf16.mxu0 0
        %1631 = vmatpush2.bf16.msra.mxu0 0
        %1632 = vmatprep.subr.bf16.mxu0 0
        %1633 = vmatpush2.bf16.msra.mxu0 0
        %1634 = vmatprep.subr.bf16.mxu0 0
        %1635 = vmatpush2.bf16.msra.mxu0 0
        %1636 = vmatprep.subr.bf16.mxu0 0
        %1637 = vmatpush2.bf16.msra.mxu0 0
        %1638 = vmatprep.subr.bf16.mxu0 0
        %1639 = vmatpush2.bf16.msra.mxu0 0
        %1640 = vmatprep.subr.bf16.mxu0 0
        %1641 = vmatpush2.bf16.msra.mxu0 0
        %1642 = vmatprep.subr.bf16.mxu0 0
        %1643 = vmatpush2.bf16.msra.mxu0 0
        %1644 = vmatprep.mubr.bf16.mxu0 0
        %1645 = vmatmul.mubr.bf16.gmra.mxu0 %v1610
        %v1646 = vpop.f32.mrf.mxu0
        %v1647 = vadd.f32 %v1550, %v1646
        %v1648 = vpop.f32.mrf.mxu0
        %v1649 = vpop.f32.mrf.mxu0
        %v1650 = vadd.f32 %v1550, %v1649
        %v1651 = vpop.f32.mrf.mxu0
        %1652 = vdwg.mxu0
        %v1653 = vpack.c.bf16 %v1605, %v1602
        %v1654 = vpack.c.bf16 %v1650, %v1647
        %1656 = vrot.lane.b32.xlu0 %v1654, 96
        %v1657 = vpop.permute.xlu0 %1656
        %v1659 = vsel %vm858, %v1653, 0
        %v1662 = vsel %vm858, %v1657, 0
        %1664 = vmatprep.subr.bf16.mxu0 0
        %1665 = vmatpush1.bf16.xpose.msra.mxu0 0
        %1666 = vmatprep.subr.bf16.mxu0 0
        %1667 = vmatpush1.bf16.xpose.msra.mxu0 0
        %1668 = vmatprep.subr.bf16.mxu0 0
        %1669 = vmatpush1.bf16.xpose.msra.mxu0 0
        %1670 = vmatprep.subr.bf16.mxu0 0
        %1671 = vmatpush1.bf16.xpose.msra.mxu0 0
        %1672 = vmatprep.subr.bf16.mxu0 0
        %1673 = vmatpush1.bf16.xpose.msra.mxu0 0
        %1674 = vmatprep.subr.bf16.mxu0 0
        %1675 = vmatpush1.bf16.xpose.msra.mxu0 0
        %1676 = vmatprep.subr.bf16.mxu0 0
        %1677 = vmatpush1.bf16.xpose.msra.mxu0 0
        %1678 = vmatprep.subr.bf16.mxu0 0
        %1679 = vmatpush1.bf16.xpose.msra.mxu0 %v1662
        %1680 = vmatprep.subr.bf16.mxu0 0
        %1681 = vmatpush2.bf16.xpose.msra.mxu0 0
        %1682 = vmatprep.subr.bf16.mxu0 0
        %1683 = vmatpush2.bf16.xpose.msra.mxu0 0
        %1684 = vmatprep.subr.bf16.mxu0 0
        %1685 = vmatpush2.bf16.xpose.msra.mxu0 0
        %1686 = vmatprep.subr.bf16.mxu0 0
        %1687 = vmatpush2.bf16.xpose.msra.mxu0 0
        %1688 = vmatprep.subr.bf16.mxu0 0
        %1689 = vmatpush2.bf16.xpose.msra.mxu0 0
        %1690 = vmatprep.subr.bf16.mxu0 0
        %1691 = vmatpush2.bf16.xpose.msra.mxu0 0
        %1692 = vmatprep.subr.bf16.mxu0 0
        %1693 = vmatpush2.bf16.xpose.msra.mxu0 0
        %1694 = vmatprep.subr.bf16.mxu0 0
        %1695 = vmatpush2.bf16.xpose.msra.mxu0 0
        %1696 = vmatprep.mubr.bf16.mxu0 0
        %1697 = vmatmul.mubr.bf16.gmra.mxu0 %v1659
        %v1698 = vpop.f32.mrf.mxu0
        %v1699 = vadd.f32 0.0, %v1698
        %v1700 = vpop.f32.mrf.mxu0
        %v1701 = vpop.f32.mrf.mxu0
        %v1702 = vadd.f32 0.0, %v1701
        %v1703 = vpop.f32.mrf.mxu0
        %1704 = vdwg.mxu0
        %v1705 = vmul.f32 %v1699, 0.17677669
        %v1706 = vmul.f32 %v1702, 0.17677669
        %v1707 = vsel %vm908, %v1705, -inf
        %1708 = vmax.xlane.f32.xlu0 %v1707
        %v1709 = vpop.xlane.xlu0 %1708
        %v1710 = vsel %vm908, %v1706, -inf
        %1711 = vmax.xlane.f32.xlu0 %v1710
        %v1712 = vpop.xlane.xlu0 %1711
        %v1713 = vsub.f32 %v1705, %v1709
        %v1714 = vsub.f32 %v1706, %v1712
        %v1715 = vmul.f32 %v1713, 1.442695
        %v1716 = vpow.pop %v1715
        %v1717 = vmul.f32 %v1714, 1.442695
        %v1718 = vpow.pop %v1717
        %v1719 = vsel %vm908, %v1716, 0.0
        %1720 = vadd.xlane.f32.xlu0 %v1719
        %v1721 = vpop.xlane.xlu0 %1720
        %v1722 = vsel %vm908, %v1718, 0.0
        %1723 = vadd.xlane.f32.xlu0 %v1722
        %v1724 = vpop.xlane.xlu0 %1723
        %v1725 = vrcp.pop %v1721
        %v1726 = vrcp.pop %v1724
        %v1727 = vmul.f32 %v1716, %v1725
        %v1728 = vmul.f32 %v1718, %v1726
        %v1729 = vpack.c.bf16 %v1728, %v1727
        %1730 = vrot.lane.b32.xlu0 %v1654, 64
        %v1731 = vpop.permute.xlu0 %1730
        %v1734 = vsel %vm908, %v1729, 0
        %1736 = vmatprep.subr.bf16.mxu0 0
        %1737 = vmatpush1.bf16.msra.mxu0 0
        %1738 = vmatprep.subr.bf16.mxu0 0
        %1739 = vmatpush1.bf16.msra.mxu0 0
        %1740 = vmatprep.subr.bf16.mxu0 0
        %1741 = vmatpush1.bf16.msra.mxu0 0
        %1742 = vmatprep.subr.bf16.mxu0 0
        %1743 = vmatpush1.bf16.msra.mxu0 0
        %1744 = vmatprep.subr.bf16.mxu0 0
        %1745 = vmatpush1.bf16.msra.mxu0 0
        %1746 = vmatprep.subr.bf16.mxu0 0
        %1747 = vmatpush1.bf16.msra.mxu0 0
        %1748 = vmatprep.subr.bf16.mxu0 0
        %1749 = vmatpush1.bf16.msra.mxu0 0
        %1750 = vmatprep.subr.bf16.mxu0 0
        %1751 = vmatpush1.bf16.msra.mxu0 %v1731
        %1752 = vmatprep.subr.bf16.mxu0 0
        %1753 = vmatpush2.bf16.msra.mxu0 0
        %1754 = vmatprep.subr.bf16.mxu0 0
        %1755 = vmatpush2.bf16.msra.mxu0 0
        %1756 = vmatprep.subr.bf16.mxu0 0
        %1757 = vmatpush2.bf16.msra.mxu0 0
        %1758 = vmatprep.subr.bf16.mxu0 0
        %1759 = vmatpush2.bf16.msra.mxu0 0
        %1760 = vmatprep.subr.bf16.mxu0 0
        %1761 = vmatpush2.bf16.msra.mxu0 0
        %1762 = vmatprep.subr.bf16.mxu0 0
        %1763 = vmatpush2.bf16.msra.mxu0 0
        %1764 = vmatprep.subr.bf16.mxu0 0
        %1765 = vmatpush2.bf16.msra.mxu0 0
        %1766 = vmatprep.subr.bf16.mxu0 0
        %1767 = vmatpush2.bf16.msra.mxu0 0
        %1768 = vmatprep.mubr.bf16.mxu0 0
        %1769 = vmatmul.mubr.bf16.gmra.mxu0 %v1734
        %v1770 = vpop.f32.mrf.mxu0
        %v1771 = vadd.f32 0.0, %v1770
        %v1772 = vpop.f32.mrf.mxu0
        %v1773 = vpop.f32.mrf.mxu0
        %v1774 = vadd.f32 0.0, %v1773
        %v1775 = vpop.f32.mrf.mxu0
        %1776 = vdwg.mxu0
        %1777 = vst.msk [vmem:[#allocation2] sm:$0xff] %vm858, %v1771
        %1778 = vst.msk [vmem:[#allocation2 + $0x8] sm:$0xff] %vm858, %v1774
        %1780 = vrot.lane.b32.xlu0 %v1653, 120
        %v1781 = vpop.permute.xlu0 %1780
        %1782 = vrot.lane.b32.xlu0 %v1654, 88
        %v1783 = vpop.permute.xlu0 %1782
        %v1785 = vsel %vm858, %v1781, 0
        %v1788 = vsel %vm858, %v1783, 0
        %1790 = vmatprep.subr.bf16.mxu0 0
        %1791 = vmatpush1.bf16.xpose.msra.mxu0 0
        %1792 = vmatprep.subr.bf16.mxu0 0
        %1793 = vmatpush1.bf16.xpose.msra.mxu0 0
        %1794 = vmatprep.subr.bf16.mxu0 0
        %1795 = vmatpush1.bf16.xpose.msra.mxu0 0
        %1796 = vmatprep.subr.bf16.mxu0 0
        %1797 = vmatpush1.bf16.xpose.msra.mxu0 0
        %1798 = vmatprep.subr.bf16.mxu0 0
        %1799 = vmatpush1.bf16.xpose.msra.mxu0 0
        %1800 = vmatprep.subr.bf16.mxu0 0
        %1801 = vmatpush1.bf16.xpose.msra.mxu0 0
        %1802 = vmatprep.subr.bf16.mxu0 0
        %1803 = vmatpush1.bf16.xpose.msra.mxu0 0
        %1804 = vmatprep.subr.bf16.mxu0 0
        %1805 = vmatpush1.bf16.xpose.msra.mxu0 %v1788
        %1806 = vmatprep.subr.bf16.mxu0 0
        %1807 = vmatpush2.bf16.xpose.msra.mxu0 0
        %1808 = vmatprep.subr.bf16.mxu0 0
        %1809 = vmatpush2.bf16.xpose.msra.mxu0 0
        %1810 = vmatprep.subr.bf16.mxu0 0
        %1811 = vmatpush2.bf16.xpose.msra.mxu0 0
        %1812 = vmatprep.subr.bf16.mxu0 0
        %1813 = vmatpush2.bf16.xpose.msra.mxu0 0
        %1814 = vmatprep.subr.bf16.mxu0 0
        %1815 = vmatpush2.bf16.xpose.msra.mxu0 0
        %1816 = vmatprep.subr.bf16.mxu0 0
        %1817 = vmatpush2.bf16.xpose.msra.mxu0 0
        %1818 = vmatprep.subr.bf16.mxu0 0
        %1819 = vmatpush2.bf16.xpose.msra.mxu0 0
        %1820 = vmatprep.subr.bf16.mxu0 0
        %1821 = vmatpush2.bf16.xpose.msra.mxu0 0
        %1822 = vmatprep.mubr.bf16.mxu0 0
        %1823 = vmatmul.mubr.bf16.gmra.mxu0 %v1785
        %v1824 = vpop.f32.mrf.mxu0
        %v1825 = vadd.f32 0.0, %v1824
        %v1826 = vpop.f32.mrf.mxu0
        %v1827 = vpop.f32.mrf.mxu0
        %v1828 = vadd.f32 0.0, %v1827
        %v1829 = vpop.f32.mrf.mxu0
        %1830 = vdwg.mxu0
        %v1831 = vmul.f32 %v1825, 0.17677669
        %v1832 = vmul.f32 %v1828, 0.17677669
        %v1833 = vsel %vm908, %v1831, -inf
        %1834 = vmax.xlane.f32.xlu0 %v1833
        %v1835 = vpop.xlane.xlu0 %1834
        %v1836 = vsel %vm908, %v1832, -inf
        %1837 = vmax.xlane.f32.xlu0 %v1836
        %v1838 = vpop.xlane.xlu0 %1837
        %v1839 = vsub.f32 %v1831, %v1835
        %v1840 = vsub.f32 %v1832, %v1838
        %v1841 = vmul.f32 %v1839, 1.442695
        %v1842 = vpow.pop %v1841
        %v1843 = vmul.f32 %v1840, 1.442695
        %v1844 = vpow.pop %v1843
        %v1845 = vsel %vm908, %v1842, 0.0
        %1846 = vadd.xlane.f32.xlu0 %v1845
        %v1847 = vpop.xlane.xlu0 %1846
        %v1848 = vsel %vm908, %v1844, 0.0
        %1849 = vadd.xlane.f32.xlu0 %v1848
        %v1850 = vpop.xlane.xlu0 %1849
        %v1851 = vrcp.pop %v1847
        %v1852 = vrcp.pop %v1850
        %v1853 = vmul.f32 %v1842, %v1851
        %v1854 = vmul.f32 %v1844, %v1852
        %v1855 = vpack.c.bf16 %v1854, %v1853
        %1856 = vrot.lane.b32.xlu0 %v1654, 56
        %v1857 = vpop.permute.xlu0 %1856
        %v1860 = vsel %vm908, %v1855, 0
        %1862 = vmatprep.subr.bf16.mxu0 0
        %1863 = vmatpush1.bf16.msra.mxu0 0
        %1864 = vmatprep.subr.bf16.mxu0 0
        %1865 = vmatpush1.bf16.msra.mxu0 0
        %1866 = vmatprep.subr.bf16.mxu0 0
        %1867 = vmatpush1.bf16.msra.mxu0 0
        %1868 = vmatprep.subr.bf16.mxu0 0
        %1869 = vmatpush1.bf16.msra.mxu0 0
        %1870 = vmatprep.subr.bf16.mxu0 0
        %1871 = vmatpush1.bf16.msra.mxu0 0
        %1872 = vmatprep.subr.bf16.mxu0 0
        %1873 = vmatpush1.bf16.msra.mxu0 0
        %1874 = vmatprep.subr.bf16.mxu0 0
        %1875 = vmatpush1.bf16.msra.mxu0 0
        %1876 = vmatprep.subr.bf16.mxu0 0
        %1877 = vmatpush1.bf16.msra.mxu0 %v1857
        %1878 = vmatprep.subr.bf16.mxu0 0
        %1879 = vmatpush2.bf16.msra.mxu0 0
        %1880 = vmatprep.subr.bf16.mxu0 0
        %1881 = vmatpush2.bf16.msra.mxu0 0
        %1882 = vmatprep.subr.bf16.mxu0 0
        %1883 = vmatpush2.bf16.msra.mxu0 0
        %1884 = vmatprep.subr.bf16.mxu0 0
        %1885 = vmatpush2.bf16.msra.mxu0 0
        %1886 = vmatprep.subr.bf16.mxu0 0
        %1887 = vmatpush2.bf16.msra.mxu0 0
        %1888 = vmatprep.subr.bf16.mxu0 0
        %1889 = vmatpush2.bf16.msra.mxu0 0
        %1890 = vmatprep.subr.bf16.mxu0 0
        %1891 = vmatpush2.bf16.msra.mxu0 0
        %1892 = vmatprep.subr.bf16.mxu0 0
        %1893 = vmatpush2.bf16.msra.mxu0 0
        %1894 = vmatprep.mubr.bf16.mxu0 0
        %1895 = vmatmul.mubr.bf16.gmra.mxu0 %v1860
        %v1896 = vpop.f32.mrf.mxu0
        %v1897 = vadd.f32 0.0, %v1896
        %v1898 = vpop.f32.mrf.mxu0
        %v1899 = vpop.f32.mrf.mxu0
        %v1900 = vadd.f32 0.0, %v1899
        %v1901 = vpop.f32.mrf.mxu0
        %1902 = vdwg.mxu0
        %1905 = vrot.lane.b32.xlu0 %v1897, 8
        %v1906 = vpop.permute.xlu0 %1905
        %1907 = vrot.lane.b32.xlu0 %v1900, 8
        %v1908 = vpop.permute.xlu0 %1907
        %1911 = vst.msk [vmem:[#allocation2] sm:$0xff] %vm1112, %v1906
        %1912 = vst.msk [vmem:[#allocation2 + $0x8] sm:$0xff] %vm1112, %v1908
        %1913 = vrot.lane.b32.xlu0 %v1653, 112
        %v1914 = vpop.permute.xlu0 %1913
        %1915 = vrot.lane.b32.xlu0 %v1654, 80
        %v1916 = vpop.permute.xlu0 %1915
        %v1918 = vsel %vm858, %v1914, 0
        %v1921 = vsel %vm858, %v1916, 0
        %1923 = vmatprep.subr.bf16.mxu0 0
        %1924 = vmatpush1.bf16.xpose.msra.mxu0 0
        %1925 = vmatprep.subr.bf16.mxu0 0
        %1926 = vmatpush1.bf16.xpose.msra.mxu0 0
        %1927 = vmatprep.subr.bf16.mxu0 0
        %1928 = vmatpush1.bf16.xpose.msra.mxu0 0
        %1929 = vmatprep.subr.bf16.mxu0 0
        %1930 = vmatpush1.bf16.xpose.msra.mxu0 0
        %1931 = vmatprep.subr.bf16.mxu0 0
        %1932 = vmatpush1.bf16.xpose.msra.mxu0 0
        %1933 = vmatprep.subr.bf16.mxu0 0
        %1934 = vmatpush1.bf16.xpose.msra.mxu0 0
        %1935 = vmatprep.subr.bf16.mxu0 0
        %1936 = vmatpush1.bf16.xpose.msra.mxu0 0
        %1937 = vmatprep.subr.bf16.mxu0 0
        %1938 = vmatpush1.bf16.xpose.msra.mxu0 %v1921
        %1939 = vmatprep.subr.bf16.mxu0 0
        %1940 = vmatpush2.bf16.xpose.msra.mxu0 0
        %1941 = vmatprep.subr.bf16.mxu0 0
        %1942 = vmatpush2.bf16.xpose.msra.mxu0 0
        %1943 = vmatprep.subr.bf16.mxu0 0
        %1944 = vmatpush2.bf16.xpose.msra.mxu0 0
        %1945 = vmatprep.subr.bf16.mxu0 0
        %1946 = vmatpush2.bf16.xpose.msra.mxu0 0
        %1947 = vmatprep.subr.bf16.mxu0 0
        %1948 = vmatpush2.bf16.xpose.msra.mxu0 0
        %1949 = vmatprep.subr.bf16.mxu0 0
        %1950 = vmatpush2.bf16.xpose.msra.mxu0 0
        %1951 = vmatprep.subr.bf16.mxu0 0
        %1952 = vmatpush2.bf16.xpose.msra.mxu0 0
        %1953 = vmatprep.subr.bf16.mxu0 0
        %1954 = vmatpush2.bf16.xpose.msra.mxu0 0
        %1955 = vmatprep.mubr.bf16.mxu0 0
        %1956 = vmatmul.mubr.bf16.gmra.mxu0 %v1918
        %v1957 = vpop.f32.mrf.mxu0
        %v1958 = vadd.f32 0.0, %v1957
        %v1959 = vpop.f32.mrf.mxu0
        %v1960 = vpop.f32.mrf.mxu0
        %v1961 = vadd.f32 0.0, %v1960
        %v1962 = vpop.f32.mrf.mxu0
        %1963 = vdwg.mxu0
        %v1964 = vmul.f32 %v1958, 0.17677669
        %v1965 = vmul.f32 %v1961, 0.17677669
        %v1966 = vsel %vm908, %v1964, -inf
        %1967 = vmax.xlane.f32.xlu0 %v1966
        %v1968 = vpop.xlane.xlu0 %1967
        %v1969 = vsel %vm908, %v1965, -inf
        %1970 = vmax.xlane.f32.xlu0 %v1969
        %v1971 = vpop.xlane.xlu0 %1970
        %v1972 = vsub.f32 %v1964, %v1968
        %v1973 = vsub.f32 %v1965, %v1971
        %v1974 = vmul.f32 %v1972, 1.442695
        %v1975 = vpow.pop %v1974
        %v1976 = vmul.f32 %v1973, 1.442695
        %v1977 = vpow.pop %v1976
        %v1978 = vsel %vm908, %v1975, 0.0
        %1979 = vadd.xlane.f32.xlu0 %v1978
        %v1980 = vpop.xlane.xlu0 %1979
        %v1981 = vsel %vm908, %v1977, 0.0
        %1982 = vadd.xlane.f32.xlu0 %v1981
        %v1983 = vpop.xlane.xlu0 %1982
        %v1984 = vrcp.pop %v1980
        %v1985 = vrcp.pop %v1983
        %v1986 = vmul.f32 %v1975, %v1984
        %v1987 = vmul.f32 %v1977, %v1985
        %v1988 = vpack.c.bf16 %v1987, %v1986
        %1989 = vrot.lane.b32.xlu0 %v1654, 48
        %v1990 = vpop.permute.xlu0 %1989
        %v1993 = vsel %vm908, %v1988, 0
        %1995 = vmatprep.subr.bf16.mxu0 0
        %1996 = vmatpush1.bf16.msra.mxu0 0
        %1997 = vmatprep.subr.bf16.mxu0 0
        %1998 = vmatpush1.bf16.msra.mxu0 0
        %1999 = vmatprep.subr.bf16.mxu0 0
        %2000 = vmatpush1.bf16.msra.mxu0 0
        %2001 = vmatprep.subr.bf16.mxu0 0
        %2002 = vmatpush1.bf16.msra.mxu0 0
        %2003 = vmatprep.subr.bf16.mxu0 0
        %2004 = vmatpush1.bf16.msra.mxu0 0
        %2005 = vmatprep.subr.bf16.mxu0 0
        %2006 = vmatpush1.bf16.msra.mxu0 0
        %2007 = vmatprep.subr.bf16.mxu0 0
        %2008 = vmatpush1.bf16.msra.mxu0 0
        %2009 = vmatprep.subr.bf16.mxu0 0
        %2010 = vmatpush1.bf16.msra.mxu0 %v1990
        %2011 = vmatprep.subr.bf16.mxu0 0
        %2012 = vmatpush2.bf16.msra.mxu0 0
        %2013 = vmatprep.subr.bf16.mxu0 0
        %2014 = vmatpush2.bf16.msra.mxu0 0
        %2015 = vmatprep.subr.bf16.mxu0 0
        %2016 = vmatpush2.bf16.msra.mxu0 0
        %2017 = vmatprep.subr.bf16.mxu0 0
        %2018 = vmatpush2.bf16.msra.mxu0 0
        %2019 = vmatprep.subr.bf16.mxu0 0
        %2020 = vmatpush2.bf16.msra.mxu0 0
        %2021 = vmatprep.subr.bf16.mxu0 0
        %2022 = vmatpush2.bf16.msra.mxu0 0
        %2023 = vmatprep.subr.bf16.mxu0 0
        %2024 = vmatpush2.bf16.msra.mxu0 0
        %2025 = vmatprep.subr.bf16.mxu0 0
        %2026 = vmatpush2.bf16.msra.mxu0 0
        %2027 = vmatprep.mubr.bf16.mxu0 0
        %2028 = vmatmul.mubr.bf16.gmra.mxu0 %v1993
        %v2029 = vpop.f32.mrf.mxu0
        %v2030 = vadd.f32 0.0, %v2029
        %v2031 = vpop.f32.mrf.mxu0
        %v2032 = vpop.f32.mrf.mxu0
        %v2033 = vadd.f32 0.0, %v2032
        %v2034 = vpop.f32.mrf.mxu0
        %2035 = vdwg.mxu0
        %2038 = vrot.lane.b32.xlu0 %v2030, 16
        %v2039 = vpop.permute.xlu0 %2038
        %2040 = vrot.lane.b32.xlu0 %v2033, 16
        %v2041 = vpop.permute.xlu0 %2040
        %2044 = vst.msk [vmem:[#allocation2] sm:$0xff] %vm1246, %v2039
        %2045 = vst.msk [vmem:[#allocation2 + $0x8] sm:$0xff] %vm1246, %v2041
        %2046 = vrot.lane.b32.xlu0 %v1653, 104
        %v2047 = vpop.permute.xlu0 %2046
        %2048 = vrot.lane.b32.xlu0 %v1654, 72
        %v2049 = vpop.permute.xlu0 %2048
        %v2051 = vsel %vm858, %v2047, 0
        %v2054 = vsel %vm858, %v2049, 0
        %2056 = vmatprep.subr.bf16.mxu0 0
        %2057 = vmatpush1.bf16.xpose.msra.mxu0 0
        %2058 = vmatprep.subr.bf16.mxu0 0
        %2059 = vmatpush1.bf16.xpose.msra.mxu0 0
        %2060 = vmatprep.subr.bf16.mxu0 0
        %2061 = vmatpush1.bf16.xpose.msra.mxu0 0
        %2062 = vmatprep.subr.bf16.mxu0 0
        %2063 = vmatpush1.bf16.xpose.msra.mxu0 0
        %2064 = vmatprep.subr.bf16.mxu0 0
        %2065 = vmatpush1.bf16.xpose.msra.mxu0 0
        %2066 = vmatprep.subr.bf16.mxu0 0
        %2067 = vmatpush1.bf16.xpose.msra.mxu0 0
        %2068 = vmatprep.subr.bf16.mxu0 0
        %2069 = vmatpush1.bf16.xpose.msra.mxu0 0
        %2070 = vmatprep.subr.bf16.mxu0 0
        %2071 = vmatpush1.bf16.xpose.msra.mxu0 %v2054
        %2072 = vmatprep.subr.bf16.mxu0 0
        %2073 = vmatpush2.bf16.xpose.msra.mxu0 0
        %2074 = vmatprep.subr.bf16.mxu0 0
        %2075 = vmatpush2.bf16.xpose.msra.mxu0 0
        %2076 = vmatprep.subr.bf16.mxu0 0
        %2077 = vmatpush2.bf16.xpose.msra.mxu0 0
        %2078 = vmatprep.subr.bf16.mxu0 0
        %2079 = vmatpush2.bf16.xpose.msra.mxu0 0
        %2080 = vmatprep.subr.bf16.mxu0 0
        %2081 = vmatpush2.bf16.xpose.msra.mxu0 0
        %2082 = vmatprep.subr.bf16.mxu0 0
        %2083 = vmatpush2.bf16.xpose.msra.mxu0 0
        %2084 = vmatprep.subr.bf16.mxu0 0
        %2085 = vmatpush2.bf16.xpose.msra.mxu0 0
        %2086 = vmatprep.subr.bf16.mxu0 0
        %2087 = vmatpush2.bf16.xpose.msra.mxu0 0
        %2088 = vmatprep.mubr.bf16.mxu0 0
        %2089 = vmatmul.mubr.bf16.gmra.mxu0 %v2051
        %v2090 = vpop.f32.mrf.mxu0
        %v2091 = vadd.f32 0.0, %v2090
        %v2092 = vpop.f32.mrf.mxu0
        %v2093 = vpop.f32.mrf.mxu0
        %v2094 = vadd.f32 0.0, %v2093
        %v2095 = vpop.f32.mrf.mxu0
        %2096 = vdwg.mxu0
        %v2097 = vmul.f32 %v2091, 0.17677669
        %v2098 = vmul.f32 %v2094, 0.17677669
        %v2099 = vsel %vm908, %v2097, -inf
        %2100 = vmax.xlane.f32.xlu0 %v2099
        %v2101 = vpop.xlane.xlu0 %2100
        %v2102 = vsel %vm908, %v2098, -inf
        %2103 = vmax.xlane.f32.xlu0 %v2102
        %v2104 = vpop.xlane.xlu0 %2103
        %v2105 = vsub.f32 %v2097, %v2101
        %v2106 = vsub.f32 %v2098, %v2104
        %v2107 = vmul.f32 %v2105, 1.442695
        %v2108 = vpow.pop %v2107
        %v2109 = vmul.f32 %v2106, 1.442695
        %v2110 = vpow.pop %v2109
        %v2111 = vsel %vm908, %v2108, 0.0
        %2112 = vadd.xlane.f32.xlu0 %v2111
        %v2113 = vpop.xlane.xlu0 %2112
        %v2114 = vsel %vm908, %v2110, 0.0
        %2115 = vadd.xlane.f32.xlu0 %v2114
        %v2116 = vpop.xlane.xlu0 %2115
        %v2117 = vrcp.pop %v2113
        %v2118 = vrcp.pop %v2116
        %v2119 = vmul.f32 %v2108, %v2117
        %v2120 = vmul.f32 %v2110, %v2118
        %v2121 = vpack.c.bf16 %v2120, %v2119
        %2122 = vrot.lane.b32.xlu0 %v1654, 40
        %v2123 = vpop.permute.xlu0 %2122
        %v2126 = vsel %vm908, %v2121, 0
        %2128 = vmatprep.subr.bf16.mxu0 0
        %2129 = vmatpush1.bf16.msra.mxu0 0
        %2130 = vmatprep.subr.bf16.mxu0 0
        %2131 = vmatpush1.bf16.msra.mxu0 0
        %2132 = vmatprep.subr.bf16.mxu0 0
        %2133 = vmatpush1.bf16.msra.mxu0 0
        %2134 = vmatprep.subr.bf16.mxu0 0
        %2135 = vmatpush1.bf16.msra.mxu0 0
        %2136 = vmatprep.subr.bf16.mxu0 0
        %2137 = vmatpush1.bf16.msra.mxu0 0
        %2138 = vmatprep.subr.bf16.mxu0 0
        %2139 = vmatpush1.bf16.msra.mxu0 0
        %2140 = vmatprep.subr.bf16.mxu0 0
        %2141 = vmatpush1.bf16.msra.mxu0 0
        %2142 = vmatprep.subr.bf16.mxu0 0
        %2143 = vmatpush1.bf16.msra.mxu0 %v2123
        %2144 = vmatprep.subr.bf16.mxu0 0
        %2145 = vmatpush2.bf16.msra.mxu0 0
        %2146 = vmatprep.subr.bf16.mxu0 0
        %2147 = vmatpush2.bf16.msra.mxu0 0
        %2148 = vmatprep.subr.bf16.mxu0 0
        %2149 = vmatpush2.bf16.msra.mxu0 0
        %2150 = vmatprep.subr.bf16.mxu0 0
        %2151 = vmatpush2.bf16.msra.mxu0 0
        %2152 = vmatprep.subr.bf16.mxu0 0
        %2153 = vmatpush2.bf16.msra.mxu0 0
        %2154 = vmatprep.subr.bf16.mxu0 0
        %2155 = vmatpush2.bf16.msra.mxu0 0
        %2156 = vmatprep.subr.bf16.mxu0 0
        %2157 = vmatpush2.bf16.msra.mxu0 0
        %2158 = vmatprep.subr.bf16.mxu0 0
        %2159 = vmatpush2.bf16.msra.mxu0 0
        %2160 = vmatprep.mubr.bf16.mxu0 0
        %2161 = vmatmul.mubr.bf16.gmra.mxu0 %v2126
        %v2162 = vpop.f32.mrf.mxu0
        %v2163 = vadd.f32 0.0, %v2162
        %v2164 = vpop.f32.mrf.mxu0
        %v2165 = vpop.f32.mrf.mxu0
        %v2166 = vadd.f32 0.0, %v2165
        %v2167 = vpop.f32.mrf.mxu0
        %2168 = vdwg.mxu0
        %2171 = vrot.lane.b32.xlu0 %v2163, 24
        %v2172 = vpop.permute.xlu0 %2171
        %2173 = vrot.lane.b32.xlu0 %v2166, 24
        %v2174 = vpop.permute.xlu0 %2173
        %2177 = vst.msk [vmem:[#allocation2] sm:$0xff] %vm1380, %v2172
        %2178 = vst.msk [vmem:[#allocation2 + $0x8] sm:$0xff] %vm1380, %v2174
        %v2179 = vld [vmem:[#allocation2] sm:$0xff]
        %v2180 = vld [vmem:[#allocation2 + $0x8] sm:$0xff]
        %v2181 = vpack.c.bf16 %v2180, %v2179
        %v2182 = vld [vmem:[%s12] sm:$0xf]
        %v2183 = vld [vmem:[%s12 + $0x4] sm:$0xf]
        %v2184 = vld [vmem:[%s12 + $0x8] sm:$0xf]
        %v2185 = vld [vmem:[%s12 + $0xc] sm:$0xf]
        %v2186 = vld [vmem:[%s13] sm:$0x1]
        %v2188 = vlaneseq
        %v2189 = vshrl.u32 %v2188, 7
        %v2190 = vsub.s32 0, %v2189
        %v2191 = vrot.slane %v2186, %v2190
        %v2197 = vunpack.c.l.b16 %v2182
        %v2198 = vunpack.c.l.b16 %v2183
        %v2199 = vunpack.c.l.b16 %v2184
        %v2200 = vunpack.c.l.b16 %v2185
        %v2201 = vpack.c.b16 %v2198, %v2197
        %v2202 = vpack.c.b16 %v2200, %v2199
        %v2206 = vsel %vm738, %v2181, 0
        %2208 = vmatprep.subr.bf16.mxu0 0
        %2209 = vmatpush1.bf16.msra.mxu0 0
        %2210 = vmatprep.subr.bf16.mxu0 0
        %2211 = vmatpush1.bf16.msra.mxu0 0
        %2212 = vmatprep.subr.bf16.mxu0 0
        %2213 = vmatpush1.bf16.msra.mxu0 0
        %2214 = vmatprep.subr.bf16.mxu0 0
        %2215 = vmatpush1.bf16.msra.mxu0 0
        %2216 = vmatprep.subr.bf16.mxu0 0
        %2217 = vmatpush1.bf16.msra.mxu0 0
        %2218 = vmatprep.subr.bf16.mxu0 0
        %2219 = vmatpush1.bf16.msra.mxu0 0
        %2220 = vmatprep.subr.bf16.mxu0 0
        %2221 = vmatpush1.bf16.msra.mxu0 %v2202
        %2222 = vmatprep.subr.bf16.mxu0 0
        %2223 = vmatpush1.bf16.msra.mxu0 %v2201
        %2224 = vmatprep.subr.bf16.mxu0 0
        %2225 = vmatpush2.bf16.msra.mxu0 0
        %2226 = vmatprep.subr.bf16.mxu0 0
        %2227 = vmatpush2.bf16.msra.mxu0 0
        %2228 = vmatprep.subr.bf16.mxu0 0
        %2229 = vmatpush2.bf16.msra.mxu0 0
        %2230 = vmatprep.subr.bf16.mxu0 0
        %2231 = vmatpush2.bf16.msra.mxu0 0
        %2232 = vmatprep.subr.bf16.mxu0 0
        %2233 = vmatpush2.bf16.msra.mxu0 0
        %2234 = vmatprep.subr.bf16.mxu0 0
        %2235 = vmatpush2.bf16.msra.mxu0 0
        %2236 = vmatprep.subr.bf16.mxu0 0
        %2237 = vmatpush2.bf16.msra.mxu0 0
        %2238 = vmatprep.subr.bf16.mxu0 0
        %2239 = vmatpush2.bf16.msra.mxu0 0
        %2240 = vmatprep.mubr.bf16.mxu0 0
        %2241 = vmatmul.mubr.bf16.gmra.mxu0 %v2206
        %v2242 = vpop.f32.mrf.mxu0
        %v2243 = vadd.f32 %v2191, %v2242
        %v2244 = vpop.f32.mrf.mxu0
        %v2245 = vpop.f32.mrf.mxu0
        %v2246 = vadd.f32 %v2191, %v2245
        %v2247 = vpop.f32.mrf.mxu0
        %2248 = vdwg.mxu0
        %v2249 = vadd.f32 %v1536, %v2243
        %v2250 = vadd.f32 %v1537, %v2246
        %2251 = vmatprep.subr.mxu0 0.0
        %2252 = vmatpush1.msra.mxu0 0.0
        %2253 = vmatprep.subr.mxu0 0.0
        %2254 = vmatpush1.msra.mxu0 0.0
        %2255 = vmatprep.subr.mxu0 0.0
        %2256 = vmatpush1.msra.mxu0 0.0
        %2257 = vmatprep.subr.mxu0 0.0
        %2258 = vmatpush1.msra.mxu0 0.0
        %2259 = vmatprep.subr.mxu0 0.0
        %2260 = vmatpush1.msra.mxu0 0.0
        %2261 = vmatprep.subr.mxu0 0.0
        %2262 = vmatpush1.msra.mxu0 0.0
        %2263 = vmatprep.subr.mxu0 0.0
        %2264 = vmatpush1.msra.mxu0 0.0
        %2265 = vmatprep.subr.mxu0 0.0
        %2266 = vmatpush1.msra.mxu0 0.0
        %2267 = vmatprep.subr.mxu0 0.0
        %2268 = vmatpush1.msra.mxu0 0.0
        %2269 = vmatprep.subr.mxu0 0.0
        %2270 = vmatpush1.msra.mxu0 0.0
        %2271 = vmatprep.subr.mxu0 0.0
        %2272 = vmatpush1.msra.mxu0 0.0
        %2273 = vmatprep.subr.mxu0 0.0
        %2274 = vmatpush1.msra.mxu0 0.0
        %2275 = vmatprep.subr.mxu0 0.0
        %2276 = vmatpush1.msra.mxu0 0.0
        %2277 = vmatprep.subr.mxu0 0.0
        %2278 = vmatpush1.msra.mxu0 0.0
        %2279 = vmatprep.subr.mxu0 0.0
        %2280 = vmatpush1.msra.mxu0 %v2250
        %2281 = vmatprep.subr.mxu0 0.0
        %2282 = vmatpush1.msra.mxu0 %v2249
        %2283 = vmatprep.subr.mxu0 0.0
        %2284 = vmatpush2.msra.mxu0 0.0
        %2285 = vmatprep.subr.mxu0 0.0
        %2286 = vmatpush2.msra.mxu0 0.0
        %2287 = vmatprep.subr.mxu0 0.0
        %2288 = vmatpush2.msra.mxu0 0.0
        %2289 = vmatprep.subr.mxu0 0.0
        %2290 = vmatpush2.msra.mxu0 0.0
        %2291 = vmatprep.subr.mxu0 0.0
        %2292 = vmatpush2.msra.mxu0 0.0
        %2293 = vmatprep.subr.mxu0 0.0
        %2294 = vmatpush2.msra.mxu0 0.0
        %2295 = vmatprep.subr.mxu0 0.0
        %2296 = vmatpush2.msra.mxu0 0.0
        %2297 = vmatprep.subr.mxu0 0.0
        %2298 = vmatpush2.msra.mxu0 0.0
        %2299 = vmatprep.subr.mxu0 0.0
        %2300 = vmatpush2.msra.mxu0 0.0
        %2301 = vmatprep.subr.mxu0 0.0
        %2302 = vmatpush2.msra.mxu0 0.0
        %2303 = vmatprep.subr.mxu0 0.0
        %2304 = vmatpush2.msra.mxu0 0.0
        %2305 = vmatprep.subr.mxu0 0.0
        %2306 = vmatpush2.msra.mxu0 0.0
        %2307 = vmatprep.subr.mxu0 0.0
        %2308 = vmatpush2.msra.mxu0 0.0
        %2309 = vmatprep.subr.mxu0 0.0
        %2310 = vmatpush2.msra.mxu0 0.0
        %2311 = vmatprep.subr.mxu0 0.0
        %2312 = vmatpush2.msra.mxu0 0.0
        %2313 = vmatprep.subr.mxu0 0.0
        %2314 = vmatpush2.msra.mxu0 0.0
        %2315 = vmatprep.mubr.f32.mxu0 0.0
        %2316 = vmatmul.mubr.f32.gmra.mxu0 %v1456
        %v2317 = vpop.f32.mrf.mxu0
        %v2318 = vadd.f32 0.0, %v2317
        %v2319 = vpop.f32.mrf.mxu0
        %2320 = vmatprep.mubr.f32.mxu0 0.0
        %2321 = vmatmul.mubr.f32.gmra.mxu0 %v1459
        %v2322 = vpop.f32.mrf.mxu0
        %v2323 = vadd.f32 0.0, %v2322
        %v2324 = vpop.f32.mrf.mxu0
        %2325 = vdwg.mxu0
        %v2326 = vsub.f32 %v2249, %v2318
        %v2327 = vsub.f32 %v2250, %v2323
        %v2328 = vrot.slane %v2326, 7
        %v2329 = vrot.slane %v2327, 7
        %v2330 = vlaneseq
        %v2331 = vshrl.u32 %v2330, 7
        %vm2332 = vcmp.lt.s32.totalorder %v2331, 1
        %v2333 = vsel %vm2332, %v2328, %v2329
        %v2334 = vsel %vm2332, %v2329, %v2328
        %v2335 = vrot.slane %v2326, 1
        %v2336 = vrot.slane %v2327, 1
        %vm2337 = vcmp.lt.s32.totalorder %v2331, 7
        %v2338 = vsel %vm2337, %v2335, %v2336
        %v2339 = vsel %vm2337, %v2336, %v2335
        %v2340 = vpack.c.bf16 %v2333, %v2334
        %v2341 = vld [vmem:[%s14] sm:$0xf]
        %v2342 = vld [vmem:[%s14 + $0x4] sm:$0xf]
        %v2343 = vld [vmem:[%s14 + $0x8] sm:$0xf]
        %v2344 = vld [vmem:[%s14 + $0xc] sm:$0xf]
        %v2345 = vpack.c.bf16 %v2327, %v2326
        %s2346 = scalar_lea.vmem %s14, 16
        %v2347 = vld [vmem:[%s2346] sm:$0xf]
        %v2348 = vld [vmem:[%s2346 + $0x4] sm:$0xf]
        %v2349 = vld [vmem:[%s2346 + $0x8] sm:$0xf]
        %v2350 = vld [vmem:[%s2346 + $0xc] sm:$0xf]
        %v2355 = vunpack.c.l.b16 %v2347
        %v2356 = vunpack.c.l.b16 %v2348
        %v2357 = vunpack.c.l.b16 %v2349
        %v2358 = vunpack.c.l.b16 %v2350
        %v2359 = vpack.c.b16 %v2356, %v2355
        %v2360 = vpack.c.b16 %v2358, %v2357
        %v2364 = vsel %vm738, %v2345, 0
        %2366 = vmatprep.subr.bf16.mxu0 0
        %2367 = vmatpush1.bf16.msra.mxu0 0
        %2368 = vmatprep.subr.bf16.mxu0 0
        %2369 = vmatpush1.bf16.msra.mxu0 0
        %2370 = vmatprep.subr.bf16.mxu0 0
        %2371 = vmatpush1.bf16.msra.mxu0 0
        %2372 = vmatprep.subr.bf16.mxu0 0
        %2373 = vmatpush1.bf16.msra.mxu0 0
        %2374 = vmatprep.subr.bf16.mxu0 0
        %2375 = vmatpush1.bf16.msra.mxu0 0
        %2376 = vmatprep.subr.bf16.mxu0 0
        %2377 = vmatpush1.bf16.msra.mxu0 0
        %2378 = vmatprep.subr.bf16.mxu0 0
        %2379 = vmatpush1.bf16.msra.mxu0 %v2360
        %2380 = vmatprep.subr.bf16.mxu0 0
        %2381 = vmatpush1.bf16.msra.mxu0 %v2359
        %2382 = vmatprep.subr.bf16.mxu0 0
        %2383 = vmatpush2.bf16.msra.mxu0 0
        %2384 = vmatprep.subr.bf16.mxu0 0
        %2385 = vmatpush2.bf16.msra.mxu0 0
        %2386 = vmatprep.subr.bf16.mxu0 0
        %2387 = vmatpush2.bf16.msra.mxu0 0
        %2388 = vmatprep.subr.bf16.mxu0 0
        %2389 = vmatpush2.bf16.msra.mxu0 0
        %2390 = vmatprep.subr.bf16.mxu0 0
        %2391 = vmatpush2.bf16.msra.mxu0 0
        %2392 = vmatprep.subr.bf16.mxu0 0
        %2393 = vmatpush2.bf16.msra.mxu0 0
        %2394 = vmatprep.subr.bf16.mxu0 0
        %2395 = vmatpush2.bf16.msra.mxu0 0
        %2396 = vmatprep.subr.bf16.mxu0 0
        %2397 = vmatpush2.bf16.msra.mxu0 0
        %2398 = vmatprep.mubr.bf16.mxu0 0
        %2399 = vmatmul.mubr.bf16.gmra.mxu0 %v2364
        %v2400 = vpop.f32.mrf.mxu0
        %v2401 = vadd.f32 0.0, %v2400
        %v2402 = vpop.f32.mrf.mxu0
        %v2403 = vpop.f32.mrf.mxu0
        %v2404 = vadd.f32 0.0, %v2403
        %v2405 = vpop.f32.mrf.mxu0
        %2406 = vdwg.mxu0
        %v2411 = vunpack.c.l.b16 %v2341
        %v2412 = vunpack.c.l.b16 %v2342
        %v2413 = vunpack.c.l.b16 %v2343
        %v2414 = vunpack.c.l.b16 %v2344
        %v2415 = vpack.c.b16 %v2412, %v2411
        %v2416 = vpack.c.b16 %v2414, %v2413
        %v2420 = vsel %vm738, %v2340, 0
        %2422 = vmatprep.subr.bf16.mxu0 0
        %2423 = vmatpush1.bf16.msra.mxu0 0
        %2424 = vmatprep.subr.bf16.mxu0 0
        %2425 = vmatpush1.bf16.msra.mxu0 0
        %2426 = vmatprep.subr.bf16.mxu0 0
        %2427 = vmatpush1.bf16.msra.mxu0 0
        %2428 = vmatprep.subr.bf16.mxu0 0
        %2429 = vmatpush1.bf16.msra.mxu0 0
        %2430 = vmatprep.subr.bf16.mxu0 0
        %2431 = vmatpush1.bf16.msra.mxu0 0
        %2432 = vmatprep.subr.bf16.mxu0 0
        %2433 = vmatpush1.bf16.msra.mxu0 0
        %2434 = vmatprep.subr.bf16.mxu0 0
        %2435 = vmatpush1.bf16.msra.mxu0 %v2416
        %2436 = vmatprep.subr.bf16.mxu0 0
        %2437 = vmatpush1.bf16.msra.mxu0 %v2415
        %2438 = vmatprep.subr.bf16.mxu0 0
        %2439 = vmatpush2.bf16.msra.mxu0 0
        %2440 = vmatprep.subr.bf16.mxu0 0
        %2441 = vmatpush2.bf16.msra.mxu0 0
        %2442 = vmatprep.subr.bf16.mxu0 0
        %2443 = vmatpush2.bf16.msra.mxu0 0
        %2444 = vmatprep.subr.bf16.mxu0 0
        %2445 = vmatpush2.bf16.msra.mxu0 0
        %2446 = vmatprep.subr.bf16.mxu0 0
        %2447 = vmatpush2.bf16.msra.mxu0 0
        %2448 = vmatprep.subr.bf16.mxu0 0
        %2449 = vmatpush2.bf16.msra.mxu0 0
        %2450 = vmatprep.subr.bf16.mxu0 0
        %2451 = vmatpush2.bf16.msra.mxu0 0
        %2452 = vmatprep.subr.bf16.mxu0 0
        %2453 = vmatpush2.bf16.msra.mxu0 0
        %2454 = vmatprep.mubr.bf16.mxu0 0
        %2455 = vmatmul.mubr.bf16.gmra.mxu0 %v2420
        %v2456 = vpop.f32.mrf.mxu0
        %v2457 = vadd.f32 %v2401, %v2456
        %v2458 = vpop.f32.mrf.mxu0
        %v2459 = vpop.f32.mrf.mxu0
        %v2460 = vadd.f32 %v2404, %v2459
        %v2461 = vpop.f32.mrf.mxu0
        %2462 = vdwg.mxu0
        %v2463 = vpack.c.bf16 %v2339, %v2338
        %s2464 = scalar_lea.vmem %s14, 32
        %v2465 = vld [vmem:[%s2464] sm:$0xf]
        %v2466 = vld [vmem:[%s2464 + $0x4] sm:$0xf]
        %v2467 = vld [vmem:[%s2464 + $0x8] sm:$0xf]
        %v2468 = vld [vmem:[%s2464 + $0xc] sm:$0xf]
        %v2473 = vunpack.c.l.b16 %v2465
        %v2474 = vunpack.c.l.b16 %v2466
        %v2475 = vunpack.c.l.b16 %v2467
        %v2476 = vunpack.c.l.b16 %v2468
        %v2477 = vpack.c.b16 %v2474, %v2473
        %v2478 = vpack.c.b16 %v2476, %v2475
        %v2482 = vsel %vm738, %v2463, 0
        %2484 = vmatprep.subr.bf16.mxu0 0
        %2485 = vmatpush1.bf16.msra.mxu0 0
        %2486 = vmatprep.subr.bf16.mxu0 0
        %2487 = vmatpush1.bf16.msra.mxu0 0
        %2488 = vmatprep.subr.bf16.mxu0 0
        %2489 = vmatpush1.bf16.msra.mxu0 0
        %2490 = vmatprep.subr.bf16.mxu0 0
        %2491 = vmatpush1.bf16.msra.mxu0 0
        %2492 = vmatprep.subr.bf16.mxu0 0
        %2493 = vmatpush1.bf16.msra.mxu0 0
        %2494 = vmatprep.subr.bf16.mxu0 0
        %2495 = vmatpush1.bf16.msra.mxu0 0
        %2496 = vmatprep.subr.bf16.mxu0 0
        %2497 = vmatpush1.bf16.msra.mxu0 %v2478
        %2498 = vmatprep.subr.bf16.mxu0 0
        %2499 = vmatpush1.bf16.msra.mxu0 %v2477
        %2500 = vmatprep.subr.bf16.mxu0 0
        %2501 = vmatpush2.bf16.msra.mxu0 0
        %2502 = vmatprep.subr.bf16.mxu0 0
        %2503 = vmatpush2.bf16.msra.mxu0 0
        %2504 = vmatprep.subr.bf16.mxu0 0
        %2505 = vmatpush2.bf16.msra.mxu0 0
        %2506 = vmatprep.subr.bf16.mxu0 0
        %2507 = vmatpush2.bf16.msra.mxu0 0
        %2508 = vmatprep.subr.bf16.mxu0 0
        %2509 = vmatpush2.bf16.msra.mxu0 0
        %2510 = vmatprep.subr.bf16.mxu0 0
        %2511 = vmatpush2.bf16.msra.mxu0 0
        %2512 = vmatprep.subr.bf16.mxu0 0
        %2513 = vmatpush2.bf16.msra.mxu0 0
        %2514 = vmatprep.subr.bf16.mxu0 0
        %2515 = vmatpush2.bf16.msra.mxu0 0
        %2516 = vmatprep.mubr.bf16.mxu0 0
        %2517 = vmatmul.mubr.bf16.gmra.mxu0 %v2482
        %v2518 = vpop.f32.mrf.mxu0
        %v2519 = vadd.f32 0.0, %v2518
        %v2520 = vpop.f32.mrf.mxu0
        %v2521 = vpop.f32.mrf.mxu0
        %v2522 = vadd.f32 0.0, %v2521
        %v2523 = vpop.f32.mrf.mxu0
        %2524 = vdwg.mxu0
        %v2525 = vadd.f32 %v2457, %v2519
        %v2526 = vadd.f32 %v2460, %v2522
        %v2527 = vmax.f32 %v2525, 0.0
        %v2528 = vmax.f32 %v2526, 0.0
        %v2529 = vrot.slane %v2527, 7
        %v2530 = vrot.slane %v2528, 7
        %v2531 = vsel %vm2332, %v2529, %v2530
        %v2532 = vsel %vm2332, %v2530, %v2529
        %v2533 = vrot.slane %v2527, 1
        %v2534 = vrot.slane %v2528, 1
        %v2535 = vsel %vm2337, %v2533, %v2534
        %v2536 = vsel %vm2337, %v2534, %v2533
        %v2537 = vpack.c.bf16 %v2531, %v2532
        %v2538 = vld [vmem:[%s15] sm:$0xf]
        %v2539 = vld [vmem:[%s15 + $0x4] sm:$0xf]
        %v2540 = vld [vmem:[%s15 + $0x8] sm:$0xf]
        %v2541 = vld [vmem:[%s15 + $0xc] sm:$0xf]
        %v2542 = vld [vmem:[%s15 + $0x10] sm:$0xf]
        %v2543 = vld [vmem:[%s15 + $0x14] sm:$0xf]
        %v2544 = vld [vmem:[%s15 + $0x18] sm:$0xf]
        %v2545 = vld [vmem:[%s15 + $0x1c] sm:$0xf]
        %v2546 = vld [vmem:[%s15 + $0x20] sm:$0xf]
        %v2547 = vld [vmem:[%s15 + $0x24] sm:$0xf]
        %v2548 = vld [vmem:[%s15 + $0x28] sm:$0xf]
        %v2549 = vld [vmem:[%s15 + $0x2c] sm:$0xf]
        %v2550 = vld [vmem:[%s15 + $0x30] sm:$0xf]
        %v2551 = vld [vmem:[%s15 + $0x34] sm:$0xf]
        %v2552 = vld [vmem:[%s15 + $0x38] sm:$0xf]
        %v2553 = vld [vmem:[%s15 + $0x3c] sm:$0xf]
        %v2554 = vpack.c.bf16 %v2528, %v2527
        %s2555 = scalar_lea.vmem %s15, 64
        %v2556 = vld [vmem:[%s2555] sm:$0xf]
        %v2557 = vld [vmem:[%s2555 + $0x4] sm:$0xf]
        %v2558 = vld [vmem:[%s2555 + $0x8] sm:$0xf]
        %v2559 = vld [vmem:[%s2555 + $0xc] sm:$0xf]
        %v2560 = vld [vmem:[%s2555 + $0x10] sm:$0xf]
        %v2561 = vld [vmem:[%s2555 + $0x14] sm:$0xf]
        %v2562 = vld [vmem:[%s2555 + $0x18] sm:$0xf]
        %v2563 = vld [vmem:[%s2555 + $0x1c] sm:$0xf]
        %v2564 = vld [vmem:[%s2555 + $0x20] sm:$0xf]
        %v2565 = vld [vmem:[%s2555 + $0x24] sm:$0xf]
        %v2566 = vld [vmem:[%s2555 + $0x28] sm:$0xf]
        %v2567 = vld [vmem:[%s2555 + $0x2c] sm:$0xf]
        %v2568 = vld [vmem:[%s2555 + $0x30] sm:$0xf]
        %v2569 = vld [vmem:[%s2555 + $0x34] sm:$0xf]
        %v2570 = vld [vmem:[%s2555 + $0x38] sm:$0xf]
        %v2571 = vld [vmem:[%s2555 + $0x3c] sm:$0xf]
        %v2588 = vunpack.c.l.b16 %v2556
        %v2589 = vunpack.c.l.b16 %v2557
        %v2590 = vunpack.c.l.b16 %v2558
        %v2591 = vunpack.c.l.b16 %v2559
        %v2592 = vunpack.c.l.b16 %v2560
        %v2593 = vunpack.c.l.b16 %v2561
        %v2594 = vunpack.c.l.b16 %v2562
        %v2595 = vunpack.c.l.b16 %v2563
        %v2596 = vunpack.c.l.b16 %v2564
        %v2597 = vunpack.c.l.b16 %v2565
        %v2598 = vunpack.c.l.b16 %v2566
        %v2599 = vunpack.c.l.b16 %v2567
        %v2600 = vunpack.c.l.b16 %v2568
        %v2601 = vunpack.c.l.b16 %v2569
        %v2602 = vunpack.c.l.b16 %v2570
        %v2603 = vunpack.c.l.b16 %v2571
        %v2604 = vpack.c.b16 %v2589, %v2588
        %v2605 = vpack.c.b16 %v2591, %v2590
        %v2606 = vpack.c.b16 %v2593, %v2592
        %v2607 = vpack.c.b16 %v2595, %v2594
        %v2608 = vpack.c.b16 %v2597, %v2596
        %v2609 = vpack.c.b16 %v2599, %v2598
        %v2610 = vpack.c.b16 %v2601, %v2600
        %v2611 = vpack.c.b16 %v2603, %v2602
        %2620 = vmatprep.subr.bf16.mxu0 0
        %2621 = vmatpush1.bf16.msra.mxu0 %v2611
        %2622 = vmatprep.subr.bf16.mxu0 0
        %2623 = vmatpush1.bf16.msra.mxu0 %v2610
        %2624 = vmatprep.subr.bf16.mxu0 0
        %2625 = vmatpush1.bf16.msra.mxu0 %v2609
        %2626 = vmatprep.subr.bf16.mxu0 0
        %2627 = vmatpush1.bf16.msra.mxu0 %v2608
        %2628 = vmatprep.subr.bf16.mxu0 0
        %2629 = vmatpush1.bf16.msra.mxu0 %v2607
        %2630 = vmatprep.subr.bf16.mxu0 0
        %2631 = vmatpush1.bf16.msra.mxu0 %v2606
        %2632 = vmatprep.subr.bf16.mxu0 0
        %2633 = vmatpush1.bf16.msra.mxu0 %v2605
        %2634 = vmatprep.subr.bf16.mxu0 0
        %2635 = vmatpush1.bf16.msra.mxu0 %v2604
        %2636 = vmatprep.subr.bf16.mxu0 0
        %2637 = vmatpush2.bf16.msra.mxu0 0
        %2638 = vmatprep.subr.bf16.mxu0 0
        %2639 = vmatpush2.bf16.msra.mxu0 0
        %2640 = vmatprep.subr.bf16.mxu0 0
        %2641 = vmatpush2.bf16.msra.mxu0 0
        %2642 = vmatprep.subr.bf16.mxu0 0
        %2643 = vmatpush2.bf16.msra.mxu0 0
        %2644 = vmatprep.subr.bf16.mxu0 0
        %2645 = vmatpush2.bf16.msra.mxu0 0
        %2646 = vmatprep.subr.bf16.mxu0 0
        %2647 = vmatpush2.bf16.msra.mxu0 0
        %2648 = vmatprep.subr.bf16.mxu0 0
        %2649 = vmatpush2.bf16.msra.mxu0 0
        %2650 = vmatprep.subr.bf16.mxu0 0
        %2651 = vmatpush2.bf16.msra.mxu0 0
        %2652 = vmatprep.mubr.bf16.mxu0 0
        %2653 = vmatmul.mubr.bf16.gmra.mxu0 %v2554
        %v2654 = vpop.f32.mrf.mxu0
        %v2655 = vadd.f32 0.0, %v2654
        %v2656 = vpop.f32.mrf.mxu0
        %v2657 = vpop.f32.mrf.mxu0
        %v2658 = vadd.f32 0.0, %v2657
        %v2659 = vpop.f32.mrf.mxu0
        %2660 = vdwg.mxu0
        %v2677 = vunpack.c.l.b16 %v2538
        %v2678 = vunpack.c.l.b16 %v2539
        %v2679 = vunpack.c.l.b16 %v2540
        %v2680 = vunpack.c.l.b16 %v2541
        %v2681 = vunpack.c.l.b16 %v2542
        %v2682 = vunpack.c.l.b16 %v2543
        %v2683 = vunpack.c.l.b16 %v2544
        %v2684 = vunpack.c.l.b16 %v2545
        %v2685 = vunpack.c.l.b16 %v2546
        %v2686 = vunpack.c.l.b16 %v2547
        %v2687 = vunpack.c.l.b16 %v2548
        %v2688 = vunpack.c.l.b16 %v2549
        %v2689 = vunpack.c.l.b16 %v2550
        %v2690 = vunpack.c.l.b16 %v2551
        %v2691 = vunpack.c.l.b16 %v2552
        %v2692 = vunpack.c.l.b16 %v2553
        %v2693 = vpack.c.b16 %v2678, %v2677
        %v2694 = vpack.c.b16 %v2680, %v2679
        %v2695 = vpack.c.b16 %v2682, %v2681
        %v2696 = vpack.c.b16 %v2684, %v2683
        %v2697 = vpack.c.b16 %v2686, %v2685
        %v2698 = vpack.c.b16 %v2688, %v2687
        %v2699 = vpack.c.b16 %v2690, %v2689
        %v2700 = vpack.c.b16 %v2692, %v2691
        %2709 = vmatprep.subr.bf16.mxu0 0
        %2710 = vmatpush1.bf16.msra.mxu0 %v2700
        %2711 = vmatprep.subr.bf16.mxu0 0
        %2712 = vmatpush1.bf16.msra.mxu0 %v2699
        %2713 = vmatprep.subr.bf16.mxu0 0
        %2714 = vmatpush1.bf16.msra.mxu0 %v2698
        %2715 = vmatprep.subr.bf16.mxu0 0
        %2716 = vmatpush1.bf16.msra.mxu0 %v2697
        %2717 = vmatprep.subr.bf16.mxu0 0
        %2718 = vmatpush1.bf16.msra.mxu0 %v2696
        %2719 = vmatprep.subr.bf16.mxu0 0
        %2720 = vmatpush1.bf16.msra.mxu0 %v2695
        %2721 = vmatprep.subr.bf16.mxu0 0
        %2722 = vmatpush1.bf16.msra.mxu0 %v2694
        %2723 = vmatprep.subr.bf16.mxu0 0
        %2724 = vmatpush1.bf16.msra.mxu0 %v2693
        %2725 = vmatprep.subr.bf16.mxu0 0
        %2726 = vmatpush2.bf16.msra.mxu0 0
        %2727 = vmatprep.subr.bf16.mxu0 0
        %2728 = vmatpush2.bf16.msra.mxu0 0
        %2729 = vmatprep.subr.bf16.mxu0 0
        %2730 = vmatpush2.bf16.msra.mxu0 0
        %2731 = vmatprep.subr.bf16.mxu0 0
        %2732 = vmatpush2.bf16.msra.mxu0 0
        %2733 = vmatprep.subr.bf16.mxu0 0
        %2734 = vmatpush2.bf16.msra.mxu0 0
        %2735 = vmatprep.subr.bf16.mxu0 0
        %2736 = vmatpush2.bf16.msra.mxu0 0
        %2737 = vmatprep.subr.bf16.mxu0 0
        %2738 = vmatpush2.bf16.msra.mxu0 0
        %2739 = vmatprep.subr.bf16.mxu0 0
        %2740 = vmatpush2.bf16.msra.mxu0 0
        %2741 = vmatprep.mubr.bf16.mxu0 0
        %2742 = vmatmul.mubr.bf16.gmra.mxu0 %v2537
        %v2743 = vpop.f32.mrf.mxu0
        %v2744 = vadd.f32 %v2655, %v2743
        %v2745 = vpop.f32.mrf.mxu0
        %v2746 = vpop.f32.mrf.mxu0
        %v2747 = vadd.f32 %v2658, %v2746
        %v2748 = vpop.f32.mrf.mxu0
        %2749 = vdwg.mxu0
        %v2750 = vpack.c.bf16 %v2536, %v2535
        %s2751 = scalar_lea.vmem %s15, 128
        %v2752 = vld [vmem:[%s2751] sm:$0xf]
        %v2753 = vld [vmem:[%s2751 + $0x4] sm:$0xf]
        %v2754 = vld [vmem:[%s2751 + $0x8] sm:$0xf]
        %v2755 = vld [vmem:[%s2751 + $0xc] sm:$0xf]
        %v2756 = vld [vmem:[%s2751 + $0x10] sm:$0xf]
        %v2757 = vld [vmem:[%s2751 + $0x14] sm:$0xf]
        %v2758 = vld [vmem:[%s2751 + $0x18] sm:$0xf]
        %v2759 = vld [vmem:[%s2751 + $0x1c] sm:$0xf]
        %v2760 = vld [vmem:[%s2751 + $0x20] sm:$0xf]
        %v2761 = vld [vmem:[%s2751 + $0x24] sm:$0xf]
        %v2762 = vld [vmem:[%s2751 + $0x28] sm:$0xf]
        %v2763 = vld [vmem:[%s2751 + $0x2c] sm:$0xf]
        %v2764 = vld [vmem:[%s2751 + $0x30] sm:$0xf]
        %v2765 = vld [vmem:[%s2751 + $0x34] sm:$0xf]
        %v2766 = vld [vmem:[%s2751 + $0x38] sm:$0xf]
        %v2767 = vld [vmem:[%s2751 + $0x3c] sm:$0xf]
        %v2784 = vunpack.c.l.b16 %v2752
        %v2785 = vunpack.c.l.b16 %v2753
        %v2786 = vunpack.c.l.b16 %v2754
        %v2787 = vunpack.c.l.b16 %v2755
        %v2788 = vunpack.c.l.b16 %v2756
        %v2789 = vunpack.c.l.b16 %v2757
        %v2790 = vunpack.c.l.b16 %v2758
        %v2791 = vunpack.c.l.b16 %v2759
        %v2792 = vunpack.c.l.b16 %v2760
        %v2793 = vunpack.c.l.b16 %v2761
        %v2794 = vunpack.c.l.b16 %v2762
        %v2795 = vunpack.c.l.b16 %v2763
        %v2796 = vunpack.c.l.b16 %v2764
        %v2797 = vunpack.c.l.b16 %v2765
        %v2798 = vunpack.c.l.b16 %v2766
        %v2799 = vunpack.c.l.b16 %v2767
        %v2800 = vpack.c.b16 %v2785, %v2784
        %v2801 = vpack.c.b16 %v2787, %v2786
        %v2802 = vpack.c.b16 %v2789, %v2788
        %v2803 = vpack.c.b16 %v2791, %v2790
        %v2804 = vpack.c.b16 %v2793, %v2792
        %v2805 = vpack.c.b16 %v2795, %v2794
        %v2806 = vpack.c.b16 %v2797, %v2796
        %v2807 = vpack.c.b16 %v2799, %v2798
        %2816 = vmatprep.subr.bf16.mxu0 0
        %2817 = vmatpush1.bf16.msra.mxu0 %v2807
        %2818 = vmatprep.subr.bf16.mxu0 0
        %2819 = vmatpush1.bf16.msra.mxu0 %v2806
        %2820 = vmatprep.subr.bf16.mxu0 0
        %2821 = vmatpush1.bf16.msra.mxu0 %v2805
        %2822 = vmatprep.subr.bf16.mxu0 0
        %2823 = vmatpush1.bf16.msra.mxu0 %v2804
        %2824 = vmatprep.subr.bf16.mxu0 0
        %2825 = vmatpush1.bf16.msra.mxu0 %v2803
        %2826 = vmatprep.subr.bf16.mxu0 0
        %2827 = vmatpush1.bf16.msra.mxu0 %v2802
        %2828 = vmatprep.subr.bf16.mxu0 0
        %2829 = vmatpush1.bf16.msra.mxu0 %v2801
        %2830 = vmatprep.subr.bf16.mxu0 0
        %2831 = vmatpush1.bf16.msra.mxu0 %v2800
        %2832 = vmatprep.subr.bf16.mxu0 0
        %2833 = vmatpush2.bf16.msra.mxu0 0
        %2834 = vmatprep.subr.bf16.mxu0 0
        %2835 = vmatpush2.bf16.msra.mxu0 0
        %2836 = vmatprep.subr.bf16.mxu0 0
        %2837 = vmatpush2.bf16.msra.mxu0 0
        %2838 = vmatprep.subr.bf16.mxu0 0
        %2839 = vmatpush2.bf16.msra.mxu0 0
        %2840 = vmatprep.subr.bf16.mxu0 0
        %2841 = vmatpush2.bf16.msra.mxu0 0
        %2842 = vmatprep.subr.bf16.mxu0 0
        %2843 = vmatpush2.bf16.msra.mxu0 0
        %2844 = vmatprep.subr.bf16.mxu0 0
        %2845 = vmatpush2.bf16.msra.mxu0 0
        %2846 = vmatprep.subr.bf16.mxu0 0
        %2847 = vmatpush2.bf16.msra.mxu0 0
        %2848 = vmatprep.mubr.bf16.mxu0 0
        %2849 = vmatmul.mubr.bf16.gmra.mxu0 %v2750
        %v2850 = vpop.f32.mrf.mxu0
        %v2851 = vadd.f32 0.0, %v2850
        %v2852 = vpop.f32.mrf.mxu0
        %v2853 = vpop.f32.mrf.mxu0
        %v2854 = vadd.f32 0.0, %v2853
        %v2855 = vpop.f32.mrf.mxu0
        %2856 = vdwg.mxu0
        %v2857 = vadd.f32 %v2744, %v2851
        %v2858 = vadd.f32 %v2747, %v2854
        %v2859 = vadd.f32 %v2326, %v2857
        %v2860 = vadd.f32 %v2327, %v2858
        %2861 = vmatprep.subr.mxu0 0.0
        %2862 = vmatpush1.msra.mxu0 0.0
        %2863 = vmatprep.subr.mxu0 0.0
        %2864 = vmatpush1.msra.mxu0 0.0
        %2865 = vmatprep.subr.mxu0 0.0
        %2866 = vmatpush1.msra.mxu0 0.0
        %2867 = vmatprep.subr.mxu0 0.0
        %2868 = vmatpush1.msra.mxu0 0.0
        %2869 = vmatprep.subr.mxu0 0.0
        %2870 = vmatpush1.msra.mxu0 0.0
        %2871 = vmatprep.subr.mxu0 0.0
        %2872 = vmatpush1.msra.mxu0 0.0
        %2873 = vmatprep.subr.mxu0 0.0
        %2874 = vmatpush1.msra.mxu0 0.0
        %2875 = vmatprep.subr.mxu0 0.0
        %2876 = vmatpush1.msra.mxu0 0.0
        %2877 = vmatprep.subr.mxu0 0.0
        %2878 = vmatpush1.msra.mxu0 0.0
        %2879 = vmatprep.subr.mxu0 0.0
        %2880 = vmatpush1.msra.mxu0 0.0
        %2881 = vmatprep.subr.mxu0 0.0
        %2882 = vmatpush1.msra.mxu0 0.0
        %2883 = vmatprep.subr.mxu0 0.0
        %2884 = vmatpush1.msra.mxu0 0.0
        %2885 = vmatprep.subr.mxu0 0.0
        %2886 = vmatpush1.msra.mxu0 0.0
        %2887 = vmatprep.subr.mxu0 0.0
        %2888 = vmatpush1.msra.mxu0 0.0
        %2889 = vmatprep.subr.mxu0 0.0
        %2890 = vmatpush1.msra.mxu0 %v2860
        %2891 = vmatprep.subr.mxu0 0.0
        %2892 = vmatpush1.msra.mxu0 %v2859
        %2893 = vmatprep.subr.mxu0 0.0
        %2894 = vmatpush2.msra.mxu0 0.0
        %2895 = vmatprep.subr.mxu0 0.0
        %2896 = vmatpush2.msra.mxu0 0.0
        %2897 = vmatprep.subr.mxu0 0.0
        %2898 = vmatpush2.msra.mxu0 0.0
        %2899 = vmatprep.subr.mxu0 0.0
        %2900 = vmatpush2.msra.mxu0 0.0
        %2901 = vmatprep.subr.mxu0 0.0
        %2902 = vmatpush2.msra.mxu0 0.0
        %2903 = vmatprep.subr.mxu0 0.0
        %2904 = vmatpush2.msra.mxu0 0.0
        %2905 = vmatprep.subr.mxu0 0.0
        %2906 = vmatpush2.msra.mxu0 0.0
        %2907 = vmatprep.subr.mxu0 0.0
        %2908 = vmatpush2.msra.mxu0 0.0
        %2909 = vmatprep.subr.mxu0 0.0
        %2910 = vmatpush2.msra.mxu0 0.0
        %2911 = vmatprep.subr.mxu0 0.0
        %2912 = vmatpush2.msra.mxu0 0.0
        %2913 = vmatprep.subr.mxu0 0.0
        %2914 = vmatpush2.msra.mxu0 0.0
        %2915 = vmatprep.subr.mxu0 0.0
        %2916 = vmatpush2.msra.mxu0 0.0
        %2917 = vmatprep.subr.mxu0 0.0
        %2918 = vmatpush2.msra.mxu0 0.0
        %2919 = vmatprep.subr.mxu0 0.0
        %2920 = vmatpush2.msra.mxu0 0.0
        %2921 = vmatprep.subr.mxu0 0.0
        %2922 = vmatpush2.msra.mxu0 0.0
        %2923 = vmatprep.subr.mxu0 0.0
        %2924 = vmatpush2.msra.mxu0 0.0
        %2925 = vmatprep.mubr.f32.mxu0 0.0
        %2926 = vmatmul.mubr.f32.gmra.mxu0 %v1456
        %v2927 = vpop.f32.mrf.mxu0
        %v2928 = vadd.f32 0.0, %v2927
        %v2929 = vpop.f32.mrf.mxu0
        %2930 = vmatprep.mubr.f32.mxu0 0.0
        %2931 = vmatmul.mubr.f32.gmra.mxu0 %v1459
        %v2932 = vpop.f32.mrf.mxu0
        %v2933 = vadd.f32 0.0, %v2932
        %v2934 = vpop.f32.mrf.mxu0
        %2935 = vdwg.mxu0
        %v2936 = vsub.f32 %v2859, %v2928
        %v2937 = vsub.f32 %v2860, %v2933
        %2938 = vst.msk [vmem:[%s707] sm:$0xff] %vm738, %v2936
        %2939 = vst.msk [vmem:[%s707 + $0x8] sm:$0xff] %vm738, %v2937
        %v2940 = vld [vmem:[%s729] sm:$0xff]
        %v2941 = vld [vmem:[%s729 + $0x8] sm:$0xff]
        %v2942 = vpack.c.bf16 %v1533, %v1528
        %v2943 = vld [vmem:[%s16] sm:$0xf]
        %v2944 = vld [vmem:[%s16 + $0x4] sm:$0xf]
        %v2945 = vld [vmem:[%s16 + $0x8] sm:$0xf]
        %v2946 = vld [vmem:[%s16 + $0xc] sm:$0xf]
        %v2947 = vpack.c.bf16 %v2323, %v2318
        %v2948 = vld [vmem:[%s17] sm:$0xf]
        %v2949 = vld [vmem:[%s17 + $0x4] sm:$0xf]
        %v2950 = vld [vmem:[%s17 + $0x8] sm:$0xf]
        %v2951 = vld [vmem:[%s17 + $0xc] sm:$0xf]
        %v2956 = vunpack.c.l.b16 %v2948
        %v2957 = vunpack.c.l.b16 %v2949
        %v2958 = vunpack.c.l.b16 %v2950
        %v2959 = vunpack.c.l.b16 %v2951
        %v2960 = vpack.c.b16 %v2957, %v2956
        %v2961 = vpack.c.b16 %v2959, %v2958
        %v2965 = vsel %vm738, %v2947, 0
        %2967 = vmatprep.subr.bf16.mxu0 0
        %2968 = vmatpush1.bf16.msra.mxu0 0
        %2969 = vmatprep.subr.bf16.mxu0 0
        %2970 = vmatpush1.bf16.msra.mxu0 0
        %2971 = vmatprep.subr.bf16.mxu0 0
        %2972 = vmatpush1.bf16.msra.mxu0 0
        %2973 = vmatprep.subr.bf16.mxu0 0
        %2974 = vmatpush1.bf16.msra.mxu0 0
        %2975 = vmatprep.subr.bf16.mxu0 0
        %2976 = vmatpush1.bf16.msra.mxu0 0
        %2977 = vmatprep.subr.bf16.mxu0 0
        %2978 = vmatpush1.bf16.msra.mxu0 0
        %2979 = vmatprep.subr.bf16.mxu0 0
        %2980 = vmatpush1.bf16.msra.mxu0 %v2961
        %2981 = vmatprep.subr.bf16.mxu0 0
        %2982 = vmatpush1.bf16.msra.mxu0 %v2960
        %2983 = vmatprep.subr.bf16.mxu0 0
        %2984 = vmatpush2.bf16.msra.mxu0 0
        %2985 = vmatprep.subr.bf16.mxu0 0
        %2986 = vmatpush2.bf16.msra.mxu0 0
        %2987 = vmatprep.subr.bf16.mxu0 0
        %2988 = vmatpush2.bf16.msra.mxu0 0
        %2989 = vmatprep.subr.bf16.mxu0 0
        %2990 = vmatpush2.bf16.msra.mxu0 0
        %2991 = vmatprep.subr.bf16.mxu0 0
        %2992 = vmatpush2.bf16.msra.mxu0 0
        %2993 = vmatprep.subr.bf16.mxu0 0
        %2994 = vmatpush2.bf16.msra.mxu0 0
        %2995 = vmatprep.subr.bf16.mxu0 0
        %2996 = vmatpush2.bf16.msra.mxu0 0
        %2997 = vmatprep.subr.bf16.mxu0 0
        %2998 = vmatpush2.bf16.msra.mxu0 0
        %2999 = vmatprep.mubr.bf16.mxu0 0
        %3000 = vmatmul.mubr.bf16.gmra.mxu0 %v2965
        %v3001 = vpop.f32.mrf.mxu0
        %v3002 = vadd.f32 0.0, %v3001
        %v3003 = vpop.f32.mrf.mxu0
        %v3004 = vpop.f32.mrf.mxu0
        %v3005 = vadd.f32 0.0, %v3004
        %v3006 = vpop.f32.mrf.mxu0
        %3007 = vdwg.mxu0
        %v3012 = vunpack.c.l.b16 %v2943
        %v3013 = vunpack.c.l.b16 %v2944
        %v3014 = vunpack.c.l.b16 %v2945
        %v3015 = vunpack.c.l.b16 %v2946
        %v3016 = vpack.c.b16 %v3013, %v3012
        %v3017 = vpack.c.b16 %v3015, %v3014
        %v3021 = vsel %vm738, %v2942, 0
        %3023 = vmatprep.subr.bf16.mxu0 0
        %3024 = vmatpush1.bf16.msra.mxu0 0
        %3025 = vmatprep.subr.bf16.mxu0 0
        %3026 = vmatpush1.bf16.msra.mxu0 0
        %3027 = vmatprep.subr.bf16.mxu0 0
        %3028 = vmatpush1.bf16.msra.mxu0 0
        %3029 = vmatprep.subr.bf16.mxu0 0
        %3030 = vmatpush1.bf16.msra.mxu0 0
        %3031 = vmatprep.subr.bf16.mxu0 0
        %3032 = vmatpush1.bf16.msra.mxu0 0
        %3033 = vmatprep.subr.bf16.mxu0 0
        %3034 = vmatpush1.bf16.msra.mxu0 0
        %3035 = vmatprep.subr.bf16.mxu0 0
        %3036 = vmatpush1.bf16.msra.mxu0 %v3017
        %3037 = vmatprep.subr.bf16.mxu0 0
        %3038 = vmatpush1.bf16.msra.mxu0 %v3016
        %3039 = vmatprep.subr.bf16.mxu0 0
        %3040 = vmatpush2.bf16.msra.mxu0 0
        %3041 = vmatprep.subr.bf16.mxu0 0
        %3042 = vmatpush2.bf16.msra.mxu0 0
        %3043 = vmatprep.subr.bf16.mxu0 0
        %3044 = vmatpush2.bf16.msra.mxu0 0
        %3045 = vmatprep.subr.bf16.mxu0 0
        %3046 = vmatpush2.bf16.msra.mxu0 0
        %3047 = vmatprep.subr.bf16.mxu0 0
        %3048 = vmatpush2.bf16.msra.mxu0 0
        %3049 = vmatprep.subr.bf16.mxu0 0
        %3050 = vmatpush2.bf16.msra.mxu0 0
        %3051 = vmatprep.subr.bf16.mxu0 0
        %3052 = vmatpush2.bf16.msra.mxu0 0
        %3053 = vmatprep.subr.bf16.mxu0 0
        %3054 = vmatpush2.bf16.msra.mxu0 0
        %3055 = vmatprep.mubr.bf16.mxu0 0
        %3056 = vmatmul.mubr.bf16.gmra.mxu0 %v3021
        %v3057 = vpop.f32.mrf.mxu0
        %v3058 = vadd.f32 %v3002, %v3057
        %v3059 = vpop.f32.mrf.mxu0
        %v3060 = vpop.f32.mrf.mxu0
        %v3061 = vadd.f32 %v3005, %v3060
        %v3062 = vpop.f32.mrf.mxu0
        %3063 = vdwg.mxu0
        %v3064 = vpack.c.bf16 %v2933, %v2928
        %v3065 = vld [vmem:[%s18] sm:$0xf]
        %v3066 = vld [vmem:[%s18 + $0x4] sm:$0xf]
        %v3067 = vld [vmem:[%s18 + $0x8] sm:$0xf]
        %v3068 = vld [vmem:[%s18 + $0xc] sm:$0xf]
        %v3073 = vunpack.c.l.b16 %v3065
        %v3074 = vunpack.c.l.b16 %v3066
        %v3075 = vunpack.c.l.b16 %v3067
        %v3076 = vunpack.c.l.b16 %v3068
        %v3077 = vpack.c.b16 %v3074, %v3073
        %v3078 = vpack.c.b16 %v3076, %v3075
        %v3082 = vsel %vm738, %v3064, 0
        %3084 = vmatprep.subr.bf16.mxu0 0
        %3085 = vmatpush1.bf16.msra.mxu0 0
        %3086 = vmatprep.subr.bf16.mxu0 0
        %3087 = vmatpush1.bf16.msra.mxu0 0
        %3088 = vmatprep.subr.bf16.mxu0 0
        %3089 = vmatpush1.bf16.msra.mxu0 0
        %3090 = vmatprep.subr.bf16.mxu0 0
        %3091 = vmatpush1.bf16.msra.mxu0 0
        %3092 = vmatprep.subr.bf16.mxu0 0
        %3093 = vmatpush1.bf16.msra.mxu0 0
        %3094 = vmatprep.subr.bf16.mxu0 0
        %3095 = vmatpush1.bf16.msra.mxu0 0
        %3096 = vmatprep.subr.bf16.mxu0 0
        %3097 = vmatpush1.bf16.msra.mxu0 %v3078
        %3098 = vmatprep.subr.bf16.mxu0 0
        %3099 = vmatpush1.bf16.msra.mxu0 %v3077
        %3100 = vmatprep.subr.bf16.mxu0 0
        %3101 = vmatpush2.bf16.msra.mxu0 0
        %3102 = vmatprep.subr.bf16.mxu0 0
        %3103 = vmatpush2.bf16.msra.mxu0 0
        %3104 = vmatprep.subr.bf16.mxu0 0
        %3105 = vmatpush2.bf16.msra.mxu0 0
        %3106 = vmatprep.subr.bf16.mxu0 0
        %3107 = vmatpush2.bf16.msra.mxu0 0
        %3108 = vmatprep.subr.bf16.mxu0 0
        %3109 = vmatpush2.bf16.msra.mxu0 0
        %3110 = vmatprep.subr.bf16.mxu0 0
        %3111 = vmatpush2.bf16.msra.mxu0 0
        %3112 = vmatprep.subr.bf16.mxu0 0
        %3113 = vmatpush2.bf16.msra.mxu0 0
        %3114 = vmatprep.subr.bf16.mxu0 0
        %3115 = vmatpush2.bf16.msra.mxu0 0
        %3116 = vmatprep.mubr.bf16.mxu0 0
        %3117 = vmatmul.mubr.bf16.gmra.mxu0 %v3082
        %v3118 = vpop.f32.mrf.mxu0
        %v3119 = vadd.f32 0.0, %v3118
        %v3120 = vpop.f32.mrf.mxu0
        %v3121 = vpop.f32.mrf.mxu0
        %v3122 = vadd.f32 0.0, %v3121
        %v3123 = vpop.f32.mrf.mxu0
        %3124 = vdwg.mxu0
        %v3125 = vadd.f32 %v3058, %v3119
        %v3126 = vadd.f32 %v3061, %v3122
        %v3127 = vpack.c.bf16 %v2941, %v2940
        %v3128 = vld [vmem:[%s19] sm:$0x3]
        %vm3129 = vcmask 31744
        %v3131 = vsel %vm3129, %v3127, 0
        %vm3133 = vcmask 1041408
        %v3135 = vsel %vm3133, %v3128, 0
        %3137 = vmatprep.subr.bf16.mxu0 0
        %3138 = vmatpush1.bf16.msra.mxu0 0
        %3139 = vmatprep.subr.bf16.mxu0 0
        %3140 = vmatpush1.bf16.msra.mxu0 0
        %3141 = vmatprep.subr.bf16.mxu0 0
        %3142 = vmatpush1.bf16.msra.mxu0 0
        %3143 = vmatprep.subr.bf16.mxu0 0
        %3144 = vmatpush1.bf16.msra.mxu0 0
        %3145 = vmatprep.subr.bf16.mxu0 0
        %3146 = vmatpush1.bf16.msra.mxu0 0
        %3147 = vmatprep.subr.bf16.mxu0 0
        %3148 = vmatpush1.bf16.msra.mxu0 0
        %3149 = vmatprep.subr.bf16.mxu0 0
        %3150 = vmatpush1.bf16.msra.mxu0 0
        %3151 = vmatprep.subr.bf16.mxu0 0
        %3152 = vmatpush1.bf16.msra.mxu0 %v3135
        %3153 = vmatprep.subr.bf16.mxu0 0
        %3154 = vmatpush2.bf16.msra.mxu0 0
        %3155 = vmatprep.subr.bf16.mxu0 0
        %3156 = vmatpush2.bf16.msra.mxu0 0
        %3157 = vmatprep.subr.bf16.mxu0 0
        %3158 = vmatpush2.bf16.msra.mxu0 0
        %3159 = vmatprep.subr.bf16.mxu0 0
        %3160 = vmatpush2.bf16.msra.mxu0 0
        %3161 = vmatprep.subr.bf16.mxu0 0
        %3162 = vmatpush2.bf16.msra.mxu0 0
        %3163 = vmatprep.subr.bf16.mxu0 0
        %3164 = vmatpush2.bf16.msra.mxu0 0
        %3165 = vmatprep.subr.bf16.mxu0 0
        %3166 = vmatpush2.bf16.msra.mxu0 0
        %3167 = vmatprep.subr.bf16.mxu0 0
        %3168 = vmatpush2.bf16.msra.mxu0 0
        %3169 = vmatprep.mubr.bf16.mxu0 0
        %3170 = vmatmul.mubr.bf16.gmra.mxu0 %v3131
        %v3171 = vpop.f32.mrf.mxu0
        %v3172 = vadd.f32 0.0, %v3171
        %v3173 = vpop.f32.mrf.mxu0
        %v3174 = vpop.f32.mrf.mxu0
        %v3175 = vadd.f32 0.0, %v3174
        %v3176 = vpop.f32.mrf.mxu0
        %3177 = vdwg.mxu0
        %v3178 = vadd.f32 %v3125, %v3172
        %v3179 = vadd.f32 %v3126, %v3175
        %v3180 = vld [vmem:[%s20] sm:$0x1]
        %v3182 = vlaneseq
        %v3183 = vshrl.u32 %v3182, 7
        %v3184 = vsub.s32 0, %v3183
        %v3185 = vrot.slane %v3180, %v3184
        %v3187 = vadd.f32 %v3178, %v3185
        %v3188 = vadd.f32 %v3179, %v3185
        %3189 = vst.msk [vmem:[%s734] sm:$0xff] %vm3129, %v3187
        %3190 = vst.msk [vmem:[%s734 + $0x8] sm:$0xff] %vm3129, %v3188
        %s3191 = sand.u32 %s501, 1
        %s3192 = scalar_lea.sflag [#allocation4], %s3191
        %s3193 = sand.u32 %s501, 1
        %s3194 = smul.addr %s3193, 16
        %s3195 = scalar_lea.vmem [#allocation3], %s3194
        %p3196 = scmp.lt.s32.totalorder %s37, 1
        %s3197 = scalar_select %p3196, %s37, 1
        %s3198 = smul.addr %s3197, 2
        %s3199 = smul.addr %s3198, 8
        %s3200 = scalar_lea.vmem %s22, %s3199
        // Predicated region
        $region105: #{decoder_layer_forward.1} parent=103 // pred_check
          %p3201 = pneg %p511
        $region106: #{decoder_layer_forward.1} parent=103 // pred_check_branch
          %3203 = sbr.rel (%p3201) target = $region108
        $region107: #{decoder_layer_forward.1} parent=103 // pred_region
          %s3205 = ssub.s32 256, 256
          %3206 = vsyncadd %s3192, %s3205
          %s3207 = smul.addr %s37, 2
          %s3208 = smul.addr %s3207, 128
          %s3209 = scalar_lea.hbm %s21, %s3208
          %s3210 = sshll.u32 %s3195, 4
          %s3211 = int_to_ptr.vmem [resolvable:$true] %s3210
          %3216 = dma.vmem_to_hbm [thread:$0]  %s3211, 256, %s3209, %s3192, 128, 128, 8
        $region108: #{decoder_layer_forward.1} parent=103 // pred_fallthru
          _
        // Predicated region
        $region109: #{decoder_layer_forward.1} parent=103 // pred_check
          %p3217 = pneg %p537
        $region110: #{decoder_layer_forward.1} parent=103 // pred_check_branch
          %3219 = sbr.rel (%p3217) target = $region112
        $region111: #{decoder_layer_forward.1} parent=103 // pred_region
          _
        $region112: #{decoder_layer_forward.1} parent=103 // pred_fallthru
          _
      $region104: #{decoder_layer_forward.1} parent=5 // pred_fallthru
        _
      %p3220 = scmp.le.s32.totalorder 2, %s32
      // Predicated region
      $region113: #{decoder_layer_forward.1} parent=5 // pred_check
        %p3221 = pneg %p3220
      $region114: #{decoder_layer_forward.1} parent=5 // pred_check_branch
        %3223 = sbr.rel (%p3221) target = $region116
      $region115: #{decoder_layer_forward.1} parent=5 // pred_region
        %s3224 = ssub.s32 %s32, 2
        // Predicated region
        $region117: #{decoder_layer_forward.1} parent=115 // pred_check
          %p3225 = pneg %p517
        $region118: #{decoder_layer_forward.1} parent=115 // pred_check_branch
          %3227 = sbr.rel (%p3225) target = $region120
        $region119: #{decoder_layer_forward.1} parent=115 // pred_region
          %s3228 = sand.u32 %s502, 1
          %s3229 = scalar_lea.sflag [#allocation4], %s3228
          %s3230 = sand.u32 %s502, 1
          %s3231 = smul.addr %s3230, 16
          %s3232 = scalar_lea.vmem [#allocation3], %s3231
          %3233 = dma.done %s3229, 256
        $region120: #{decoder_layer_forward.1} parent=115 // pred_fallthru
          _
        // Predicated region
        $region121: #{decoder_layer_forward.1} parent=115 // pred_check
          %p3234 = pneg %p543
        $region122: #{decoder_layer_forward.1} parent=115 // pred_check_branch
          %3236 = sbr.rel (%p3234) target = $region124
        $region123: #{decoder_layer_forward.1} parent=115 // pred_region
          %p3237 = scmp.lt.s32.totalorder %s38, 1
          %s3238 = scalar_select %p3237, %s38, 1
          %s3239 = smul.addr %s3238, 2
          %s3240 = smul.addr %s3239, 8
          %s3241 = scalar_lea.vmem %s22, %s3240
        $region124: #{decoder_layer_forward.1} parent=115 // pred_fallthru
          _
      $region116: #{decoder_layer_forward.1} parent=5 // pred_fallthru
        _
    $region6: #{decoder_layer_forward.1} parent=1 // loop_footer
      %s36 = sadd.s32 1, %s32
    $region7: #{decoder_layer_forward.1} parent=1 // loop_footer_branch
      %31 = sbr.rel target = $region3
    $region8: #{decoder_layer_forward.1} parent=1 // loop_exit
      _
    %3242 = vsyncpa [#allocation4], 1
    %s3243 = scalar_lea.sflag [#allocation4], 1
    %3244 = vsyncpa %s3243, 1

</llo_original>
